<compile_context>
chip_gen: v7x
topology: tpu7x:2x2x1
jax: 0.10.0
libtpu: 0.0.40
codegen_flags: <defaults>
</compile_context>

<pallas_src>
import functools

import jax
import jax.numpy as jnp
from jax.experimental import pallas as pl
from jax.experimental.pallas import tpu as pltpu


def _layer_norm(x, g, b, eps=1e-5):
    mu = jnp.mean(x, axis=-1, keepdims=True)
    var = jnp.mean((x - mu) ** 2, axis=-1, keepdims=True)
    return (x - mu) * jax.lax.rsqrt(var + eps) * g + b


def transformer_block_kernel(v_ref, k_ref, q_ref,
                             wvT_ref, wkT_ref, wqT_ref,
                             woT_ref, w1T_ref, bw1_ref, w2T_ref,
                             vecs_ref,
                             o_ref,
                             *, heads, kv_chunk, ff_chunk, approx_recip):
    B, Tq, F = q_ref.shape
    Tk = k_ref.shape[1]
    Dh = F // heads
    GW = wqT_ref.shape[0]          # grouped projection width (G heads * Dh)
    J = F // GW                    # number of head groups
    FE = w1T_ref.shape[1]
    M = B * Tq
    cdt = wqT_ref.dtype            # MXU operand dtype (bf16 by default)
    f32 = jnp.float32

    q2 = q_ref[...].reshape(M, F)  # f32, kept for the residual

    def project(x_ref, wT_ref):
        # Shared per-head Linear(Dh, Dh, bias=False), applied as a grouped
        # block-diagonal (GW, GW) matmul: ~128-lane MXU contraction without
        # replicating the weight across all heads.
        b, t, _ = x_ref.shape
        x = x_ref[...].reshape(b * t * J, GW).astype(cdt)
        y = jnp.dot(x, wT_ref[...], preferred_element_type=f32)
        return y.reshape(b, t, F)

    # 1/sqrt(embed_size) softmax scale is folded into wqT in the wrapper.
    q_p = project(q_ref, wqT_ref)          # (B, Tq, F) f32
    k_p = project(k_ref, wkT_ref)          # (B, Tk, F)
    v_p = project(v_ref, wvT_ref)          # (B, Tk, F)

    vec = vecs_ref[...]                    # (6, F) packed vectors, f32
    bo, g1, be1 = vec[0:1], vec[1:2], vec[2:3]
    bw2, g2, be2 = vec[3:4], vec[4:5], vec[5:6]

    # Attention + fc_out, head by head (3-D einsums batched over the batch
    # tile).  fc_out is folded into the head epilogue so every head output
    # lands in the lane-dense (M, F) accumulator via a matmul - no VMEM
    # scratch and no sub-128-lane stores.
    # TODO(synk): if a two-batch-dim dot_general is profitable on the target
    # Mosaic version, all heads could be fused into one 'bqhd,bkhd->bhqk'.
    kv_starts = list(range(0, Tk, kv_chunk))
    attn_fc = jnp.zeros((M, F), f32)
    for h in range(heads):
        hs, he = h * Dh, (h + 1) * Dh
        qh = q_p[:, :, hs:he].astype(cdt)                 # (B, Tq, Dh)

        # Flash-style online softmax over kv chunks: only one (B, Tq, kv_chunk)
        # score block is live at a time.
        m_i = None
        l_i = None
        acc = None
        for c0 in kv_starts:
            cw = min(kv_chunk, Tk - c0)
            kh = k_p[:, c0:c0 + cw, hs:he].astype(cdt)    # (B, cw, Dh)
            vh = v_p[:, c0:c0 + cw, hs:he].astype(cdt)    # (B, cw, Dh)
            s = jnp.einsum("bqd,bkd->bqk", qh, kh,
                           preferred_element_type=f32)    # (B, Tq, cw)
            if m_i is None:
                m_i = jnp.max(s, axis=-1, keepdims=True)
                p = jnp.exp(s - m_i)
                l_i = jnp.sum(p, axis=-1, keepdims=True)
                acc = jnp.einsum("bqk,bkd->bqd", p.astype(cdt), vh,
                                 preferred_element_type=f32)
            else:
                m_new = jnp.maximum(m_i, jnp.max(s, axis=-1, keepdims=True))
                alpha = jnp.exp(m_i - m_new)
                p = jnp.exp(s - m_new)
                l_i = alpha * l_i + jnp.sum(p, axis=-1, keepdims=True)
                acc = alpha * acc + jnp.einsum("bqk,bkd->bqd", p.astype(cdt),
                                               vh, preferred_element_type=f32)
                m_i = m_new

        # Deferred softmax normalization on the small (B, Tq, Dh) output.
        if approx_recip:
            o_h = acc * pl.reciprocal(l_i, approx=True)
        else:
            o_h = acc / l_i
        # fc_out contribution of this head (lane-dense (M, F) accumulate).
        attn_fc = attn_fc + jnp.dot(o_h.reshape(M, Dh).astype(cdt),
                                    woT_ref[hs:he, :],
                                    preferred_element_type=f32)

    # TODO(synk): nn.Dropout is identity here (inference mode); training-mode
    # stochastic masking is not reproduced.
    x = _layer_norm(attn_fc + bo + q2, g1, be1)
    xc = x.astype(cdt)

    # Feed-forward: Linear -> ReLU -> Linear, FE processed in ff_chunk column
    # blocks so the (M, FE) hidden activation is never live in full width.
    ff = jnp.zeros((M, F), f32)
    for c0 in range(0, FE, ff_chunk):
        cw = min(ff_chunk, FE - c0)
        h1 = jnp.maximum(
            jnp.dot(xc, w1T_ref[:, c0:c0 + cw],
                    preferred_element_type=f32) + bw1_ref[:, c0:c0 + cw], 0.0)
        ff = ff + jnp.dot(h1.astype(cdt), w2T_ref[c0:c0 + cw, :],
                          preferred_element_type=f32)
    ff = ff + bw2

    out = _layer_norm(ff + x, g2, be2)
    o_ref[...] = out.reshape(B, Tq, F).astype(o_ref.dtype)


def _pick_batch_tile(N, Tq, *, target_rows=256, max_rows=2048):
    # Target >= 256 matmul rows per grid step (v6e/v7x MXU), capped by VMEM,
    # while keeping >= 2 grid steps so the "parallel" axis can shard across
    # both v7x TensorCores.
    divs = [d for d in range(1, N + 1) if N % d == 0]
    fit = [d for d in divs if d * Tq <= max_rows] or [1]
    multi = [d for d in fit if N // d >= 2]
    cands = multi if multi else fit
    hit = [d for d in cands if d * Tq >= target_rows]
    return min(hit) if hit else max(cands)


def _pick_chunk(total, target):
    if total <= target:
        return total
    for c in range(target, 0, -1):
        if total % c == 0:
            return c
    return total


def _grouped_head_weight(w, heads, scale=1.0, target_lanes=128):
    """kron(I_G, w.T) with G heads per group so the grouped width is ~128."""
    Dh = w.shape[0]
    F = heads * Dh
    if F <= target_lanes:
        G = heads
    else:
        G = max(1, min(heads, target_lanes // max(Dh, 1)))
        while G > 1 and heads % G != 0:
            G -= 1
    eye = jnp.eye(G, dtype=jnp.float32)
    return jnp.kron(eye, w.T.astype(jnp.float32)) * scale, G


def _const_spec(shape):
    """Full-array, constant-index operand; single-buffered when supported."""
    index_map = lambda *args: (0,) * len(shape)
    try:
        return pl.BlockSpec(shape, index_map, pipeline_mode=pl.Buffered(1))
    except Exception:  # older JAX without pipeline_mode / Buffered
        return pl.BlockSpec(shape, index_map)


def _vmem_limit_bytes(batch_tile, Tq, Tk, F, FE, GW, kv_chunk, ff_chunk, wbytes):
    f32 = 4
    m = batch_tile * Tq
    io = 2 * batch_tile * (Tq + 2 * Tk) * F * f32       # double-buffered q/k/v
    io += 2 * m * F * f32                               # double-buffered output
    wgt = (3 * GW * GW + F * F + 2 * F * FE) * wbytes + (FE + 6 * F) * f32
    inter = m * (8 * F + ff_chunk) * f32                # residuals / accums / h1
    inter += batch_tile * (Tq * kv_chunk + 3 * Tk * F) * f32
    est = io + wgt + inter
    # Clamp to [32 MiB (default scoped limit), 64 MiB (v7x physical VMEM)].
    return int(min(64 << 20, max(32 << 20, 2 * est)))


def transformer_block(value, key, query, params, *, heads,
                      matmul_dtype=jnp.bfloat16, approx_recip=True,
                      batch_tile=None, kv_chunk=None, ff_chunk=None):
    # TODO(synk): when value is key is query (pure self-attention) the three
    # input streams / projections could be deduped and fused into one matmul.
    N, Tq, F = query.shape
    Tk = key.shape[1]
    assert value.shape[1] == Tk, "key/value time lengths must match"
    assert F % heads == 0, "embed_size must be divisible by heads"
    FE = params["w1"].shape[0]                  # forward_expansion * F
    f32 = jnp.float32
    mdt = jnp.dtype(matmul_dtype)

    if batch_tile is None:
        batch_tile = _pick_batch_tile(N, Tq)
    assert N % batch_tile == 0, "batch must be divisible by batch_tile"
    grid_n = N // batch_tile

    kv_chunk = _pick_chunk(Tk, 512) if kv_chunk is None else min(kv_chunk, Tk)
    ff_chunk = _pick_chunk(FE, 512) if ff_chunk is None else min(ff_chunk, FE)

    # Grouped per-head projection weights (shared (Dh, Dh) nn.Linear replicated
    # only across ~128/Dh heads).  Softmax 1/sqrt(embed_size) folded into wq.
    wvT, _ = _grouped_head_weight(params["wv"], heads)
    wkT, _ = _grouped_head_weight(params["wk"], heads)
    wqT, _ = _grouped_head_weight(params["wq"], heads, scale=float(F) ** -0.5)
    GW = wqT.shape[0]
    wvT = wvT.astype(mdt)
    wkT = wkT.astype(mdt)
    wqT = wqT.astype(mdt)

    woT = params["wo"].T.astype(mdt)            # (F, F)
    w1T = params["w1"].T.astype(mdt)            # (F, FE)
    w2T = params["w2"].T.astype(mdt)            # (FE, F)
    bw1 = params["b1"].reshape(1, FE).astype(f32)

    # Pack the six (F,)-sized vectors into one (6, F) operand.
    vecs = jnp.stack([params["bo"], params["g1"], params["beta1"],
                      params["b2"], params["g2"], params["beta2"]],
                     axis=0).astype(f32)

    kernel = functools.partial(transformer_block_kernel, heads=heads,
                               kv_chunk=kv_chunk, ff_chunk=ff_chunk,
                               approx_recip=approx_recip)

    vmem_limit = _vmem_limit_bytes(batch_tile, Tq, Tk, F, FE, GW,
                                   kv_chunk, ff_chunk, mdt.itemsize)

    return pl.pallas_call(
        kernel,
        out_shape=jax.ShapeDtypeStruct((N, Tq, F), query.dtype),
        grid_spec=pltpu.PrefetchScalarGridSpec(
            num_scalar_prefetch=0,
            grid=(grid_n,),
            in_specs=[
                pl.BlockSpec((batch_tile, Tk, F), lambda n: (n, 0, 0)),  # value
                pl.BlockSpec((batch_tile, Tk, F), lambda n: (n, 0, 0)),  # key
                pl.BlockSpec((batch_tile, Tq, F), lambda n: (n, 0, 0)),  # query
                _const_spec((GW, GW)), _const_spec((GW, GW)), _const_spec((GW, GW)),
                _const_spec((F, F)),                                     # woT
                _const_spec((F, FE)), _const_spec((1, FE)), _const_spec((FE, F)),
                _const_spec((6, F)),                                     # packed vecs
            ],
            out_specs=pl.BlockSpec((batch_tile, Tq, F), lambda n: (n, 0, 0)),
        ),
        compiler_params=pltpu.CompilerParams(
            dimension_semantics=("parallel",),
            vmem_limit_bytes=vmem_limit),
    )(value, key, query, wvT, wkT, wqT, woT, w1T, bw1, w2T, vecs)


def _reference(value, key, query, params, *, heads):
    """Pure-JAX reference mirroring the PyTorch forward (dropout = identity)."""
    N, Tq, F = query.shape
    Dh = F // heads

    def proj(x, w):          # per-head Linear(head_dim, head_dim, bias=False)
        x4 = x.reshape(N, x.shape[1], heads, Dh)
        return jnp.einsum("ntHd,ed->ntHe", x4, w)

    q4 = proj(query, params["wq"])
    k4 = proj(key, params["wk"])
    v4 = proj(value, params["wv"])
    energy = jnp.einsum("nqhd,nkhd->nhqk", q4, k4)
    attn = jax.nn.softmax(energy / jnp.sqrt(jnp.float32(F)), axis=3)
    out = jnp.einsum("nhql,nlhd->nqhd", attn, v4).reshape(N, Tq, F)
    out = out @ params["wo"].T + params["bo"]

    def ln(x, g, b):
        mu = jnp.mean(x, -1, keepdims=True)
        var = jnp.mean((x - mu) ** 2, -1, keepdims=True)
        return (x - mu) * jax.lax.rsqrt(var + 1e-5) * g + b

    x = ln(out + query, params["g1"], params["beta1"])
    ff = jnp.maximum(x @ params["w1"].T + params["b1"], 0.0) @ params["w2"].T + params["b2"]
    return ln(ff + x, params["g2"], params["beta2"])


if __name__ == "__main__":
    N, T, Nfreq, heads, forward_expansion = 8, 8, 32, 4, 4
    Dh = Nfreq // heads

    root = jax.random.PRNGKey(0)
    keys = jax.random.split(root, 16)

    value = jax.random.normal(keys[0], (N, T, Nfreq), jnp.float32)
    key_t = jax.random.normal(keys[1], (N, T, Nfreq), jnp.float32)
    query = jax.random.normal(keys[2], (N, T, Nfreq), jnp.float32)

    params = {
        "wv": 0.1 * jax.random.normal(keys[3], (Dh, Dh), jnp.float32),
        "wk": 0.1 * jax.random.normal(keys[4], (Dh, Dh), jnp.float32),
        "wq": 0.1 * jax.random.normal(keys[5], (Dh, Dh), jnp.float32),
        "wo": 0.1 * jax.random.normal(keys[6], (Nfreq, Nfreq), jnp.float32),
        "bo": 0.1 * jax.random.normal(keys[7], (Nfreq,), jnp.float32),
        "g1": jnp.ones((Nfreq,), jnp.float32),
        "beta1": jnp.zeros((Nfreq,), jnp.float32),
        "g2": jnp.ones((Nfreq,), jnp.float32),
        "beta2": jnp.zeros((Nfreq,), jnp.float32),
        "w1": 0.1 * jax.random.normal(keys[8], (forward_expansion * Nfreq, Nfreq), jnp.float32),
        "b1": 0.1 * jax.random.normal(keys[9], (forward_expansion * Nfreq,), jnp.float32),
        "w2": 0.1 * jax.random.normal(keys[10], (Nfreq, forward_expansion * Nfreq), jnp.float32),
        "b2": 0.1 * jax.random.normal(keys[11], (Nfreq,), jnp.float32),
    }

    ref = _reference(value, key_t, query, params, heads=heads)

    # 1) Numerically faithful path: f32 MXU operands + exact softmax divide.
    out_f32 = transformer_block(value, key_t, query, params, heads=heads,
                                matmul_dtype=jnp.float32, approx_recip=False)
    out_f32 = jax.block_until_ready(out_f32)
    assert out_f32.shape == (N, T, Nfreq)
    assert jnp.allclose(out_f32, ref, rtol=1e-4, atol=1e-4), "f32 kernel mismatch"

    # 2) Performance default (all generations): bf16 MXU operands with f32
    #    accumulation / softmax / LayerNorm, approx EUP reciprocal.
    out_bf16 = transformer_block(value, key_t, query, params, heads=heads)
    out_bf16 = jax.block_until_ready(out_bf16)
    assert jnp.allclose(out_bf16, ref, rtol=3e-2, atol=3e-2), "bf16 kernel mismatch"

    # 3) Longer sequence exercising the flash-style kv chunking (2 chunks) and
    #    the FE-chunked MLP (2 chunks).
    N2, T2 = 4, 256
    v2 = jax.random.normal(keys[12], (N2, T2, Nfreq), jnp.float32)
    k2 = jax.random.normal(keys[13], (N2, T2, Nfreq), jnp.float32)
    q2 = jax.random.normal(keys[14], (N2, T2, Nfreq), jnp.float32)
    ref2 = _reference(v2, k2, q2, params, heads=heads)
    out2 = transformer_block(v2, k2, q2, params, heads=heads,
                             matmul_dtype=jnp.float32, approx_recip=False,
                             kv_chunk=128, ff_chunk=64)
    out2 = jax.block_until_ready(out2)
    assert jnp.allclose(out2, ref2, rtol=2e-4, atol=2e-4), "chunked kernel mismatch"

    print("KERNEL_OK")
</pallas_src>

<mosaic_0001>
module attributes {stable_mosaic.version = 11 : i64} {
  func.func @transformer_block_kernel(%arg0: i32, %arg1: memref<4x8x32xf32, #tpu.memory_space<vmem>>, %arg2: memref<4x8x32xf32, #tpu.memory_space<vmem>>, %arg3: memref<4x8x32xf32, #tpu.memory_space<vmem>>, %arg4: memref<32x32xf32, #tpu.memory_space<vmem>>, %arg5: memref<32x32xf32, #tpu.memory_space<vmem>>, %arg6: memref<32x32xf32, #tpu.memory_space<vmem>>, %arg7: memref<32x32xf32, #tpu.memory_space<vmem>>, %arg8: memref<32x128xf32, #tpu.memory_space<vmem>>, %arg9: memref<1x128xf32, #tpu.memory_space<vmem>>, %arg10: memref<128x32xf32, #tpu.memory_space<vmem>>, %arg11: memref<6x32xf32, #tpu.memory_space<vmem>>, %arg12: memref<4x8x32xf32, #tpu.memory_space<vmem>>) attributes {dimension_semantics = [#tpu.dimension_semantics<parallel>], iteration_bounds = array<i64: 2>, scalar_prefetch = 0 : i64, scratch_operands = 0 : i64, tpu.core_type = #tpu.core_type<tc>, window_params = [{transform_indices = @transform_0, window_bounds = array<i64: 4, 8, 32>}, {transform_indices = @transform_1, window_bounds = array<i64: 4, 8, 32>}, {transform_indices = @transform_2, window_bounds = array<i64: 4, 8, 32>}, {pipeline_mode = #tpu.pipeline_mode<synchronous>, transform_indices = @transform_3, window_bounds = array<i64: 32, 32>}, {pipeline_mode = #tpu.pipeline_mode<synchronous>, transform_indices = @transform_4, window_bounds = array<i64: 32, 32>}, {pipeline_mode = #tpu.pipeline_mode<synchronous>, transform_indices = @transform_5, window_bounds = array<i64: 32, 32>}, {pipeline_mode = #tpu.pipeline_mode<synchronous>, transform_indices = @transform_6, window_bounds = array<i64: 32, 32>}, {pipeline_mode = #tpu.pipeline_mode<synchronous>, transform_indices = @transform_7, window_bounds = array<i64: 32, 128>}, {pipeline_mode = #tpu.pipeline_mode<synchronous>, transform_indices = @transform_8, window_bounds = array<i64: 1, 128>}, {pipeline_mode = #tpu.pipeline_mode<synchronous>, transform_indices = @transform_9, window_bounds = array<i64: 128, 32>}, {pipeline_mode = #tpu.pipeline_mode<synchronous>, transform_indices = @transform_10, window_bounds = array<i64: 6, 32>}, {transform_indices = @transform_11, window_bounds = array<i64: 4, 8, 32>}]} {
    %c0 = arith.constant 0 : index
    %c0_0 = arith.constant 0 : index
    %c0_1 = arith.constant 0 : index
    %0 = vector.load %arg3[%c0, %c0_0, %c0_1] : memref<4x8x32xf32, #tpu.memory_space<vmem>>, vector<4x8x32xf32>
    %1 = vector.shape_cast %0 : vector<4x8x32xf32> to vector<32x32xf32>
    %c0_2 = arith.constant 0 : index
    %c0_3 = arith.constant 0 : index
    %c0_4 = arith.constant 0 : index
    %2 = vector.load %arg3[%c0_2, %c0_3, %c0_4] : memref<4x8x32xf32, #tpu.memory_space<vmem>>, vector<4x8x32xf32>
    %3 = vector.shape_cast %2 : vector<4x8x32xf32> to vector<32x32xf32>
    %c0_5 = arith.constant 0 : index
    %c0_6 = arith.constant 0 : index
    %4 = vector.load %arg6[%c0_5, %c0_6] : memref<32x32xf32, #tpu.memory_space<vmem>>, vector<32x32xf32>
    %cst = arith.constant dense<0.000000e+00> : vector<32x32xf32>
    %5 = tpu.matmul %3, %4, %cst {dimension_numbers = #tpu.dot_dimension_numbers<[1], [0], [0], [1], [0, 0, 1, 1], [], []>} : vector<32x32xf32>, vector<32x32xf32>, vector<32x32xf32> -> vector<32x32xf32>
    %6 = vector.shape_cast %5 : vector<32x32xf32> to vector<4x8x32xf32>
    %c0_7 = arith.constant 0 : index
    %c0_8 = arith.constant 0 : index
    %c0_9 = arith.constant 0 : index
    %7 = vector.load %arg2[%c0_7, %c0_8, %c0_9] : memref<4x8x32xf32, #tpu.memory_space<vmem>>, vector<4x8x32xf32>
    %8 = vector.shape_cast %7 : vector<4x8x32xf32> to vector<32x32xf32>
    %c0_10 = arith.constant 0 : index
    %c0_11 = arith.constant 0 : index
    %9 = vector.load %arg5[%c0_10, %c0_11] : memref<32x32xf32, #tpu.memory_space<vmem>>, vector<32x32xf32>
    %cst_12 = arith.constant dense<0.000000e+00> : vector<32x32xf32>
    %10 = tpu.matmul %8, %9, %cst_12 {dimension_numbers = #tpu.dot_dimension_numbers<[1], [0], [0], [1], [0, 0, 1, 1], [], []>} : vector<32x32xf32>, vector<32x32xf32>, vector<32x32xf32> -> vector<32x32xf32>
    %11 = vector.shape_cast %10 : vector<32x32xf32> to vector<4x8x32xf32>
    %c0_13 = arith.constant 0 : index
    %c0_14 = arith.constant 0 : index
    %c0_15 = arith.constant 0 : index
    %12 = vector.load %arg1[%c0_13, %c0_14, %c0_15] : memref<4x8x32xf32, #tpu.memory_space<vmem>>, vector<4x8x32xf32>
    %13 = vector.shape_cast %12 : vector<4x8x32xf32> to vector<32x32xf32>
    %c0_16 = arith.constant 0 : index
    %c0_17 = arith.constant 0 : index
    %14 = vector.load %arg4[%c0_16, %c0_17] : memref<32x32xf32, #tpu.memory_space<vmem>>, vector<32x32xf32>
    %cst_18 = arith.constant dense<0.000000e+00> : vector<32x32xf32>
    %15 = tpu.matmul %13, %14, %cst_18 {dimension_numbers = #tpu.dot_dimension_numbers<[1], [0], [0], [1], [0, 0, 1, 1], [], []>} : vector<32x32xf32>, vector<32x32xf32>, vector<32x32xf32> -> vector<32x32xf32>
    %16 = vector.shape_cast %15 : vector<32x32xf32> to vector<4x8x32xf32>
    %c0_19 = arith.constant 0 : index
    %c0_20 = arith.constant 0 : index
    %17 = vector.load %arg11[%c0_19, %c0_20] : memref<6x32xf32, #tpu.memory_space<vmem>>, vector<6x32xf32>
    %18 = vector.extract_strided_slice %17 {offsets = [0, 0], sizes = [1, 32], strides = [1, 1]} : vector<6x32xf32> to vector<1x32xf32>
    %19 = vector.extract_strided_slice %17 {offsets = [1, 0], sizes = [1, 32], strides = [1, 1]} : vector<6x32xf32> to vector<1x32xf32>
    %20 = vector.extract_strided_slice %17 {offsets = [2, 0], sizes = [1, 32], strides = [1, 1]} : vector<6x32xf32> to vector<1x32xf32>
    %21 = vector.extract_strided_slice %17 {offsets = [3, 0], sizes = [1, 32], strides = [1, 1]} : vector<6x32xf32> to vector<1x32xf32>
    %22 = vector.extract_strided_slice %17 {offsets = [4, 0], sizes = [1, 32], strides = [1, 1]} : vector<6x32xf32> to vector<1x32xf32>
    %23 = vector.extract_strided_slice %17 {offsets = [5, 0], sizes = [1, 32], strides = [1, 1]} : vector<6x32xf32> to vector<1x32xf32>
    %cst_21 = arith.constant 0.000000e+00 : f32
    %24 = vector.broadcast %cst_21 : f32 to vector<32x32xf32>
    %25 = vector.extract_strided_slice %6 {offsets = [0, 0, 0], sizes = [4, 8, 8], strides = [1, 1, 1]} : vector<4x8x32xf32> to vector<4x8x8xf32>
    %26 = vector.extract_strided_slice %11 {offsets = [0, 0, 0], sizes = [4, 8, 8], strides = [1, 1, 1]} : vector<4x8x32xf32> to vector<4x8x8xf32>
    %27 = vector.extract_strided_slice %16 {offsets = [0, 0, 0], sizes = [4, 8, 8], strides = [1, 1, 1]} : vector<4x8x32xf32> to vector<4x8x8xf32>
    "tpu.trace_start"() <{level = 10 : i32, message = "bqd,bkd->bqk"}> : () -> ()
    %cst_22 = arith.constant dense<0.000000e+00> : vector<4x8x8xf32>
    %28 = tpu.matmul %25, %26, %cst_22 {dimension_numbers = #tpu.dot_dimension_numbers<[2], [2], [1], [1], [0, 0, 0, 1, 1, 1], [0], [0]>} : vector<4x8x8xf32>, vector<4x8x8xf32>, vector<4x8x8xf32> -> vector<4x8x8xf32>
    "tpu.trace_stop"() : () -> ()
    %cst_23 = arith.constant dense<0xFF800000> : vector<4x8xf32>
    %29 = vector.multi_reduction <maximumf>, %28, %cst_23 [2] : vector<4x8x8xf32> to vector<4x8xf32>
    %30 = vector.shape_cast %29 : vector<4x8xf32> to vector<4x8x1xf32>
    %31 = vector.broadcast %30 : vector<4x8x1xf32> to vector<4x8x8xf32>
    %32 = arith.subf %28, %31 : vector<4x8x8xf32>
    %33 = math.exp %32 : vector<4x8x8xf32>
    %cst_24 = arith.constant dense<0.000000e+00> : vector<4x8xf32>
    %34 = vector.multi_reduction <add>, %33, %cst_24 [2] : vector<4x8x8xf32> to vector<4x8xf32>
    %35 = vector.shape_cast %34 : vector<4x8xf32> to vector<4x8x1xf32>
    "tpu.trace_start"() <{level = 10 : i32, message = "bqk,bkd->bqd"}> : () -> ()
    %cst_25 = arith.constant dense<0.000000e+00> : vector<4x8x8xf32>
    %36 = tpu.matmul %33, %27, %cst_25 {dimension_numbers = #tpu.dot_dimension_numbers<[2], [1], [1], [2], [0, 0, 0, 1, 1, 2], [0], [0]>} : vector<4x8x8xf32>, vector<4x8x8xf32>, vector<4x8x8xf32> -> vector<4x8x8xf32>
    "tpu.trace_stop"() : () -> ()
    %37 = vector.broadcast %35 : vector<4x8x1xf32> to vector<4x8x8xf32>
    %38 = arith.divf %36, %37 : vector<4x8x8xf32>
    %39 = vector.shape_cast %38 : vector<4x8x8xf32> to vector<32x8xf32>
    %c0_26 = arith.constant 0 : index
    %c0_27 = arith.constant 0 : index
    %40 = vector.load %arg7[%c0_26, %c0_27] : memref<32x32xf32, #tpu.memory_space<vmem>>, vector<8x32xf32>
    %cst_28 = arith.constant dense<0.000000e+00> : vector<32x32xf32>
    %41 = tpu.matmul %39, %40, %cst_28 {dimension_numbers = #tpu.dot_dimension_numbers<[1], [0], [0], [1], [0, 0, 1, 1], [], []>} : vector<32x8xf32>, vector<8x32xf32>, vector<32x32xf32> -> vector<32x32xf32>
    %42 = arith.addf %24, %41 : vector<32x32xf32>
    %43 = vector.extract_strided_slice %6 {offsets = [0, 0, 8], sizes = [4, 8, 8], strides = [1, 1, 1]} : vector<4x8x32xf32> to vector<4x8x8xf32>
    %44 = vector.extract_strided_slice %11 {offsets = [0, 0, 8], sizes = [4, 8, 8], strides = [1, 1, 1]} : vector<4x8x32xf32> to vector<4x8x8xf32>
    %45 = vector.extract_strided_slice %16 {offsets = [0, 0, 8], sizes = [4, 8, 8], strides = [1, 1, 1]} : vector<4x8x32xf32> to vector<4x8x8xf32>
    "tpu.trace_start"() <{level = 10 : i32, message = "bqd,bkd->bqk"}> : () -> ()
    %cst_29 = arith.constant dense<0.000000e+00> : vector<4x8x8xf32>
    %46 = tpu.matmul %43, %44, %cst_29 {dimension_numbers = #tpu.dot_dimension_numbers<[2], [2], [1], [1], [0, 0, 0, 1, 1, 1], [0], [0]>} : vector<4x8x8xf32>, vector<4x8x8xf32>, vector<4x8x8xf32> -> vector<4x8x8xf32>
    "tpu.trace_stop"() : () -> ()
    %cst_30 = arith.constant dense<0xFF800000> : vector<4x8xf32>
    %47 = vector.multi_reduction <maximumf>, %46, %cst_30 [2] : vector<4x8x8xf32> to vector<4x8xf32>
    %48 = vector.shape_cast %47 : vector<4x8xf32> to vector<4x8x1xf32>
    %49 = vector.broadcast %48 : vector<4x8x1xf32> to vector<4x8x8xf32>
    %50 = arith.subf %46, %49 : vector<4x8x8xf32>
    %51 = math.exp %50 : vector<4x8x8xf32>
    %cst_31 = arith.constant dense<0.000000e+00> : vector<4x8xf32>
    %52 = vector.multi_reduction <add>, %51, %cst_31 [2] : vector<4x8x8xf32> to vector<4x8xf32>
    %53 = vector.shape_cast %52 : vector<4x8xf32> to vector<4x8x1xf32>
    "tpu.trace_start"() <{level = 10 : i32, message = "bqk,bkd->bqd"}> : () -> ()
    %cst_32 = arith.constant dense<0.000000e+00> : vector<4x8x8xf32>
    %54 = tpu.matmul %51, %45, %cst_32 {dimension_numbers = #tpu.dot_dimension_numbers<[2], [1], [1], [2], [0, 0, 0, 1, 1, 2], [0], [0]>} : vector<4x8x8xf32>, vector<4x8x8xf32>, vector<4x8x8xf32> -> vector<4x8x8xf32>
    "tpu.trace_stop"() : () -> ()
    %55 = vector.broadcast %53 : vector<4x8x1xf32> to vector<4x8x8xf32>
    %56 = arith.divf %54, %55 : vector<4x8x8xf32>
    %57 = vector.shape_cast %56 : vector<4x8x8xf32> to vector<32x8xf32>
    %c8 = arith.constant 8 : index
    %c0_33 = arith.constant 0 : index
    %58 = vector.load %arg7[%c8, %c0_33] : memref<32x32xf32, #tpu.memory_space<vmem>>, vector<8x32xf32>
    %cst_34 = arith.constant dense<0.000000e+00> : vector<32x32xf32>
    %59 = tpu.matmul %57, %58, %cst_34 {dimension_numbers = #tpu.dot_dimension_numbers<[1], [0], [0], [1], [0, 0, 1, 1], [], []>} : vector<32x8xf32>, vector<8x32xf32>, vector<32x32xf32> -> vector<32x32xf32>
    %60 = arith.addf %42, %59 : vector<32x32xf32>
    %61 = vector.extract_strided_slice %6 {offsets = [0, 0, 16], sizes = [4, 8, 8], strides = [1, 1, 1]} : vector<4x8x32xf32> to vector<4x8x8xf32>
    %62 = vector.extract_strided_slice %11 {offsets = [0, 0, 16], sizes = [4, 8, 8], strides = [1, 1, 1]} : vector<4x8x32xf32> to vector<4x8x8xf32>
    %63 = vector.extract_strided_slice %16 {offsets = [0, 0, 16], sizes = [4, 8, 8], strides = [1, 1, 1]} : vector<4x8x32xf32> to vector<4x8x8xf32>
    "tpu.trace_start"() <{level = 10 : i32, message = "bqd,bkd->bqk"}> : () -> ()
    %cst_35 = arith.constant dense<0.000000e+00> : vector<4x8x8xf32>
    %64 = tpu.matmul %61, %62, %cst_35 {dimension_numbers = #tpu.dot_dimension_numbers<[2], [2], [1], [1], [0, 0, 0, 1, 1, 1], [0], [0]>} : vector<4x8x8xf32>, vector<4x8x8xf32>, vector<4x8x8xf32> -> vector<4x8x8xf32>
    "tpu.trace_stop"() : () -> ()
    %cst_36 = arith.constant dense<0xFF800000> : vector<4x8xf32>
    %65 = vector.multi_reduction <maximumf>, %64, %cst_36 [2] : vector<4x8x8xf32> to vector<4x8xf32>
    %66 = vector.shape_cast %65 : vector<4x8xf32> to vector<4x8x1xf32>
    %67 = vector.broadcast %66 : vector<4x8x1xf32> to vector<4x8x8xf32>
    %68 = arith.subf %64, %67 : vector<4x8x8xf32>
    %69 = math.exp %68 : vector<4x8x8xf32>
    %cst_37 = arith.constant dense<0.000000e+00> : vector<4x8xf32>
    %70 = vector.multi_reduction <add>, %69, %cst_37 [2] : vector<4x8x8xf32> to vector<4x8xf32>
    %71 = vector.shape_cast %70 : vector<4x8xf32> to vector<4x8x1xf32>
    "tpu.trace_start"() <{level = 10 : i32, message = "bqk,bkd->bqd"}> : () -> ()
    %cst_38 = arith.constant dense<0.000000e+00> : vector<4x8x8xf32>
    %72 = tpu.matmul %69, %63, %cst_38 {dimension_numbers = #tpu.dot_dimension_numbers<[2], [1], [1], [2], [0, 0, 0, 1, 1, 2], [0], [0]>} : vector<4x8x8xf32>, vector<4x8x8xf32>, vector<4x8x8xf32> -> vector<4x8x8xf32>
    "tpu.trace_stop"() : () -> ()
    %73 = vector.broadcast %71 : vector<4x8x1xf32> to vector<4x8x8xf32>
    %74 = arith.divf %72, %73 : vector<4x8x8xf32>
    %75 = vector.shape_cast %74 : vector<4x8x8xf32> to vector<32x8xf32>
    %c16 = arith.constant 16 : index
    %c0_39 = arith.constant 0 : index
    %76 = vector.load %arg7[%c16, %c0_39] : memref<32x32xf32, #tpu.memory_space<vmem>>, vector<8x32xf32>
    %cst_40 = arith.constant dense<0.000000e+00> : vector<32x32xf32>
    %77 = tpu.matmul %75, %76, %cst_40 {dimension_numbers = #tpu.dot_dimension_numbers<[1], [0], [0], [1], [0, 0, 1, 1], [], []>} : vector<32x8xf32>, vector<8x32xf32>, vector<32x32xf32> -> vector<32x32xf32>
    %78 = arith.addf %60, %77 : vector<32x32xf32>
    %79 = vector.extract_strided_slice %6 {offsets = [0, 0, 24], sizes = [4, 8, 8], strides = [1, 1, 1]} : vector<4x8x32xf32> to vector<4x8x8xf32>
    %80 = vector.extract_strided_slice %11 {offsets = [0, 0, 24], sizes = [4, 8, 8], strides = [1, 1, 1]} : vector<4x8x32xf32> to vector<4x8x8xf32>
    %81 = vector.extract_strided_slice %16 {offsets = [0, 0, 24], sizes = [4, 8, 8], strides = [1, 1, 1]} : vector<4x8x32xf32> to vector<4x8x8xf32>
    "tpu.trace_start"() <{level = 10 : i32, message = "bqd,bkd->bqk"}> : () -> ()
    %cst_41 = arith.constant dense<0.000000e+00> : vector<4x8x8xf32>
    %82 = tpu.matmul %79, %80, %cst_41 {dimension_numbers = #tpu.dot_dimension_numbers<[2], [2], [1], [1], [0, 0, 0, 1, 1, 1], [0], [0]>} : vector<4x8x8xf32>, vector<4x8x8xf32>, vector<4x8x8xf32> -> vector<4x8x8xf32>
    "tpu.trace_stop"() : () -> ()
    %cst_42 = arith.constant dense<0xFF800000> : vector<4x8xf32>
    %83 = vector.multi_reduction <maximumf>, %82, %cst_42 [2] : vector<4x8x8xf32> to vector<4x8xf32>
    %84 = vector.shape_cast %83 : vector<4x8xf32> to vector<4x8x1xf32>
    %85 = vector.broadcast %84 : vector<4x8x1xf32> to vector<4x8x8xf32>
    %86 = arith.subf %82, %85 : vector<4x8x8xf32>
    %87 = math.exp %86 : vector<4x8x8xf32>
    %cst_43 = arith.constant dense<0.000000e+00> : vector<4x8xf32>
    %88 = vector.multi_reduction <add>, %87, %cst_43 [2] : vector<4x8x8xf32> to vector<4x8xf32>
    %89 = vector.shape_cast %88 : vector<4x8xf32> to vector<4x8x1xf32>
    "tpu.trace_start"() <{level = 10 : i32, message = "bqk,bkd->bqd"}> : () -> ()
    %cst_44 = arith.constant dense<0.000000e+00> : vector<4x8x8xf32>
    %90 = tpu.matmul %87, %81, %cst_44 {dimension_numbers = #tpu.dot_dimension_numbers<[2], [1], [1], [2], [0, 0, 0, 1, 1, 2], [0], [0]>} : vector<4x8x8xf32>, vector<4x8x8xf32>, vector<4x8x8xf32> -> vector<4x8x8xf32>
    "tpu.trace_stop"() : () -> ()
    %91 = vector.broadcast %89 : vector<4x8x1xf32> to vector<4x8x8xf32>
    %92 = arith.divf %90, %91 : vector<4x8x8xf32>
    %93 = vector.shape_cast %92 : vector<4x8x8xf32> to vector<32x8xf32>
    %c24 = arith.constant 24 : index
    %c0_45 = arith.constant 0 : index
    %94 = vector.load %arg7[%c24, %c0_45] : memref<32x32xf32, #tpu.memory_space<vmem>>, vector<8x32xf32>
    %cst_46 = arith.constant dense<0.000000e+00> : vector<32x32xf32>
    %95 = tpu.matmul %93, %94, %cst_46 {dimension_numbers = #tpu.dot_dimension_numbers<[1], [0], [0], [1], [0, 0, 1, 1], [], []>} : vector<32x8xf32>, vector<8x32xf32>, vector<32x32xf32> -> vector<32x32xf32>
    %96 = arith.addf %78, %95 : vector<32x32xf32>
    %97 = vector.broadcast %18 : vector<1x32xf32> to vector<32x32xf32>
    %98 = arith.addf %96, %97 : vector<32x32xf32>
    %99 = arith.addf %98, %1 : vector<32x32xf32>
    %cst_47 = arith.constant dense<0.000000e+00> : vector<32xf32>
    %100 = vector.multi_reduction <add>, %99, %cst_47 [1] : vector<32x32xf32> to vector<32xf32>
    %101 = vector.shape_cast %100 : vector<32xf32> to vector<32x1xf32>
    %cst_48 = arith.constant 3.200000e+01 : f32
    %102 = vector.broadcast %cst_48 : f32 to vector<32x1xf32>
    %103 = arith.divf %101, %102 : vector<32x1xf32>
    %104 = vector.broadcast %103 : vector<32x1xf32> to vector<32x32xf32>
    %105 = arith.subf %99, %104 : vector<32x32xf32>
    %106 = arith.mulf %105, %105 : vector<32x32xf32>
    %cst_49 = arith.constant dense<0.000000e+00> : vector<32xf32>
    %107 = vector.multi_reduction <add>, %106, %cst_49 [1] : vector<32x32xf32> to vector<32xf32>
    %108 = vector.shape_cast %107 : vector<32xf32> to vector<32x1xf32>
    %cst_50 = arith.constant 3.200000e+01 : f32
    %109 = vector.broadcast %cst_50 : f32 to vector<32x1xf32>
    %110 = arith.divf %108, %109 : vector<32x1xf32>
    %111 = vector.broadcast %103 : vector<32x1xf32> to vector<32x32xf32>
    %112 = arith.subf %99, %111 : vector<32x32xf32>
    %cst_51 = arith.constant 9.99999974E-6 : f32
    %113 = vector.broadcast %cst_51 : f32 to vector<32x1xf32>
    %114 = arith.addf %110, %113 : vector<32x1xf32>
    %115 = math.rsqrt %114 : vector<32x1xf32>
    %116 = vector.broadcast %115 : vector<32x1xf32> to vector<32x32xf32>
    %117 = arith.mulf %112, %116 : vector<32x32xf32>
    %118 = vector.broadcast %19 : vector<1x32xf32> to vector<32x32xf32>
    %119 = arith.mulf %117, %118 : vector<32x32xf32>
    %120 = vector.broadcast %20 : vector<1x32xf32> to vector<32x32xf32>
    %121 = arith.addf %119, %120 : vector<32x32xf32>
    %cst_52 = arith.constant 0.000000e+00 : f32
    %122 = vector.broadcast %cst_52 : f32 to vector<32x32xf32>
    %c0_53 = arith.constant 0 : index
    %c0_54 = arith.constant 0 : index
    %123 = vector.load %arg8[%c0_53, %c0_54] : memref<32x128xf32, #tpu.memory_space<vmem>>, vector<32x128xf32>
    %cst_55 = arith.constant dense<0.000000e+00> : vector<32x128xf32>
    %124 = tpu.matmul %121, %123, %cst_55 {dimension_numbers = #tpu.dot_dimension_numbers<[1], [0], [0], [1], [0, 0, 1, 1], [], []>} : vector<32x32xf32>, vector<32x128xf32>, vector<32x128xf32> -> vector<32x128xf32>
    %c0_56 = arith.constant 0 : index
    %c0_57 = arith.constant 0 : index
    %125 = vector.load %arg9[%c0_56, %c0_57] : memref<1x128xf32, #tpu.memory_space<vmem>>, vector<1x128xf32>
    %126 = vector.broadcast %125 : vector<1x128xf32> to vector<32x128xf32>
    %127 = arith.addf %124, %126 : vector<32x128xf32>
    %cst_58 = arith.constant 0.000000e+00 : f32
    %128 = vector.broadcast %cst_58 : f32 to vector<32x128xf32>
    %129 = arith.maximumf %127, %128 : vector<32x128xf32>
    %c0_59 = arith.constant 0 : index
    %c0_60 = arith.constant 0 : index
    %130 = vector.load %arg10[%c0_59, %c0_60] : memref<128x32xf32, #tpu.memory_space<vmem>>, vector<128x32xf32>
    %cst_61 = arith.constant dense<0.000000e+00> : vector<32x32xf32>
    %131 = tpu.matmul %129, %130, %cst_61 {dimension_numbers = #tpu.dot_dimension_numbers<[1], [0], [0], [1], [0, 0, 1, 1], [], []>} : vector<32x128xf32>, vector<128x32xf32>, vector<32x32xf32> -> vector<32x32xf32>
    %132 = arith.addf %122, %131 : vector<32x32xf32>
    %133 = vector.broadcast %21 : vector<1x32xf32> to vector<32x32xf32>
    %134 = arith.addf %132, %133 : vector<32x32xf32>
    %135 = arith.addf %134, %121 : vector<32x32xf32>
    %cst_62 = arith.constant dense<0.000000e+00> : vector<32xf32>
    %136 = vector.multi_reduction <add>, %135, %cst_62 [1] : vector<32x32xf32> to vector<32xf32>
    %137 = vector.shape_cast %136 : vector<32xf32> to vector<32x1xf32>
    %cst_63 = arith.constant 3.200000e+01 : f32
    %138 = vector.broadcast %cst_63 : f32 to vector<32x1xf32>
    %139 = arith.divf %137, %138 : vector<32x1xf32>
    %140 = vector.broadcast %139 : vector<32x1xf32> to vector<32x32xf32>
    %141 = arith.subf %135, %140 : vector<32x32xf32>
    %142 = arith.mulf %141, %141 : vector<32x32xf32>
    %cst_64 = arith.constant dense<0.000000e+00> : vector<32xf32>
    %143 = vector.multi_reduction <add>, %142, %cst_64 [1] : vector<32x32xf32> to vector<32xf32>
    %144 = vector.shape_cast %143 : vector<32xf32> to vector<32x1xf32>
    %cst_65 = arith.constant 3.200000e+01 : f32
    %145 = vector.broadcast %cst_65 : f32 to vector<32x1xf32>
    %146 = arith.divf %144, %145 : vector<32x1xf32>
    %147 = vector.broadcast %139 : vector<32x1xf32> to vector<32x32xf32>
    %148 = arith.subf %135, %147 : vector<32x32xf32>
    %cst_66 = arith.constant 9.99999974E-6 : f32
    %149 = vector.broadcast %cst_66 : f32 to vector<32x1xf32>
    %150 = arith.addf %146, %149 : vector<32x1xf32>
    %151 = math.rsqrt %150 : vector<32x1xf32>
    %152 = vector.broadcast %151 : vector<32x1xf32> to vector<32x32xf32>
    %153 = arith.mulf %148, %152 : vector<32x32xf32>
    %154 = vector.broadcast %22 : vector<1x32xf32> to vector<32x32xf32>
    %155 = arith.mulf %153, %154 : vector<32x32xf32>
    %156 = vector.broadcast %23 : vector<1x32xf32> to vector<32x32xf32>
    %157 = arith.addf %155, %156 : vector<32x32xf32>
    %158 = vector.shape_cast %157 : vector<32x32xf32> to vector<4x8x32xf32>
    %c0_67 = arith.constant 0 : index
    %c0_68 = arith.constant 0 : index
    %c0_69 = arith.constant 0 : index
    %159 = vector.load %arg12[%c0_67, %c0_68, %c0_69] : memref<4x8x32xf32, #tpu.memory_space<vmem>>, vector<4x8x32xf32>
    tpu.vector_store %arg12[%c0_67, %c0_68, %c0_69], %158 {strides = array<i32>} : memref<4x8x32xf32, #tpu.memory_space<vmem>>, vector<4x8x32xf32>,
    return
  }
  func.func @transform_0(%arg0: i32) -> (i32, i32, i32) {
    %c0_i32 = arith.constant 0 : i32
    %c0_i32_0 = arith.constant 0 : i32
    %c0_i32_1 = arith.constant 0 : i32
    return %arg0, %c0_i32, %c0_i32_0 : i32, i32, i32
  }
  func.func @transform_1(%arg0: i32) -> (i32, i32, i32) {
    %c0_i32 = arith.constant 0 : i32
    %c0_i32_0 = arith.constant 0 : i32
    %c0_i32_1 = arith.constant 0 : i32
    return %arg0, %c0_i32, %c0_i32_0 : i32, i32, i32
  }
  func.func @transform_2(%arg0: i32) -> (i32, i32, i32) {
    %c0_i32 = arith.constant 0 : i32
    %c0_i32_0 = arith.constant 0 : i32
    %c0_i32_1 = arith.constant 0 : i32
    return %arg0, %c0_i32, %c0_i32_0 : i32, i32, i32
  }
  func.func @transform_3(%arg0: i32) -> (i32, i32) {
    %c0_i32 = arith.constant 0 : i32
    %c0_i32_0 = arith.constant 0 : i32
    %c0_i32_1 = arith.constant 0 : i32
    return %c0_i32, %c0_i32_0 : i32, i32
  }
  func.func @transform_4(%arg0: i32) -> (i32, i32) {
    %c0_i32 = arith.constant 0 : i32
    %c0_i32_0 = arith.constant 0 : i32
    %c0_i32_1 = arith.constant 0 : i32
    return %c0_i32, %c0_i32_0 : i32, i32
  }
  func.func @transform_5(%arg0: i32) -> (i32, i32) {
    %c0_i32 = arith.constant 0 : i32
    %c0_i32_0 = arith.constant 0 : i32
    %c0_i32_1 = arith.constant 0 : i32
    return %c0_i32, %c0_i32_0 : i32, i32
  }
  func.func @transform_6(%arg0: i32) -> (i32, i32) {
    %c0_i32 = arith.constant 0 : i32
    %c0_i32_0 = arith.constant 0 : i32
    %c0_i32_1 = arith.constant 0 : i32
    return %c0_i32, %c0_i32_0 : i32, i32
  }
  func.func @transform_7(%arg0: i32) -> (i32, i32) {
    %c0_i32 = arith.constant 0 : i32
    %c0_i32_0 = arith.constant 0 : i32
    %c0_i32_1 = arith.constant 0 : i32
    return %c0_i32, %c0_i32_0 : i32, i32
  }
  func.func @transform_8(%arg0: i32) -> (i32, i32) {
    %c0_i32 = arith.constant 0 : i32
    %c0_i32_0 = arith.constant 0 : i32
    %c0_i32_1 = arith.constant 0 : i32
    return %c0_i32, %c0_i32_0 : i32, i32
  }
  func.func @transform_9(%arg0: i32) -> (i32, i32) {
    %c0_i32 = arith.constant 0 : i32
    %c0_i32_0 = arith.constant 0 : i32
    %c0_i32_1 = arith.constant 0 : i32
    return %c0_i32, %c0_i32_0 : i32, i32
  }
  func.func @transform_10(%arg0: i32) -> (i32, i32) {
    %c0_i32 = arith.constant 0 : i32
    %c0_i32_0 = arith.constant 0 : i32
    %c0_i32_1 = arith.constant 0 : i32
    return %c0_i32, %c0_i32_0 : i32, i32
  }
  func.func @transform_11(%arg0: i32) -> (i32, i32, i32) {
    %c0_i32 = arith.constant 0 : i32
    %c0_i32_0 = arith.constant 0 : i32
    %c0_i32_1 = arith.constant 0 : i32
    return %arg0, %c0_i32, %c0_i32_0 : i32, i32, i32
  }
}

</mosaic_0001>

<llo_original>
// kernel: tpu_custom_call.1
$region0: #{tpu_custom_call.1}
  #allocation0 [shape = 'u32[]', space=smem, size = 0x4, offset = 0x4, fixed_abs, tag = 'smem constant byte address 0x4 - core index']
  #allocation1 [shape = 'u32[144,128]{1,0:T(1,128)}', space=vmem, size = 0x12000, scoped, tag = 'internal scratch']
  %s0 = inlined_call_operand.vmem [shape: f32[8,8,32], index: 0, kind: input, shape index: {}]
  %s1 = inlined_call_operand.vmem [shape: f32[8,8,32], index: 1, kind: input, shape index: {}]
  %s2 = inlined_call_operand.hbm [shape: f32[8,8,32], index: 2, kind: input, shape index: {}]
  %s3 = inlined_call_operand.vmem [shape: f32[32,32], index: 3, kind: input, shape index: {}]
  %s4 = inlined_call_operand.hbm [shape: f32[32,32], index: 4, kind: input, shape index: {}]
  %s5 = inlined_call_operand.hbm [shape: f32[32,32], index: 5, kind: input, shape index: {}]
  %s6 = inlined_call_operand.hbm [shape: f32[32,32], index: 6, kind: input, shape index: {}]
  %s7 = inlined_call_operand.hbm [shape: f32[32,128], index: 7, kind: input, shape index: {}]
  %s8 = inlined_call_operand.vmem [shape: f32[1,128], index: 8, kind: input, shape index: {}]
  %s9 = inlined_call_operand.vmem [shape: f32[128,32], index: 9, kind: input, shape index: {}]
  %s10 = inlined_call_operand.hbm [shape: f32[6,32], index: 10, kind: input, shape index: {}]
  %s11 = inlined_call_operand.hbm [shape: f32[8,8,32], index: 11, kind: output, shape index: {}]
  %s12 = sld [smem:[#allocation0]]
  $region101: #{tpu_custom_call.1} parent=0
    _
  %s14 = ssub.s32 1, %s12
  %s15 = scalar_select 0, %s14, %s12
  $region1: #{tpu_custom_call.1} parent=0
    #allocation2 [shape = 'u8[32768]{0}', space=vmem, size = 0x8000, scoped, tag = 'input window, operand 2']
    #allocation3 [shape = 's32[2]{0}', space=sflag, size = 0x8, scoped, tag = 'scoped memory for tpu_custom_call.1']
    #allocation4 [shape = 's32[2]{0}', space=sflag, size = 0x8, scoped, tag = 'scoped memory for tpu_custom_call.1']
    #allocation5 [shape = 'u8[16384]{0}', space=vmem, size = 0x4000, scoped, tag = 'input window, operand 4, single buffered']
    #allocation6 [shape = 's32[1]{0}', space=sflag, size = 0x4, scoped, tag = 'scoped memory for tpu_custom_call.1']
    #allocation7 [shape = 'u8[16384]{0}', space=vmem, size = 0x4000, scoped, tag = 'input window, operand 5, single buffered']
    #allocation8 [shape = 'u8[16384]{0}', space=vmem, size = 0x4000, scoped, tag = 'input window, operand 6, single buffered']
    #allocation9 [shape = 's32[1]{0}', space=sflag, size = 0x4, scoped, tag = 'scoped memory for tpu_custom_call.1']
    #allocation10 [shape = 'u8[16384]{0}', space=vmem, size = 0x4000, scoped, tag = 'input window, operand 7, single buffered']
    #allocation11 [shape = 'u8[4096]{0}', space=vmem, size = 0x1000, scoped, tag = 'input window, operand 10, single buffered']
    #allocation12 [shape = 's32[1]{0}', space=sflag, size = 0x4, scoped, tag = 'scoped memory for tpu_custom_call.1']
    #allocation13 [shape = 'u8[32768]{0}', space=vmem, size = 0x8000, scoped, tag = 'output window, operand 0']
    %16 = vsyncpa [#allocation3], 0
    %s17 = scalar_lea.sflag [#allocation3], 1
    %18 = vsyncpa %s17, 0
    %19 = vsyncpa [#allocation6], 0
    %20 = vsyncpa [#allocation9], 0
    %21 = vsyncpa [#allocation12], 0
    %22 = vsyncpa [#allocation4], 0
    %s23 = scalar_lea.sflag [#allocation4], 1
    %24 = vsyncpa %s23, 0
    loop: start=0, step=1, limit=4
    $region2: #{tpu_custom_call.1} parent=1 // loop_pre_header
      _
    $region3: #{tpu_custom_call.1} parent=1 // loop_header
      %s26 = sphi 0, %s30
      %p27 = scmp.ge.s32.totalorder %s26, 4
      %s36 = sphi 0, %s38
      %s39 = sphi 0, %s36
      %s40 = sphi 0, %s39
      %s56 = sphi 0, %s40
      %s62 = sphi 0, %s64
      %s65 = sphi 0, %s62
      %s66 = sphi 0, %s65
      %s82 = sphi 0, %s66
      %s88 = sphi 0, %s90
      %s91 = sphi 0, %s88
      %s92 = sphi 0, %s91
      %s108 = sphi 0, %s92
      %s112 = sphi 0, %s112
      %s114 = sphi 0, %s112
      %s115 = sphi 0, %s114
      %s129 = sphi 0, %s115
      %s133 = sphi 0, %s133
      %s135 = sphi 0, %s133
      %s136 = sphi 0, %s135
      %s150 = sphi 0, %s136
      %s154 = sphi 0, %s154
      %s156 = sphi 0, %s154
      %s157 = sphi 0, %s156
      %s171 = sphi 0, %s157
      %s175 = sphi 0, %s175
      %s177 = sphi 0, %s175
      %s178 = sphi 0, %s177
      %s192 = sphi 0, %s178
      %s196 = sphi 0, %s196
      %s198 = sphi 0, %s196
      %s199 = sphi 0, %s198
      %s213 = sphi 0, %s199
      %s217 = sphi 0, %s217
      %s219 = sphi 0, %s217
      %s220 = sphi 0, %s219
      %s234 = sphi 0, %s220
      %s238 = sphi 0, %s238
      %s240 = sphi 0, %s238
      %s241 = sphi 0, %s240
      %s255 = sphi 0, %s241
      %s259 = sphi 0, %s259
      %s261 = sphi 0, %s259
      %s262 = sphi 0, %s261
      %s276 = sphi 0, %s262
      %s282 = sphi 0, %s284
      %s285 = sphi 0, %s282
      %s286 = sphi 0, %s285
      %s302 = sphi 0, %s286
    $region4: #{tpu_custom_call.1} parent=1 // loop_header_branch
      %29 = sbr.rel (%p27) target = $region8
    $region5: #{tpu_custom_call.1} parent=1 // loop_body
      %s31 = ssub.s32 %s26, 1
      %s32 = ssub.s32 %s26, 2
      %s33 = sadd.s32 %s26, 1
      %s34 = ssub.s32 %s26, %s33
      %p35 = scmp.eq.s32.totalorder %s34, 0
      %s37 = sadd.s32 %s36, 1
      %s38 = scalar_select %p35, %s36, %s37
      %p41 = pneg %p35
      %p42 = scmp.eq.s32.totalorder %s26, 1
      %p43 = por %p41, %p42
      %p44 = scmp.ne.s32.totalorder %s36, %s39
      %p45 = scmp.eq.s32.totalorder %s26, 0
      %p46 = por %p44, %p45
      %p47 = scmp.ne.s32.totalorder %s36, %s39
      %p48 = scmp.eq.s32.totalorder %s31, 1
      %p49 = por %p47, %p48
      %p50 = scmp.ne.s32.totalorder %s39, %s40
      %p51 = scmp.eq.s32.totalorder %s31, 0
      %p52 = por %p50, %p51
      %p53 = scmp.ne.s32.totalorder %s39, %s40
      %p54 = scmp.eq.s32.totalorder %s32, 1
      %p55 = por %p53, %p54
      %p57 = scmp.ne.s32.totalorder %s40, %s56
      %p58 = scmp.eq.s32.totalorder %s32, 0
      %p59 = por %p57, %p58
      %s60 = ssub.s32 %s26, %s33
      %p61 = scmp.eq.s32.totalorder %s60, 0
      %s63 = sadd.s32 %s62, 1
      %s64 = scalar_select %p61, %s62, %s63
      %p67 = pneg %p61
      %p68 = scmp.eq.s32.totalorder %s26, 1
      %p69 = por %p67, %p68
      %p70 = scmp.ne.s32.totalorder %s62, %s65
      %p71 = scmp.eq.s32.totalorder %s26, 0
      %p72 = por %p70, %p71
      %p73 = scmp.ne.s32.totalorder %s62, %s65
      %p74 = scmp.eq.s32.totalorder %s31, 1
      %p75 = por %p73, %p74
      %p76 = scmp.ne.s32.totalorder %s65, %s66
      %p77 = scmp.eq.s32.totalorder %s31, 0
      %p78 = por %p76, %p77
      %p79 = scmp.ne.s32.totalorder %s65, %s66
      %p80 = scmp.eq.s32.totalorder %s32, 1
      %p81 = por %p79, %p80
      %p83 = scmp.ne.s32.totalorder %s66, %s82
      %p84 = scmp.eq.s32.totalorder %s32, 0
      %p85 = por %p83, %p84
      %s86 = ssub.s32 %s26, %s33
      %p87 = scmp.eq.s32.totalorder %s86, 0
      %s89 = sadd.s32 %s88, 1
      %s90 = scalar_select %p87, %s88, %s89
      %p93 = pneg %p87
      %p94 = scmp.eq.s32.totalorder %s26, 1
      %p95 = por %p93, %p94
      %p96 = scmp.ne.s32.totalorder %s88, %s91
      %p97 = scmp.eq.s32.totalorder %s26, 0
      %p98 = por %p96, %p97
      %p99 = scmp.ne.s32.totalorder %s88, %s91
      %p100 = scmp.eq.s32.totalorder %s31, 1
      %p101 = por %p99, %p100
      %p102 = scmp.ne.s32.totalorder %s91, %s92
      %p103 = scmp.eq.s32.totalorder %s31, 0
      %p104 = por %p102, %p103
      %p105 = scmp.ne.s32.totalorder %s91, %s92
      %p106 = scmp.eq.s32.totalorder %s32, 1
      %p107 = por %p105, %p106
      %p109 = scmp.ne.s32.totalorder %s92, %s108
      %p110 = scmp.eq.s32.totalorder %s32, 0
      %p111 = por %p109, %p110
      %s113 = sadd.s32 %s112, 1
      %p116 = scmp.eq.s32.totalorder %s26, 1
      %p117 = scmp.ne.s32.totalorder %s112, %s114
      %p118 = scmp.eq.s32.totalorder %s26, 0
      %p119 = por %p117, %p118
      %p120 = scmp.ne.s32.totalorder %s112, %s114
      %p121 = scmp.eq.s32.totalorder %s31, 1
      %p122 = por %p120, %p121
      %p123 = scmp.ne.s32.totalorder %s114, %s115
      %p124 = scmp.eq.s32.totalorder %s31, 0
      %p125 = por %p123, %p124
      %p126 = scmp.ne.s32.totalorder %s114, %s115
      %p127 = scmp.eq.s32.totalorder %s32, 1
      %p128 = por %p126, %p127
      %p130 = scmp.ne.s32.totalorder %s115, %s129
      %p131 = scmp.eq.s32.totalorder %s32, 0
      %p132 = por %p130, %p131
      %s134 = sadd.s32 %s133, 1
      %p137 = scmp.eq.s32.totalorder %s26, 1
      %p138 = scmp.ne.s32.totalorder %s133, %s135
      %p139 = scmp.eq.s32.totalorder %s26, 0
      %p140 = por %p138, %p139
      %p141 = scmp.ne.s32.totalorder %s133, %s135
      %p142 = scmp.eq.s32.totalorder %s31, 1
      %p143 = por %p141, %p142
      %p144 = scmp.ne.s32.totalorder %s135, %s136
      %p145 = scmp.eq.s32.totalorder %s31, 0
      %p146 = por %p144, %p145
      %p147 = scmp.ne.s32.totalorder %s135, %s136
      %p148 = scmp.eq.s32.totalorder %s32, 1
      %p149 = por %p147, %p148
      %p151 = scmp.ne.s32.totalorder %s136, %s150
      %p152 = scmp.eq.s32.totalorder %s32, 0
      %p153 = por %p151, %p152
      %s155 = sadd.s32 %s154, 1
      %p158 = scmp.eq.s32.totalorder %s26, 1
      %p159 = scmp.ne.s32.totalorder %s154, %s156
      %p160 = scmp.eq.s32.totalorder %s26, 0
      %p161 = por %p159, %p160
      %p162 = scmp.ne.s32.totalorder %s154, %s156
      %p163 = scmp.eq.s32.totalorder %s31, 1
      %p164 = por %p162, %p163
      %p165 = scmp.ne.s32.totalorder %s156, %s157
      %p166 = scmp.eq.s32.totalorder %s31, 0
      %p167 = por %p165, %p166
      %p168 = scmp.ne.s32.totalorder %s156, %s157
      %p169 = scmp.eq.s32.totalorder %s32, 1
      %p170 = por %p168, %p169
      %p172 = scmp.ne.s32.totalorder %s157, %s171
      %p173 = scmp.eq.s32.totalorder %s32, 0
      %p174 = por %p172, %p173
      %s176 = sadd.s32 %s175, 1
      %p179 = scmp.eq.s32.totalorder %s26, 1
      %p180 = scmp.ne.s32.totalorder %s175, %s177
      %p181 = scmp.eq.s32.totalorder %s26, 0
      %p182 = por %p180, %p181
      %p183 = scmp.ne.s32.totalorder %s175, %s177
      %p184 = scmp.eq.s32.totalorder %s31, 1
      %p185 = por %p183, %p184
      %p186 = scmp.ne.s32.totalorder %s177, %s178
      %p187 = scmp.eq.s32.totalorder %s31, 0
      %p188 = por %p186, %p187
      %p189 = scmp.ne.s32.totalorder %s177, %s178
      %p190 = scmp.eq.s32.totalorder %s32, 1
      %p191 = por %p189, %p190
      %p193 = scmp.ne.s32.totalorder %s178, %s192
      %p194 = scmp.eq.s32.totalorder %s32, 0
      %p195 = por %p193, %p194
      %s197 = sadd.s32 %s196, 1
      %p200 = scmp.eq.s32.totalorder %s26, 1
      %p201 = scmp.ne.s32.totalorder %s196, %s198
      %p202 = scmp.eq.s32.totalorder %s26, 0
      %p203 = por %p201, %p202
      %p204 = scmp.ne.s32.totalorder %s196, %s198
      %p205 = scmp.eq.s32.totalorder %s31, 1
      %p206 = por %p204, %p205
      %p207 = scmp.ne.s32.totalorder %s198, %s199
      %p208 = scmp.eq.s32.totalorder %s31, 0
      %p209 = por %p207, %p208
      %p210 = scmp.ne.s32.totalorder %s198, %s199
      %p211 = scmp.eq.s32.totalorder %s32, 1
      %p212 = por %p210, %p211
      %p214 = scmp.ne.s32.totalorder %s199, %s213
      %p215 = scmp.eq.s32.totalorder %s32, 0
      %p216 = por %p214, %p215
      %s218 = sadd.s32 %s217, 1
      %p221 = scmp.eq.s32.totalorder %s26, 1
      %p222 = scmp.ne.s32.totalorder %s217, %s219
      %p223 = scmp.eq.s32.totalorder %s26, 0
      %p224 = por %p222, %p223
      %p225 = scmp.ne.s32.totalorder %s217, %s219
      %p226 = scmp.eq.s32.totalorder %s31, 1
      %p227 = por %p225, %p226
      %p228 = scmp.ne.s32.totalorder %s219, %s220
      %p229 = scmp.eq.s32.totalorder %s31, 0
      %p230 = por %p228, %p229
      %p231 = scmp.ne.s32.totalorder %s219, %s220
      %p232 = scmp.eq.s32.totalorder %s32, 1
      %p233 = por %p231, %p232
      %p235 = scmp.ne.s32.totalorder %s220, %s234
      %p236 = scmp.eq.s32.totalorder %s32, 0
      %p237 = por %p235, %p236
      %s239 = sadd.s32 %s238, 1
      %p242 = scmp.eq.s32.totalorder %s26, 1
      %p243 = scmp.ne.s32.totalorder %s238, %s240
      %p244 = scmp.eq.s32.totalorder %s26, 0
      %p245 = por %p243, %p244
      %p246 = scmp.ne.s32.totalorder %s238, %s240
      %p247 = scmp.eq.s32.totalorder %s31, 1
      %p248 = por %p246, %p247
      %p249 = scmp.ne.s32.totalorder %s240, %s241
      %p250 = scmp.eq.s32.totalorder %s31, 0
      %p251 = por %p249, %p250
      %p252 = scmp.ne.s32.totalorder %s240, %s241
      %p253 = scmp.eq.s32.totalorder %s32, 1
      %p254 = por %p252, %p253
      %p256 = scmp.ne.s32.totalorder %s241, %s255
      %p257 = scmp.eq.s32.totalorder %s32, 0
      %p258 = por %p256, %p257
      %s260 = sadd.s32 %s259, 1
      %p263 = scmp.eq.s32.totalorder %s26, 1
      %p264 = scmp.ne.s32.totalorder %s259, %s261
      %p265 = scmp.eq.s32.totalorder %s26, 0
      %p266 = por %p264, %p265
      %p267 = scmp.ne.s32.totalorder %s259, %s261
      %p268 = scmp.eq.s32.totalorder %s31, 1
      %p269 = por %p267, %p268
      %p270 = scmp.ne.s32.totalorder %s261, %s262
      %p271 = scmp.eq.s32.totalorder %s31, 0
      %p272 = por %p270, %p271
      %p273 = scmp.ne.s32.totalorder %s261, %s262
      %p274 = scmp.eq.s32.totalorder %s32, 1
      %p275 = por %p273, %p274
      %p277 = scmp.ne.s32.totalorder %s262, %s276
      %p278 = scmp.eq.s32.totalorder %s32, 0
      %p279 = por %p277, %p278
      %s280 = ssub.s32 %s26, %s33
      %p281 = scmp.eq.s32.totalorder %s280, 0
      %s283 = sadd.s32 %s282, 1
      %s284 = scalar_select %p281, %s282, %s283
      %p287 = pneg %p281
      %p288 = scmp.eq.s32.totalorder %s26, 1
      %p289 = por %p287, %p288
      %p290 = scmp.ne.s32.totalorder %s282, %s285
      %p291 = scmp.eq.s32.totalorder %s26, 0
      %p292 = por %p290, %p291
      %p293 = scmp.ne.s32.totalorder %s282, %s285
      %p294 = scmp.eq.s32.totalorder %s31, 1
      %p295 = por %p293, %p294
      %p296 = scmp.ne.s32.totalorder %s285, %s286
      %p297 = scmp.eq.s32.totalorder %s31, 0
      %p298 = por %p296, %p297
      %p299 = scmp.ne.s32.totalorder %s285, %s286
      %p300 = scmp.eq.s32.totalorder %s32, 1
      %p301 = por %p299, %p300
      %p303 = scmp.ne.s32.totalorder %s286, %s302
      %p304 = scmp.eq.s32.totalorder %s32, 0
      %p305 = por %p303, %p304
      %p306 = scmp.le.s32.totalorder 1, %s26
      %p307 = scmp.lt.s32.totalorder %s26, 3
      %p308 = pnand %p306, %p307
      %p309 = pneg %p308
      // Predicated region
      $region9: #{tpu_custom_call.1} parent=5 // pred_check
        _
      $region10: #{tpu_custom_call.1} parent=5 // pred_check_branch
        %311 = sbr.rel (%p308) target = $region12
      $region11: #{tpu_custom_call.1} parent=5 // pred_region
        %s312 = ssub.s32 %s26, 1
        // Predicated region
        $region13: #{tpu_custom_call.1} parent=11 // pred_check
          %p313 = pneg %p125
        $region14: #{tpu_custom_call.1} parent=11 // pred_check_branch
          %315 = sbr.rel (%p313) target = $region16
        $region15: #{tpu_custom_call.1} parent=11 // pred_region
          _
        $region16: #{tpu_custom_call.1} parent=11 // pred_fallthru
          _
        // Predicated region
        $region17: #{tpu_custom_call.1} parent=11 // pred_check
          %p316 = pneg %p146
        $region18: #{tpu_custom_call.1} parent=11 // pred_check_branch
          %318 = sbr.rel (%p316) target = $region20
        $region19: #{tpu_custom_call.1} parent=11 // pred_region
          %s320 = ssub.s32 512, 512
          %321 = vsyncadd [#allocation6], %s320
          %s322 = sshll.u32 [#allocation5], 4
          %s323 = int_to_ptr.vmem [resolvable:$true] %s322
          %328 = dma.hbm_to_vmem [thread:$0]  %s4, 512, %s323, [#allocation6], 128, 128, 8
        $region20: #{tpu_custom_call.1} parent=11 // pred_fallthru
          _
        // Predicated region
        $region21: #{tpu_custom_call.1} parent=11 // pred_check
          %p329 = pneg %p167
        $region22: #{tpu_custom_call.1} parent=11 // pred_check_branch
          %331 = sbr.rel (%p329) target = $region24
        $region23: #{tpu_custom_call.1} parent=11 // pred_region
          %s333 = ssub.s32 512, 512
          %334 = vsyncadd [#allocation6], %s333
          %s335 = sshll.u32 [#allocation7], 4
          %s336 = int_to_ptr.vmem [resolvable:$true] %s335
          %341 = dma.hbm_to_vmem [thread:$0]  %s5, 512, %s336, [#allocation6], 128, 128, 8
        $region24: #{tpu_custom_call.1} parent=11 // pred_fallthru
          _
        // Predicated region
        $region25: #{tpu_custom_call.1} parent=11 // pred_check
          %p342 = pneg %p188
        $region26: #{tpu_custom_call.1} parent=11 // pred_check_branch
          %344 = sbr.rel (%p342) target = $region28
        $region27: #{tpu_custom_call.1} parent=11 // pred_region
          %s346 = ssub.s32 512, 512
          %347 = vsyncadd [#allocation9], %s346
          %s348 = sshll.u32 [#allocation8], 4
          %s349 = int_to_ptr.vmem [resolvable:$true] %s348
          %354 = dma.hbm_to_vmem [thread:$0]  %s6, 512, %s349, [#allocation9], 128, 128, 8
        $region28: #{tpu_custom_call.1} parent=11 // pred_fallthru
          _
        // Predicated region
        $region29: #{tpu_custom_call.1} parent=11 // pred_check
          %p355 = pneg %p209
        $region30: #{tpu_custom_call.1} parent=11 // pred_check_branch
          %357 = sbr.rel (%p355) target = $region32
        $region31: #{tpu_custom_call.1} parent=11 // pred_region
          %s359 = ssub.s32 512, 512
          %360 = vsyncadd [#allocation9], %s359
          %s361 = sshll.u32 [#allocation10], 4
          %s362 = int_to_ptr.vmem [resolvable:$true] %s361
          %367 = dma.hbm_to_vmem [thread:$0]  %s7, 512, %s362, [#allocation9], 128, 128, 8
        $region32: #{tpu_custom_call.1} parent=11 // pred_fallthru
          _
        // Predicated region
        $region33: #{tpu_custom_call.1} parent=11 // pred_check
          %p368 = pneg %p230
        $region34: #{tpu_custom_call.1} parent=11 // pred_check_branch
          %370 = sbr.rel (%p368) target = $region36
        $region35: #{tpu_custom_call.1} parent=11 // pred_region
          _
        $region36: #{tpu_custom_call.1} parent=11 // pred_fallthru
          _
        // Predicated region
        $region37: #{tpu_custom_call.1} parent=11 // pred_check
          %p371 = pneg %p251
        $region38: #{tpu_custom_call.1} parent=11 // pred_check_branch
          %373 = sbr.rel (%p371) target = $region40
        $region39: #{tpu_custom_call.1} parent=11 // pred_region
          _
        $region40: #{tpu_custom_call.1} parent=11 // pred_fallthru
          _
        // Predicated region
        $region41: #{tpu_custom_call.1} parent=11 // pred_check
          %p374 = pneg %p272
        $region42: #{tpu_custom_call.1} parent=11 // pred_check_branch
          %376 = sbr.rel (%p374) target = $region44
        $region43: #{tpu_custom_call.1} parent=11 // pred_region
          %s378 = ssub.s32 128, 128
          %379 = vsyncadd [#allocation12], %s378
          %s381 = sshll.u32 [#allocation11], 4
          %s382 = int_to_ptr.vmem [resolvable:$true] %s381
          %384 = dma.hbm_to_vmem [thread:$0]  %s10, 128, %s382, [#allocation12]
        $region44: #{tpu_custom_call.1} parent=11 // pred_fallthru
          _
      $region12: #{tpu_custom_call.1} parent=5 // pred_fallthru
        _
      %p385 = scmp.lt.s32.totalorder %s26, 2
      // Predicated region
      $region45: #{tpu_custom_call.1} parent=5 // pred_check
        %p386 = pneg %p385
      $region46: #{tpu_custom_call.1} parent=5 // pred_check_branch
        %388 = sbr.rel (%p386) target = $region48
      $region47: #{tpu_custom_call.1} parent=5 // pred_region
        // Predicated region
        $region49: #{tpu_custom_call.1} parent=47 // pred_check
          %p389 = pneg %p46
        $region50: #{tpu_custom_call.1} parent=47 // pred_check_branch
          %391 = sbr.rel (%p389) target = $region52
        $region51: #{tpu_custom_call.1} parent=47 // pred_region
          %s392 = smul.u32 4, %s26
          %p393 = scmp.lt.s32.totalorder %s392, 7
          %s394 = scalar_select %p393, %s392, 7
          %s395 = smul.addr %s394, 8
          %s396 = scalar_lea.vmem %s0, %s395
          %s397 = smul.u32 4, %s26
        $region52: #{tpu_custom_call.1} parent=47 // pred_fallthru
          _
        // Predicated region
        $region53: #{tpu_custom_call.1} parent=47 // pred_check
          %p398 = pneg %p72
        $region54: #{tpu_custom_call.1} parent=47 // pred_check_branch
          %400 = sbr.rel (%p398) target = $region56
        $region55: #{tpu_custom_call.1} parent=47 // pred_region
          %s401 = smul.u32 4, %s26
          %p402 = scmp.lt.s32.totalorder %s401, 7
          %s403 = scalar_select %p402, %s401, 7
          %s404 = smul.addr %s403, 8
          %s405 = scalar_lea.vmem %s1, %s404
          %s406 = smul.u32 4, %s26
        $region56: #{tpu_custom_call.1} parent=47 // pred_fallthru
          _
        // Predicated region
        $region57: #{tpu_custom_call.1} parent=47 // pred_check
          %p407 = pneg %p98
        $region58: #{tpu_custom_call.1} parent=47 // pred_check_branch
          %409 = sbr.rel (%p407) target = $region60
        $region59: #{tpu_custom_call.1} parent=47 // pred_region
          %s410 = sand.u32 %s88, 1
          %s411 = scalar_lea.sflag [#allocation3], %s410
          %s412 = sand.u32 %s88, 1
          %s413 = smul.addr %s412, 32
          %s414 = scalar_lea.vmem [#allocation2], %s413
          %s415 = smul.u32 4, %s26
          %s417 = ssub.s32 512, 512
          %418 = vsyncadd %s411, %s417
          %s419 = smul.addr %s415, 128
          %s420 = scalar_lea.hbm %s2, %s419
          %s421 = sshll.u32 %s414, 4
          %s422 = int_to_ptr.vmem [resolvable:$true] %s421
          %427 = dma.hbm_to_vmem [thread:$0]  %s420, 512, %s422, %s411, 128, 128, 8
        $region60: #{tpu_custom_call.1} parent=47 // pred_fallthru
          _
      $region48: #{tpu_custom_call.1} parent=5 // pred_fallthru
        _
      %p428 = scmp.le.s32.totalorder 1, %s26
      %p429 = scmp.lt.s32.totalorder %s26, 3
      %p430 = pnand %p428, %p429
      %p431 = pneg %p430
      // Predicated region
      $region61: #{tpu_custom_call.1} parent=5 // pred_check
        _
      $region62: #{tpu_custom_call.1} parent=5 // pred_check_branch
        %433 = sbr.rel (%p430) target = $region64
      $region63: #{tpu_custom_call.1} parent=5 // pred_region
        %s434 = ssub.s32 %s26, 1
        %s435 = sand.u32 %s91, 1
        %s436 = scalar_lea.sflag [#allocation3], %s435
        %s437 = sand.u32 %s91, 1
        %s438 = smul.addr %s437, 32
        %s439 = scalar_lea.vmem [#allocation2], %s438
        // Predicated region
        $region65: #{tpu_custom_call.1} parent=63 // pred_check
          %p440 = pneg %p104
        $region66: #{tpu_custom_call.1} parent=63 // pred_check_branch
          %442 = sbr.rel (%p440) target = $region68
        $region67: #{tpu_custom_call.1} parent=63 // pred_region
          %443 = dma.done %s436, 512
        $region68: #{tpu_custom_call.1} parent=63 // pred_fallthru
          _
        // Predicated region
        $region69: #{tpu_custom_call.1} parent=63 // pred_check
          %p444 = pneg %p146
        $region70: #{tpu_custom_call.1} parent=63 // pred_check_branch
          %446 = sbr.rel (%p444) target = $region72
        $region71: #{tpu_custom_call.1} parent=63 // pred_region
          %447 = dma.done [#allocation6], 512
        $region72: #{tpu_custom_call.1} parent=63 // pred_fallthru
          _
        // Predicated region
        $region73: #{tpu_custom_call.1} parent=63 // pred_check
          %p448 = pneg %p167
        $region74: #{tpu_custom_call.1} parent=63 // pred_check_branch
          %450 = sbr.rel (%p448) target = $region76
        $region75: #{tpu_custom_call.1} parent=63 // pred_region
          %451 = dma.done [#allocation6], 512
        $region76: #{tpu_custom_call.1} parent=63 // pred_fallthru
          _
        // Predicated region
        $region77: #{tpu_custom_call.1} parent=63 // pred_check
          %p452 = pneg %p188
        $region78: #{tpu_custom_call.1} parent=63 // pred_check_branch
          %454 = sbr.rel (%p452) target = $region80
        $region79: #{tpu_custom_call.1} parent=63 // pred_region
          %455 = dma.done [#allocation9], 512
        $region80: #{tpu_custom_call.1} parent=63 // pred_fallthru
          _
        // Predicated region
        $region81: #{tpu_custom_call.1} parent=63 // pred_check
          %p456 = pneg %p209
        $region82: #{tpu_custom_call.1} parent=63 // pred_check_branch
          %458 = sbr.rel (%p456) target = $region84
        $region83: #{tpu_custom_call.1} parent=63 // pred_region
          %459 = dma.done [#allocation9], 512
        $region84: #{tpu_custom_call.1} parent=63 // pred_fallthru
          _
        // Predicated region
        $region85: #{tpu_custom_call.1} parent=63 // pred_check
          %p460 = pneg %p272
        $region86: #{tpu_custom_call.1} parent=63 // pred_check_branch
          %462 = sbr.rel (%p460) target = $region88
        $region87: #{tpu_custom_call.1} parent=63 // pred_region
          %463 = dma.done [#allocation12], 128
        $region88: #{tpu_custom_call.1} parent=63 // pred_fallthru
          _
        %s464 = smul.u32 4, %s31
        %p465 = scmp.lt.s32.totalorder %s464, 7
        %s466 = scalar_select %p465, %s464, 7
        %s467 = smul.addr %s466, 8
        %s468 = scalar_lea.vmem %s0, %s467
        %p469 = pneg %p52
        %p470 = pneg %p49
        %s471 = smul.u32 4, %s31
        %p472 = scmp.lt.s32.totalorder %s471, 7
        %s473 = scalar_select %p472, %s471, 7
        %s474 = smul.addr %s473, 8
        %s475 = scalar_lea.vmem %s1, %s474
        %p476 = pneg %p78
        %p477 = pneg %p75
        %s478 = sand.u32 %s91, 1
        %s479 = scalar_lea.sflag [#allocation3], %s478
        %s480 = sand.u32 %s91, 1
        %s481 = smul.addr %s480, 32
        %s482 = scalar_lea.vmem [#allocation2], %s481
        %p483 = pneg %p104
        %p484 = pneg %p101
        %p485 = pneg %p125
        %p486 = pneg %p122
        %p487 = pneg %p146
        %p488 = pneg %p143
        %p489 = pneg %p167
        %p490 = pneg %p164
        %p491 = pneg %p188
        %p492 = pneg %p185
        %p493 = pneg %p209
        %p494 = pneg %p206
        %p495 = pneg %p230
        %p496 = pneg %p227
        %p497 = pneg %p251
        %p498 = pneg %p248
        %p499 = pneg %p272
        %p500 = pneg %p269
        %p501 = pneg %p298
        %p502 = pneg %p295
        %s503 = sand.u32 %s285, 1
        %s504 = scalar_lea.sflag [#allocation4], %s503
        %s505 = sand.u32 %s285, 1
        %s506 = smul.addr %s505, 32
        %s507 = scalar_lea.vmem [#allocation13], %s506
        %s508 = smul.u32 4, %s31
        %p509 = scmp.lt.s32.totalorder %s508, 7
        %s510 = scalar_select %p509, %s508, 7
        %s511 = smul.addr %s510, 8
        %s512 = scalar_lea.vmem %s0, %s511
        %s513 = smul.u32 4, %s31
        %s514 = smul.u32 4, %s31
        %p515 = scmp.lt.s32.totalorder %s514, 7
        %s516 = scalar_select %p515, %s514, 7
        %s517 = smul.addr %s516, 8
        %s518 = scalar_lea.vmem %s1, %s517
        %s519 = smul.u32 4, %s31
        %s520 = smul.u32 4, %s31
        %s521 = smul.u32 4, %s31
        %v522 = vld [vmem:[%s439] sm:$0xff]
        %v523 = vld [vmem:[%s439 + $0x8] sm:$0xff]
        %v524 = vld [vmem:[%s439 + $0x10] sm:$0xff]
        %v525 = vld [vmem:[%s439 + $0x18] sm:$0xff]
        %v526 = vld [vmem:[#allocation7] sm:$0xff]
        %v527 = vld [vmem:[#allocation7 + $0x8] sm:$0xff]
        %v528 = vld [vmem:[#allocation7 + $0x10] sm:$0xff]
        %v529 = vld [vmem:[#allocation7 + $0x18] sm:$0xff]
        %vm530 = vcmask 261120
        %v532 = vsel %vm530, %v522, 0
        %v535 = vsel %vm530, %v523, 0
        %v538 = vsel %vm530, %v524, 0
        %v541 = vsel %vm530, %v525, 0
        %543 = vmatprep.subr.mxu0 0.0
        %544 = vmatpush1.msra.mxu0 %v526
        %545 = vmatprep.subr.mxu0 0.0
        %546 = vmatpush1.msra.mxu0 %v527
        %547 = vmatprep.subr.mxu0 0.0
        %548 = vmatpush1.msra.mxu0 %v528
        %549 = vmatprep.subr.mxu0 0.0
        %550 = vmatpush1.msra.mxu0 %v529
        %551 = vmatprep.subr.mxu0 0.0
        %552 = vmatpush1.msra.mxu0 0.0
        %553 = vmatprep.subr.mxu0 0.0
        %554 = vmatpush1.msra.mxu0 0.0
        %555 = vmatprep.subr.mxu0 0.0
        %556 = vmatpush1.msra.mxu0 0.0
        %557 = vmatprep.subr.mxu0 0.0
        %558 = vmatpush1.msra.mxu0 0.0
        %559 = vmatprep.subr.mxu0 0.0
        %560 = vmatpush1.msra.mxu0 0.0
        %561 = vmatprep.subr.mxu0 0.0
        %562 = vmatpush1.msra.mxu0 0.0
        %563 = vmatprep.subr.mxu0 0.0
        %564 = vmatpush1.msra.mxu0 0.0
        %565 = vmatprep.subr.mxu0 0.0
        %566 = vmatpush1.msra.mxu0 0.0
        %567 = vmatprep.subr.mxu0 0.0
        %568 = vmatpush1.msra.mxu0 0.0
        %569 = vmatprep.subr.mxu0 0.0
        %570 = vmatpush1.msra.mxu0 0.0
        %571 = vmatprep.subr.mxu0 0.0
        %572 = vmatpush1.msra.mxu0 0.0
        %573 = vmatprep.subr.mxu0 0.0
        %574 = vmatpush1.msra.mxu0 0.0
        %575 = vmatprep.subr.mxu0 0.0
        %576 = vmatpush1.msra.mxu0 0.0
        %577 = vmatprep.subr.mxu0 0.0
        %578 = vmatpush1.msra.mxu0 0.0
        %579 = vmatprep.subr.mxu0 0.0
        %580 = vmatpush1.msra.mxu0 0.0
        %581 = vmatprep.subr.mxu0 0.0
        %582 = vmatpush1.msra.mxu0 0.0
        %583 = vmatprep.subr.mxu0 0.0
        %584 = vmatpush1.msra.mxu0 0.0
        %585 = vmatprep.subr.mxu0 0.0
        %586 = vmatpush1.msra.mxu0 0.0
        %587 = vmatprep.subr.mxu0 0.0
        %588 = vmatpush1.msra.mxu0 0.0
        %589 = vmatprep.subr.mxu0 0.0
        %590 = vmatpush1.msra.mxu0 0.0
        %591 = vmatprep.subr.mxu0 0.0
        %592 = vmatpush1.msra.mxu0 0.0
        %593 = vmatprep.subr.mxu0 0.0
        %594 = vmatpush1.msra.mxu0 0.0
        %595 = vmatprep.subr.mxu0 0.0
        %596 = vmatpush1.msra.mxu0 0.0
        %597 = vmatprep.subr.mxu0 0.0
        %598 = vmatpush1.msra.mxu0 0.0
        %599 = vmatprep.subr.mxu0 0.0
        %600 = vmatpush1.msra.mxu0 0.0
        %601 = vmatprep.subr.mxu0 0.0
        %602 = vmatpush1.msra.mxu0 0.0
        %603 = vmatprep.subr.mxu0 0.0
        %604 = vmatpush1.msra.mxu0 0.0
        %605 = vmatprep.subr.mxu0 0.0
        %606 = vmatpush1.msra.mxu0 0.0
        %607 = vmatprep.mubr.f32.mxu0 0.0
        %608 = vmatmul.mubr.f32.gmra.mrb[0].mxu0 %v532
        %v609 = vpop.f32.mrb[0].mxu0
        %v610 = vadd.f32 0.0, %v609
        %v611 = vpop.f32.mrb[0].mxu0
        %612 = vmatprep.mubr.f32.mxu0 0.0
        %613 = vmatmul.mubr.f32.gmra.mrb[0].mxu0 %v535
        %v614 = vpop.f32.mrb[0].mxu0
        %v615 = vadd.f32 0.0, %v614
        %v616 = vpop.f32.mrb[0].mxu0
        %617 = vmatprep.mubr.f32.mxu0 0.0
        %618 = vmatmul.mubr.f32.gmra.mrb[0].mxu0 %v538
        %v619 = vpop.f32.mrb[0].mxu0
        %v620 = vadd.f32 0.0, %v619
        %v621 = vpop.f32.mrb[0].mxu0
        %622 = vmatprep.mubr.f32.mxu0 0.0
        %623 = vmatmul.mubr.f32.gmra.mrb[0].mxu0 %v541
        %v624 = vpop.f32.mrb[0].mxu0
        %v625 = vadd.f32 0.0, %v624
        %v626 = vpop.f32.mrb[0].mxu0
        %627 = vdwg.mxu0
        %v628 = vld [vmem:[%s518] sm:$0xff]
        %v629 = vld [vmem:[%s518 + $0x8] sm:$0xff]
        %v630 = vld [vmem:[%s518 + $0x10] sm:$0xff]
        %v631 = vld [vmem:[%s518 + $0x18] sm:$0xff]
        %v632 = vld [vmem:[#allocation5] sm:$0xff]
        %v633 = vld [vmem:[#allocation5 + $0x8] sm:$0xff]
        %v634 = vld [vmem:[#allocation5 + $0x10] sm:$0xff]
        %v635 = vld [vmem:[#allocation5 + $0x18] sm:$0xff]
        %v637 = vsel %vm530, %v628, 0
        %v640 = vsel %vm530, %v629, 0
        %v643 = vsel %vm530, %v630, 0
        %v646 = vsel %vm530, %v631, 0
        %648 = vmatprep.subr.mxu0 0.0
        %649 = vmatpush1.msra.mxu0 %v632
        %650 = vmatprep.subr.mxu0 0.0
        %651 = vmatpush1.msra.mxu0 %v633
        %652 = vmatprep.subr.mxu0 0.0
        %653 = vmatpush1.msra.mxu0 %v634
        %654 = vmatprep.subr.mxu0 0.0
        %655 = vmatpush1.msra.mxu0 %v635
        %656 = vmatprep.subr.mxu0 0.0
        %657 = vmatpush1.msra.mxu0 0.0
        %658 = vmatprep.subr.mxu0 0.0
        %659 = vmatpush1.msra.mxu0 0.0
        %660 = vmatprep.subr.mxu0 0.0
        %661 = vmatpush1.msra.mxu0 0.0
        %662 = vmatprep.subr.mxu0 0.0
        %663 = vmatpush1.msra.mxu0 0.0
        %664 = vmatprep.subr.mxu0 0.0
        %665 = vmatpush1.msra.mxu0 0.0
        %666 = vmatprep.subr.mxu0 0.0
        %667 = vmatpush1.msra.mxu0 0.0
        %668 = vmatprep.subr.mxu0 0.0
        %669 = vmatpush1.msra.mxu0 0.0
        %670 = vmatprep.subr.mxu0 0.0
        %671 = vmatpush1.msra.mxu0 0.0
        %672 = vmatprep.subr.mxu0 0.0
        %673 = vmatpush1.msra.mxu0 0.0
        %674 = vmatprep.subr.mxu0 0.0
        %675 = vmatpush1.msra.mxu0 0.0
        %676 = vmatprep.subr.mxu0 0.0
        %677 = vmatpush1.msra.mxu0 0.0
        %678 = vmatprep.subr.mxu0 0.0
        %679 = vmatpush1.msra.mxu0 0.0
        %680 = vmatprep.subr.mxu0 0.0
        %681 = vmatpush1.msra.mxu0 0.0
        %682 = vmatprep.subr.mxu0 0.0
        %683 = vmatpush1.msra.mxu0 0.0
        %684 = vmatprep.subr.mxu0 0.0
        %685 = vmatpush1.msra.mxu0 0.0
        %686 = vmatprep.subr.mxu0 0.0
        %687 = vmatpush1.msra.mxu0 0.0
        %688 = vmatprep.subr.mxu0 0.0
        %689 = vmatpush1.msra.mxu0 0.0
        %690 = vmatprep.subr.mxu0 0.0
        %691 = vmatpush1.msra.mxu0 0.0
        %692 = vmatprep.subr.mxu0 0.0
        %693 = vmatpush1.msra.mxu0 0.0
        %694 = vmatprep.subr.mxu0 0.0
        %695 = vmatpush1.msra.mxu0 0.0
        %696 = vmatprep.subr.mxu0 0.0
        %697 = vmatpush1.msra.mxu0 0.0
        %698 = vmatprep.subr.mxu0 0.0
        %699 = vmatpush1.msra.mxu0 0.0
        %700 = vmatprep.subr.mxu0 0.0
        %701 = vmatpush1.msra.mxu0 0.0
        %702 = vmatprep.subr.mxu0 0.0
        %703 = vmatpush1.msra.mxu0 0.0
        %704 = vmatprep.subr.mxu0 0.0
        %705 = vmatpush1.msra.mxu0 0.0
        %706 = vmatprep.subr.mxu0 0.0
        %707 = vmatpush1.msra.mxu0 0.0
        %708 = vmatprep.subr.mxu0 0.0
        %709 = vmatpush1.msra.mxu0 0.0
        %710 = vmatprep.subr.mxu0 0.0
        %711 = vmatpush1.msra.mxu0 0.0
        %712 = vmatprep.mubr.f32.mxu0 0.0
        %713 = vmatmul.mubr.f32.gmra.mrb[0].mxu0 %v637
        %v714 = vpop.f32.mrb[0].mxu0
        %v715 = vadd.f32 0.0, %v714
        %v716 = vpop.f32.mrb[0].mxu0
        %717 = vmatprep.mubr.f32.mxu0 0.0
        %718 = vmatmul.mubr.f32.gmra.mrb[0].mxu0 %v640
        %v719 = vpop.f32.mrb[0].mxu0
        %v720 = vadd.f32 0.0, %v719
        %v721 = vpop.f32.mrb[0].mxu0
        %722 = vmatprep.mubr.f32.mxu0 0.0
        %723 = vmatmul.mubr.f32.gmra.mrb[0].mxu0 %v643
        %v724 = vpop.f32.mrb[0].mxu0
        %v725 = vadd.f32 0.0, %v724
        %v726 = vpop.f32.mrb[0].mxu0
        %727 = vmatprep.mubr.f32.mxu0 0.0
        %728 = vmatmul.mubr.f32.gmra.mrb[0].mxu0 %v646
        %v729 = vpop.f32.mrb[0].mxu0
        %v730 = vadd.f32 0.0, %v729
        %v731 = vpop.f32.mrb[0].mxu0
        %732 = vdwg.mxu0
        %v733 = vld [vmem:[%s512] sm:$0xff]
        %v734 = vld [vmem:[%s512 + $0x8] sm:$0xff]
        %v735 = vld [vmem:[%s512 + $0x10] sm:$0xff]
        %v736 = vld [vmem:[%s512 + $0x18] sm:$0xff]
        %v737 = vld [vmem:[%s3] sm:$0xff]
        %v738 = vld [vmem:[%s3 + $0x8] sm:$0xff]
        %v739 = vld [vmem:[%s3 + $0x10] sm:$0xff]
        %v740 = vld [vmem:[%s3 + $0x18] sm:$0xff]
        %v742 = vsel %vm530, %v733, 0
        %v745 = vsel %vm530, %v734, 0
        %v748 = vsel %vm530, %v735, 0
        %v751 = vsel %vm530, %v736, 0
        %753 = vmatprep.subr.mxu0 0.0
        %754 = vmatpush1.msra.mxu0 %v737
        %755 = vmatprep.subr.mxu0 0.0
        %756 = vmatpush1.msra.mxu0 %v738
        %757 = vmatprep.subr.mxu0 0.0
        %758 = vmatpush1.msra.mxu0 %v739
        %759 = vmatprep.subr.mxu0 0.0
        %760 = vmatpush1.msra.mxu0 %v740
        %761 = vmatprep.subr.mxu0 0.0
        %762 = vmatpush1.msra.mxu0 0.0
        %763 = vmatprep.subr.mxu0 0.0
        %764 = vmatpush1.msra.mxu0 0.0
        %765 = vmatprep.subr.mxu0 0.0
        %766 = vmatpush1.msra.mxu0 0.0
        %767 = vmatprep.subr.mxu0 0.0
        %768 = vmatpush1.msra.mxu0 0.0
        %769 = vmatprep.subr.mxu0 0.0
        %770 = vmatpush1.msra.mxu0 0.0
        %771 = vmatprep.subr.mxu0 0.0
        %772 = vmatpush1.msra.mxu0 0.0
        %773 = vmatprep.subr.mxu0 0.0
        %774 = vmatpush1.msra.mxu0 0.0
        %775 = vmatprep.subr.mxu0 0.0
        %776 = vmatpush1.msra.mxu0 0.0
        %777 = vmatprep.subr.mxu0 0.0
        %778 = vmatpush1.msra.mxu0 0.0
        %779 = vmatprep.subr.mxu0 0.0
        %780 = vmatpush1.msra.mxu0 0.0
        %781 = vmatprep.subr.mxu0 0.0
        %782 = vmatpush1.msra.mxu0 0.0
        %783 = vmatprep.subr.mxu0 0.0
        %784 = vmatpush1.msra.mxu0 0.0
        %785 = vmatprep.subr.mxu0 0.0
        %786 = vmatpush1.msra.mxu0 0.0
        %787 = vmatprep.subr.mxu0 0.0
        %788 = vmatpush1.msra.mxu0 0.0
        %789 = vmatprep.subr.mxu0 0.0
        %790 = vmatpush1.msra.mxu0 0.0
        %791 = vmatprep.subr.mxu0 0.0
        %792 = vmatpush1.msra.mxu0 0.0
        %793 = vmatprep.subr.mxu0 0.0
        %794 = vmatpush1.msra.mxu0 0.0
        %795 = vmatprep.subr.mxu0 0.0
        %796 = vmatpush1.msra.mxu0 0.0
        %797 = vmatprep.subr.mxu0 0.0
        %798 = vmatpush1.msra.mxu0 0.0
        %799 = vmatprep.subr.mxu0 0.0
        %800 = vmatpush1.msra.mxu0 0.0
        %801 = vmatprep.subr.mxu0 0.0
        %802 = vmatpush1.msra.mxu0 0.0
        %803 = vmatprep.subr.mxu0 0.0
        %804 = vmatpush1.msra.mxu0 0.0
        %805 = vmatprep.subr.mxu0 0.0
        %806 = vmatpush1.msra.mxu0 0.0
        %807 = vmatprep.subr.mxu0 0.0
        %808 = vmatpush1.msra.mxu0 0.0
        %809 = vmatprep.subr.mxu0 0.0
        %810 = vmatpush1.msra.mxu0 0.0
        %811 = vmatprep.subr.mxu0 0.0
        %812 = vmatpush1.msra.mxu0 0.0
        %813 = vmatprep.subr.mxu0 0.0
        %814 = vmatpush1.msra.mxu0 0.0
        %815 = vmatprep.subr.mxu0 0.0
        %816 = vmatpush1.msra.mxu0 0.0
        %817 = vmatprep.mubr.f32.mxu0 0.0
        %818 = vmatmul.mubr.f32.gmra.mrb[0].mxu0 %v742
        %v819 = vpop.f32.mrb[0].mxu0
        %v820 = vadd.f32 0.0, %v819
        %v821 = vpop.f32.mrb[0].mxu0
        %822 = vmatprep.mubr.f32.mxu0 0.0
        %823 = vmatmul.mubr.f32.gmra.mrb[0].mxu0 %v745
        %v824 = vpop.f32.mrb[0].mxu0
        %v825 = vadd.f32 0.0, %v824
        %v826 = vpop.f32.mrb[0].mxu0
        %827 = vmatprep.mubr.f32.mxu0 0.0
        %828 = vmatmul.mubr.f32.gmra.mrb[0].mxu0 %v748
        %v829 = vpop.f32.mrb[0].mxu0
        %v830 = vadd.f32 0.0, %v829
        %v831 = vpop.f32.mrb[0].mxu0
        %832 = vmatprep.mubr.f32.mxu0 0.0
        %833 = vmatmul.mubr.f32.gmra.mrb[0].mxu0 %v751
        %v834 = vpop.f32.mrb[0].mxu0
        %v835 = vadd.f32 0.0, %v834
        %v836 = vpop.f32.mrb[0].mxu0
        %837 = vdwg.mxu0
        %v838 = vld [vmem:[#allocation11] sm:$0x3f]
        %vm839 = vcmask 64512
        %v841 = vsel %vm839, %v610, 0
        %v844 = vsel %vm839, %v715, 0
        %846 = vmatprep.subr.mxu0 0.0
        %847 = vmatpush1.xpose.msra.mxu0 %v844
        %848 = vmatprep.subr.mxu0 0.0
        %849 = vmatpush1.xpose.msra.mxu0 0.0
        %850 = vmatprep.subr.mxu0 0.0
        %851 = vmatpush1.xpose.msra.mxu0 0.0
        %852 = vmatprep.subr.mxu0 0.0
        %853 = vmatpush1.xpose.msra.mxu0 0.0
        %854 = vmatprep.subr.mxu0 0.0
        %855 = vmatpush1.xpose.msra.mxu0 0.0
        %856 = vmatprep.subr.mxu0 0.0
        %857 = vmatpush1.xpose.msra.mxu0 0.0
        %858 = vmatprep.subr.mxu0 0.0
        %859 = vmatpush1.xpose.msra.mxu0 0.0
        %860 = vmatprep.subr.mxu0 0.0
        %861 = vmatpush1.xpose.msra.mxu0 0.0
        %862 = vmatprep.subr.mxu0 0.0
        %863 = vmatpush1.xpose.msra.mxu0 0.0
        %864 = vmatprep.subr.mxu0 0.0
        %865 = vmatpush1.xpose.msra.mxu0 0.0
        %866 = vmatprep.subr.mxu0 0.0
        %867 = vmatpush1.xpose.msra.mxu0 0.0
        %868 = vmatprep.subr.mxu0 0.0
        %869 = vmatpush1.xpose.msra.mxu0 0.0
        %870 = vmatprep.subr.mxu0 0.0
        %871 = vmatpush1.xpose.msra.mxu0 0.0
        %872 = vmatprep.subr.mxu0 0.0
        %873 = vmatpush1.xpose.msra.mxu0 0.0
        %874 = vmatprep.subr.mxu0 0.0
        %875 = vmatpush1.xpose.msra.mxu0 0.0
        %876 = vmatprep.subr.mxu0 0.0
        %877 = vmatpush1.xpose.msra.mxu0 0.0
        %878 = vmatprep.subr.mxu0 0.0
        %879 = vmatpush1.xpose.msra.mxu0 0.0
        %880 = vmatprep.subr.mxu0 0.0
        %881 = vmatpush1.xpose.msra.mxu0 0.0
        %882 = vmatprep.subr.mxu0 0.0
        %883 = vmatpush1.xpose.msra.mxu0 0.0
        %884 = vmatprep.subr.mxu0 0.0
        %885 = vmatpush1.xpose.msra.mxu0 0.0
        %886 = vmatprep.subr.mxu0 0.0
        %887 = vmatpush1.xpose.msra.mxu0 0.0
        %888 = vmatprep.subr.mxu0 0.0
        %889 = vmatpush1.xpose.msra.mxu0 0.0
        %890 = vmatprep.subr.mxu0 0.0
        %891 = vmatpush1.xpose.msra.mxu0 0.0
        %892 = vmatprep.subr.mxu0 0.0
        %893 = vmatpush1.xpose.msra.mxu0 0.0
        %894 = vmatprep.subr.mxu0 0.0
        %895 = vmatpush1.xpose.msra.mxu0 0.0
        %896 = vmatprep.subr.mxu0 0.0
        %897 = vmatpush1.xpose.msra.mxu0 0.0
        %898 = vmatprep.subr.mxu0 0.0
        %899 = vmatpush1.xpose.msra.mxu0 0.0
        %900 = vmatprep.subr.mxu0 0.0
        %901 = vmatpush1.xpose.msra.mxu0 0.0
        %902 = vmatprep.subr.mxu0 0.0
        %903 = vmatpush1.xpose.msra.mxu0 0.0
        %904 = vmatprep.subr.mxu0 0.0
        %905 = vmatpush1.xpose.msra.mxu0 0.0
        %906 = vmatprep.subr.mxu0 0.0
        %907 = vmatpush1.xpose.msra.mxu0 0.0
        %908 = vmatprep.subr.mxu0 0.0
        %909 = vmatpush1.xpose.msra.mxu0 0.0
        %910 = vmatprep.mubr.f32.mxu0 0.0
        %911 = vmatmul.mubr.f32.gmra.mrb[0].mxu0 %v841
        %v912 = vpop.f32.mrb[0].mxu0
        %v913 = vadd.f32 0.0, %v912
        %v914 = vpop.f32.mrb[0].mxu0
        %915 = vdwg.mxu0
        %v917 = vsel %vm839, %v615, 0
        %v920 = vsel %vm839, %v720, 0
        %922 = vmatprep.subr.mxu0 0.0
        %923 = vmatpush1.xpose.msra.mxu0 %v920
        %924 = vmatprep.subr.mxu0 0.0
        %925 = vmatpush1.xpose.msra.mxu0 0.0
        %926 = vmatprep.subr.mxu0 0.0
        %927 = vmatpush1.xpose.msra.mxu0 0.0
        %928 = vmatprep.subr.mxu0 0.0
        %929 = vmatpush1.xpose.msra.mxu0 0.0
        %930 = vmatprep.subr.mxu0 0.0
        %931 = vmatpush1.xpose.msra.mxu0 0.0
        %932 = vmatprep.subr.mxu0 0.0
        %933 = vmatpush1.xpose.msra.mxu0 0.0
        %934 = vmatprep.subr.mxu0 0.0
        %935 = vmatpush1.xpose.msra.mxu0 0.0
        %936 = vmatprep.subr.mxu0 0.0
        %937 = vmatpush1.xpose.msra.mxu0 0.0
        %938 = vmatprep.subr.mxu0 0.0
        %939 = vmatpush1.xpose.msra.mxu0 0.0
        %940 = vmatprep.subr.mxu0 0.0
        %941 = vmatpush1.xpose.msra.mxu0 0.0
        %942 = vmatprep.subr.mxu0 0.0
        %943 = vmatpush1.xpose.msra.mxu0 0.0
        %944 = vmatprep.subr.mxu0 0.0
        %945 = vmatpush1.xpose.msra.mxu0 0.0
        %946 = vmatprep.subr.mxu0 0.0
        %947 = vmatpush1.xpose.msra.mxu0 0.0
        %948 = vmatprep.subr.mxu0 0.0
        %949 = vmatpush1.xpose.msra.mxu0 0.0
        %950 = vmatprep.subr.mxu0 0.0
        %951 = vmatpush1.xpose.msra.mxu0 0.0
        %952 = vmatprep.subr.mxu0 0.0
        %953 = vmatpush1.xpose.msra.mxu0 0.0
        %954 = vmatprep.subr.mxu0 0.0
        %955 = vmatpush1.xpose.msra.mxu0 0.0
        %956 = vmatprep.subr.mxu0 0.0
        %957 = vmatpush1.xpose.msra.mxu0 0.0
        %958 = vmatprep.subr.mxu0 0.0
        %959 = vmatpush1.xpose.msra.mxu0 0.0
        %960 = vmatprep.subr.mxu0 0.0
        %961 = vmatpush1.xpose.msra.mxu0 0.0
        %962 = vmatprep.subr.mxu0 0.0
        %963 = vmatpush1.xpose.msra.mxu0 0.0
        %964 = vmatprep.subr.mxu0 0.0
        %965 = vmatpush1.xpose.msra.mxu0 0.0
        %966 = vmatprep.subr.mxu0 0.0
        %967 = vmatpush1.xpose.msra.mxu0 0.0
        %968 = vmatprep.subr.mxu0 0.0
        %969 = vmatpush1.xpose.msra.mxu0 0.0
        %970 = vmatprep.subr.mxu0 0.0
        %971 = vmatpush1.xpose.msra.mxu0 0.0
        %972 = vmatprep.subr.mxu0 0.0
        %973 = vmatpush1.xpose.msra.mxu0 0.0
        %974 = vmatprep.subr.mxu0 0.0
        %975 = vmatpush1.xpose.msra.mxu0 0.0
        %976 = vmatprep.subr.mxu0 0.0
        %977 = vmatpush1.xpose.msra.mxu0 0.0
        %978 = vmatprep.subr.mxu0 0.0
        %979 = vmatpush1.xpose.msra.mxu0 0.0
        %980 = vmatprep.subr.mxu0 0.0
        %981 = vmatpush1.xpose.msra.mxu0 0.0
        %982 = vmatprep.subr.mxu0 0.0
        %983 = vmatpush1.xpose.msra.mxu0 0.0
        %984 = vmatprep.subr.mxu0 0.0
        %985 = vmatpush1.xpose.msra.mxu0 0.0
        %986 = vmatprep.mubr.f32.mxu0 0.0
        %987 = vmatmul.mubr.f32.gmra.mrb[0].mxu0 %v917
        %v988 = vpop.f32.mrb[0].mxu0
        %v989 = vadd.f32 0.0, %v988
        %v990 = vpop.f32.mrb[0].mxu0
        %991 = vdwg.mxu0
        %v993 = vsel %vm839, %v620, 0
        %v996 = vsel %vm839, %v725, 0
        %998 = vmatprep.subr.mxu0 0.0
        %999 = vmatpush1.xpose.msra.mxu0 %v996
        %1000 = vmatprep.subr.mxu0 0.0
        %1001 = vmatpush1.xpose.msra.mxu0 0.0
        %1002 = vmatprep.subr.mxu0 0.0
        %1003 = vmatpush1.xpose.msra.mxu0 0.0
        %1004 = vmatprep.subr.mxu0 0.0
        %1005 = vmatpush1.xpose.msra.mxu0 0.0
        %1006 = vmatprep.subr.mxu0 0.0
        %1007 = vmatpush1.xpose.msra.mxu0 0.0
        %1008 = vmatprep.subr.mxu0 0.0
        %1009 = vmatpush1.xpose.msra.mxu0 0.0
        %1010 = vmatprep.subr.mxu0 0.0
        %1011 = vmatpush1.xpose.msra.mxu0 0.0
        %1012 = vmatprep.subr.mxu0 0.0
        %1013 = vmatpush1.xpose.msra.mxu0 0.0
        %1014 = vmatprep.subr.mxu0 0.0
        %1015 = vmatpush1.xpose.msra.mxu0 0.0
        %1016 = vmatprep.subr.mxu0 0.0
        %1017 = vmatpush1.xpose.msra.mxu0 0.0
        %1018 = vmatprep.subr.mxu0 0.0
        %1019 = vmatpush1.xpose.msra.mxu0 0.0
        %1020 = vmatprep.subr.mxu0 0.0
        %1021 = vmatpush1.xpose.msra.mxu0 0.0
        %1022 = vmatprep.subr.mxu0 0.0
        %1023 = vmatpush1.xpose.msra.mxu0 0.0
        %1024 = vmatprep.subr.mxu0 0.0
        %1025 = vmatpush1.xpose.msra.mxu0 0.0
        %1026 = vmatprep.subr.mxu0 0.0
        %1027 = vmatpush1.xpose.msra.mxu0 0.0
        %1028 = vmatprep.subr.mxu0 0.0
        %1029 = vmatpush1.xpose.msra.mxu0 0.0
        %1030 = vmatprep.subr.mxu0 0.0
        %1031 = vmatpush1.xpose.msra.mxu0 0.0
        %1032 = vmatprep.subr.mxu0 0.0
        %1033 = vmatpush1.xpose.msra.mxu0 0.0
        %1034 = vmatprep.subr.mxu0 0.0
        %1035 = vmatpush1.xpose.msra.mxu0 0.0
        %1036 = vmatprep.subr.mxu0 0.0
        %1037 = vmatpush1.xpose.msra.mxu0 0.0
        %1038 = vmatprep.subr.mxu0 0.0
        %1039 = vmatpush1.xpose.msra.mxu0 0.0
        %1040 = vmatprep.subr.mxu0 0.0
        %1041 = vmatpush1.xpose.msra.mxu0 0.0
        %1042 = vmatprep.subr.mxu0 0.0
        %1043 = vmatpush1.xpose.msra.mxu0 0.0
        %1044 = vmatprep.subr.mxu0 0.0
        %1045 = vmatpush1.xpose.msra.mxu0 0.0
        %1046 = vmatprep.subr.mxu0 0.0
        %1047 = vmatpush1.xpose.msra.mxu0 0.0
        %1048 = vmatprep.subr.mxu0 0.0
        %1049 = vmatpush1.xpose.msra.mxu0 0.0
        %1050 = vmatprep.subr.mxu0 0.0
        %1051 = vmatpush1.xpose.msra.mxu0 0.0
        %1052 = vmatprep.subr.mxu0 0.0
        %1053 = vmatpush1.xpose.msra.mxu0 0.0
        %1054 = vmatprep.subr.mxu0 0.0
        %1055 = vmatpush1.xpose.msra.mxu0 0.0
        %1056 = vmatprep.subr.mxu0 0.0
        %1057 = vmatpush1.xpose.msra.mxu0 0.0
        %1058 = vmatprep.subr.mxu0 0.0
        %1059 = vmatpush1.xpose.msra.mxu0 0.0
        %1060 = vmatprep.subr.mxu0 0.0
        %1061 = vmatpush1.xpose.msra.mxu0 0.0
        %1062 = vmatprep.mubr.f32.mxu0 0.0
        %1063 = vmatmul.mubr.f32.gmra.mrb[0].mxu0 %v993
        %v1064 = vpop.f32.mrb[0].mxu0
        %v1065 = vadd.f32 0.0, %v1064
        %v1066 = vpop.f32.mrb[0].mxu0
        %1067 = vdwg.mxu0
        %v1069 = vsel %vm839, %v625, 0
        %v1072 = vsel %vm839, %v730, 0
        %1074 = vmatprep.subr.mxu0 0.0
        %1075 = vmatpush1.xpose.msra.mxu0 %v1072
        %1076 = vmatprep.subr.mxu0 0.0
        %1077 = vmatpush1.xpose.msra.mxu0 0.0
        %1078 = vmatprep.subr.mxu0 0.0
        %1079 = vmatpush1.xpose.msra.mxu0 0.0
        %1080 = vmatprep.subr.mxu0 0.0
        %1081 = vmatpush1.xpose.msra.mxu0 0.0
        %1082 = vmatprep.subr.mxu0 0.0
        %1083 = vmatpush1.xpose.msra.mxu0 0.0
        %1084 = vmatprep.subr.mxu0 0.0
        %1085 = vmatpush1.xpose.msra.mxu0 0.0
        %1086 = vmatprep.subr.mxu0 0.0
        %1087 = vmatpush1.xpose.msra.mxu0 0.0
        %1088 = vmatprep.subr.mxu0 0.0
        %1089 = vmatpush1.xpose.msra.mxu0 0.0
        %1090 = vmatprep.subr.mxu0 0.0
        %1091 = vmatpush1.xpose.msra.mxu0 0.0
        %1092 = vmatprep.subr.mxu0 0.0
        %1093 = vmatpush1.xpose.msra.mxu0 0.0
        %1094 = vmatprep.subr.mxu0 0.0
        %1095 = vmatpush1.xpose.msra.mxu0 0.0
        %1096 = vmatprep.subr.mxu0 0.0
        %1097 = vmatpush1.xpose.msra.mxu0 0.0
        %1098 = vmatprep.subr.mxu0 0.0
        %1099 = vmatpush1.xpose.msra.mxu0 0.0
        %1100 = vmatprep.subr.mxu0 0.0
        %1101 = vmatpush1.xpose.msra.mxu0 0.0
        %1102 = vmatprep.subr.mxu0 0.0
        %1103 = vmatpush1.xpose.msra.mxu0 0.0
        %1104 = vmatprep.subr.mxu0 0.0
        %1105 = vmatpush1.xpose.msra.mxu0 0.0
        %1106 = vmatprep.subr.mxu0 0.0
        %1107 = vmatpush1.xpose.msra.mxu0 0.0
        %1108 = vmatprep.subr.mxu0 0.0
        %1109 = vmatpush1.xpose.msra.mxu0 0.0
        %1110 = vmatprep.subr.mxu0 0.0
        %1111 = vmatpush1.xpose.msra.mxu0 0.0
        %1112 = vmatprep.subr.mxu0 0.0
        %1113 = vmatpush1.xpose.msra.mxu0 0.0
        %1114 = vmatprep.subr.mxu0 0.0
        %1115 = vmatpush1.xpose.msra.mxu0 0.0
        %1116 = vmatprep.subr.mxu0 0.0
        %1117 = vmatpush1.xpose.msra.mxu0 0.0
        %1118 = vmatprep.subr.mxu0 0.0
        %1119 = vmatpush1.xpose.msra.mxu0 0.0
        %1120 = vmatprep.subr.mxu0 0.0
        %1121 = vmatpush1.xpose.msra.mxu0 0.0
        %1122 = vmatprep.subr.mxu0 0.0
        %1123 = vmatpush1.xpose.msra.mxu0 0.0
        %1124 = vmatprep.subr.mxu0 0.0
        %1125 = vmatpush1.xpose.msra.mxu0 0.0
        %1126 = vmatprep.subr.mxu0 0.0
        %1127 = vmatpush1.xpose.msra.mxu0 0.0
        %1128 = vmatprep.subr.mxu0 0.0
        %1129 = vmatpush1.xpose.msra.mxu0 0.0
        %1130 = vmatprep.subr.mxu0 0.0
        %1131 = vmatpush1.xpose.msra.mxu0 0.0
        %1132 = vmatprep.subr.mxu0 0.0
        %1133 = vmatpush1.xpose.msra.mxu0 0.0
        %1134 = vmatprep.subr.mxu0 0.0
        %1135 = vmatpush1.xpose.msra.mxu0 0.0
        %1136 = vmatprep.subr.mxu0 0.0
        %1137 = vmatpush1.xpose.msra.mxu0 0.0
        %1138 = vmatprep.mubr.f32.mxu0 0.0
        %1139 = vmatmul.mubr.f32.gmra.mrb[0].mxu0 %v1069
        %v1140 = vpop.f32.mrb[0].mxu0
        %v1141 = vadd.f32 0.0, %v1140
        %v1142 = vpop.f32.mrb[0].mxu0
        %1143 = vdwg.mxu0
        %v1144 = vsel %vm839, %v913, -inf
        %1145 = vmax.xlane.f32.xlu0 %v1144
        %v1146 = vpop.xlane.xlu0 %1145
        %v1147 = vsel %vm839, %v989, -inf
        %1148 = vmax.xlane.f32.xlu0 %v1147
        %v1149 = vpop.xlane.xlu0 %1148
        %v1150 = vsel %vm839, %v1065, -inf
        %1151 = vmax.xlane.f32.xlu0 %v1150
        %v1152 = vpop.xlane.xlu0 %1151
        %v1153 = vsel %vm839, %v1141, -inf
        %1154 = vmax.xlane.f32.xlu0 %v1153
        %v1155 = vpop.xlane.xlu0 %1154
        %v1156 = vsub.f32 %v913, %v1146
        %v1157 = vsub.f32 %v989, %v1149
        %v1158 = vsub.f32 %v1065, %v1152
        %v1159 = vsub.f32 %v1141, %v1155
        %v1160 = vmul.f32 %v1156, 1.442695
        %v1161 = vpow.pop %v1160
        %v1162 = vmul.f32 %v1157, 1.442695
        %v1163 = vpow.pop %v1162
        %v1164 = vmul.f32 %v1158, 1.442695
        %v1165 = vpow.pop %v1164
        %v1166 = vmul.f32 %v1159, 1.442695
        %v1167 = vpow.pop %v1166
        %v1168 = vsel %vm839, %v1161, 0.0
        %1169 = vadd.xlane.f32.xlu0 %v1168
        %v1170 = vpop.xlane.xlu0 %1169
        %v1171 = vsel %vm839, %v1163, 0.0
        %1172 = vadd.xlane.f32.xlu0 %v1171
        %v1173 = vpop.xlane.xlu0 %1172
        %v1174 = vsel %vm839, %v1165, 0.0
        %1175 = vadd.xlane.f32.xlu0 %v1174
        %v1176 = vpop.xlane.xlu0 %1175
        %v1177 = vsel %vm839, %v1167, 0.0
        %1178 = vadd.xlane.f32.xlu0 %v1177
        %v1179 = vpop.xlane.xlu0 %1178
        %v1181 = vsel %vm839, %v1161, 0
        %1183 = vmatprep.subr.mxu0 0.0
        %1184 = vmatpush1.msra.mxu0 %v820
        %1185 = vmatprep.subr.mxu0 0.0
        %1186 = vmatpush1.msra.mxu0 0.0
        %1187 = vmatprep.subr.mxu0 0.0
        %1188 = vmatpush1.msra.mxu0 0.0
        %1189 = vmatprep.subr.mxu0 0.0
        %1190 = vmatpush1.msra.mxu0 0.0
        %1191 = vmatprep.subr.mxu0 0.0
        %1192 = vmatpush1.msra.mxu0 0.0
        %1193 = vmatprep.subr.mxu0 0.0
        %1194 = vmatpush1.msra.mxu0 0.0
        %1195 = vmatprep.subr.mxu0 0.0
        %1196 = vmatpush1.msra.mxu0 0.0
        %1197 = vmatprep.subr.mxu0 0.0
        %1198 = vmatpush1.msra.mxu0 0.0
        %1199 = vmatprep.subr.mxu0 0.0
        %1200 = vmatpush1.msra.mxu0 0.0
        %1201 = vmatprep.subr.mxu0 0.0
        %1202 = vmatpush1.msra.mxu0 0.0
        %1203 = vmatprep.subr.mxu0 0.0
        %1204 = vmatpush1.msra.mxu0 0.0
        %1205 = vmatprep.subr.mxu0 0.0
        %1206 = vmatpush1.msra.mxu0 0.0
        %1207 = vmatprep.subr.mxu0 0.0
        %1208 = vmatpush1.msra.mxu0 0.0
        %1209 = vmatprep.subr.mxu0 0.0
        %1210 = vmatpush1.msra.mxu0 0.0
        %1211 = vmatprep.subr.mxu0 0.0
        %1212 = vmatpush1.msra.mxu0 0.0
        %1213 = vmatprep.subr.mxu0 0.0
        %1214 = vmatpush1.msra.mxu0 0.0
        %1215 = vmatprep.subr.mxu0 0.0
        %1216 = vmatpush1.msra.mxu0 0.0
        %1217 = vmatprep.subr.mxu0 0.0
        %1218 = vmatpush1.msra.mxu0 0.0
        %1219 = vmatprep.subr.mxu0 0.0
        %1220 = vmatpush1.msra.mxu0 0.0
        %1221 = vmatprep.subr.mxu0 0.0
        %1222 = vmatpush1.msra.mxu0 0.0
        %1223 = vmatprep.subr.mxu0 0.0
        %1224 = vmatpush1.msra.mxu0 0.0
        %1225 = vmatprep.subr.mxu0 0.0
        %1226 = vmatpush1.msra.mxu0 0.0
        %1227 = vmatprep.subr.mxu0 0.0
        %1228 = vmatpush1.msra.mxu0 0.0
        %1229 = vmatprep.subr.mxu0 0.0
        %1230 = vmatpush1.msra.mxu0 0.0
        %1231 = vmatprep.subr.mxu0 0.0
        %1232 = vmatpush1.msra.mxu0 0.0
        %1233 = vmatprep.subr.mxu0 0.0
        %1234 = vmatpush1.msra.mxu0 0.0
        %1235 = vmatprep.subr.mxu0 0.0
        %1236 = vmatpush1.msra.mxu0 0.0
        %1237 = vmatprep.subr.mxu0 0.0
        %1238 = vmatpush1.msra.mxu0 0.0
        %1239 = vmatprep.subr.mxu0 0.0
        %1240 = vmatpush1.msra.mxu0 0.0
        %1241 = vmatprep.subr.mxu0 0.0
        %1242 = vmatpush1.msra.mxu0 0.0
        %1243 = vmatprep.subr.mxu0 0.0
        %1244 = vmatpush1.msra.mxu0 0.0
        %1245 = vmatprep.subr.mxu0 0.0
        %1246 = vmatpush1.msra.mxu0 0.0
        %1247 = vmatprep.mubr.f32.mxu0 0.0
        %1248 = vmatmul.mubr.f32.gmra.mrb[0].mxu0 %v1181
        %v1249 = vpop.f32.mrb[0].mxu0
        %v1250 = vadd.f32 0.0, %v1249
        %v1251 = vpop.f32.mrb[0].mxu0
        %1252 = vdwg.mxu0
        %v1254 = vsel %vm839, %v1163, 0
        %1256 = vmatprep.subr.mxu0 0.0
        %1257 = vmatpush1.msra.mxu0 %v825
        %1258 = vmatprep.subr.mxu0 0.0
        %1259 = vmatpush1.msra.mxu0 0.0
        %1260 = vmatprep.subr.mxu0 0.0
        %1261 = vmatpush1.msra.mxu0 0.0
        %1262 = vmatprep.subr.mxu0 0.0
        %1263 = vmatpush1.msra.mxu0 0.0
        %1264 = vmatprep.subr.mxu0 0.0
        %1265 = vmatpush1.msra.mxu0 0.0
        %1266 = vmatprep.subr.mxu0 0.0
        %1267 = vmatpush1.msra.mxu0 0.0
        %1268 = vmatprep.subr.mxu0 0.0
        %1269 = vmatpush1.msra.mxu0 0.0
        %1270 = vmatprep.subr.mxu0 0.0
        %1271 = vmatpush1.msra.mxu0 0.0
        %1272 = vmatprep.subr.mxu0 0.0
        %1273 = vmatpush1.msra.mxu0 0.0
        %1274 = vmatprep.subr.mxu0 0.0
        %1275 = vmatpush1.msra.mxu0 0.0
        %1276 = vmatprep.subr.mxu0 0.0
        %1277 = vmatpush1.msra.mxu0 0.0
        %1278 = vmatprep.subr.mxu0 0.0
        %1279 = vmatpush1.msra.mxu0 0.0
        %1280 = vmatprep.subr.mxu0 0.0
        %1281 = vmatpush1.msra.mxu0 0.0
        %1282 = vmatprep.subr.mxu0 0.0
        %1283 = vmatpush1.msra.mxu0 0.0
        %1284 = vmatprep.subr.mxu0 0.0
        %1285 = vmatpush1.msra.mxu0 0.0
        %1286 = vmatprep.subr.mxu0 0.0
        %1287 = vmatpush1.msra.mxu0 0.0
        %1288 = vmatprep.subr.mxu0 0.0
        %1289 = vmatpush1.msra.mxu0 0.0
        %1290 = vmatprep.subr.mxu0 0.0
        %1291 = vmatpush1.msra.mxu0 0.0
        %1292 = vmatprep.subr.mxu0 0.0
        %1293 = vmatpush1.msra.mxu0 0.0
        %1294 = vmatprep.subr.mxu0 0.0
        %1295 = vmatpush1.msra.mxu0 0.0
        %1296 = vmatprep.subr.mxu0 0.0
        %1297 = vmatpush1.msra.mxu0 0.0
        %1298 = vmatprep.subr.mxu0 0.0
        %1299 = vmatpush1.msra.mxu0 0.0
        %1300 = vmatprep.subr.mxu0 0.0
        %1301 = vmatpush1.msra.mxu0 0.0
        %1302 = vmatprep.subr.mxu0 0.0
        %1303 = vmatpush1.msra.mxu0 0.0
        %1304 = vmatprep.subr.mxu0 0.0
        %1305 = vmatpush1.msra.mxu0 0.0
        %1306 = vmatprep.subr.mxu0 0.0
        %1307 = vmatpush1.msra.mxu0 0.0
        %1308 = vmatprep.subr.mxu0 0.0
        %1309 = vmatpush1.msra.mxu0 0.0
        %1310 = vmatprep.subr.mxu0 0.0
        %1311 = vmatpush1.msra.mxu0 0.0
        %1312 = vmatprep.subr.mxu0 0.0
        %1313 = vmatpush1.msra.mxu0 0.0
        %1314 = vmatprep.subr.mxu0 0.0
        %1315 = vmatpush1.msra.mxu0 0.0
        %1316 = vmatprep.subr.mxu0 0.0
        %1317 = vmatpush1.msra.mxu0 0.0
        %1318 = vmatprep.subr.mxu0 0.0
        %1319 = vmatpush1.msra.mxu0 0.0
        %1320 = vmatprep.mubr.f32.mxu0 0.0
        %1321 = vmatmul.mubr.f32.gmra.mrb[0].mxu0 %v1254
        %v1322 = vpop.f32.mrb[0].mxu0
        %v1323 = vadd.f32 0.0, %v1322
        %v1324 = vpop.f32.mrb[0].mxu0
        %1325 = vdwg.mxu0
        %v1327 = vsel %vm839, %v1165, 0
        %1329 = vmatprep.subr.mxu0 0.0
        %1330 = vmatpush1.msra.mxu0 %v830
        %1331 = vmatprep.subr.mxu0 0.0
        %1332 = vmatpush1.msra.mxu0 0.0
        %1333 = vmatprep.subr.mxu0 0.0
        %1334 = vmatpush1.msra.mxu0 0.0
        %1335 = vmatprep.subr.mxu0 0.0
        %1336 = vmatpush1.msra.mxu0 0.0
        %1337 = vmatprep.subr.mxu0 0.0
        %1338 = vmatpush1.msra.mxu0 0.0
        %1339 = vmatprep.subr.mxu0 0.0
        %1340 = vmatpush1.msra.mxu0 0.0
        %1341 = vmatprep.subr.mxu0 0.0
        %1342 = vmatpush1.msra.mxu0 0.0
        %1343 = vmatprep.subr.mxu0 0.0
        %1344 = vmatpush1.msra.mxu0 0.0
        %1345 = vmatprep.subr.mxu0 0.0
        %1346 = vmatpush1.msra.mxu0 0.0
        %1347 = vmatprep.subr.mxu0 0.0
        %1348 = vmatpush1.msra.mxu0 0.0
        %1349 = vmatprep.subr.mxu0 0.0
        %1350 = vmatpush1.msra.mxu0 0.0
        %1351 = vmatprep.subr.mxu0 0.0
        %1352 = vmatpush1.msra.mxu0 0.0
        %1353 = vmatprep.subr.mxu0 0.0
        %1354 = vmatpush1.msra.mxu0 0.0
        %1355 = vmatprep.subr.mxu0 0.0
        %1356 = vmatpush1.msra.mxu0 0.0
        %1357 = vmatprep.subr.mxu0 0.0
        %1358 = vmatpush1.msra.mxu0 0.0
        %1359 = vmatprep.subr.mxu0 0.0
        %1360 = vmatpush1.msra.mxu0 0.0
        %1361 = vmatprep.subr.mxu0 0.0
        %1362 = vmatpush1.msra.mxu0 0.0
        %1363 = vmatprep.subr.mxu0 0.0
        %1364 = vmatpush1.msra.mxu0 0.0
        %1365 = vmatprep.subr.mxu0 0.0
        %1366 = vmatpush1.msra.mxu0 0.0
        %1367 = vmatprep.subr.mxu0 0.0
        %1368 = vmatpush1.msra.mxu0 0.0
        %1369 = vmatprep.subr.mxu0 0.0
        %1370 = vmatpush1.msra.mxu0 0.0
        %1371 = vmatprep.subr.mxu0 0.0
        %1372 = vmatpush1.msra.mxu0 0.0
        %1373 = vmatprep.subr.mxu0 0.0
        %1374 = vmatpush1.msra.mxu0 0.0
        %1375 = vmatprep.subr.mxu0 0.0
        %1376 = vmatpush1.msra.mxu0 0.0
        %1377 = vmatprep.subr.mxu0 0.0
        %1378 = vmatpush1.msra.mxu0 0.0
        %1379 = vmatprep.subr.mxu0 0.0
        %1380 = vmatpush1.msra.mxu0 0.0
        %1381 = vmatprep.subr.mxu0 0.0
        %1382 = vmatpush1.msra.mxu0 0.0
        %1383 = vmatprep.subr.mxu0 0.0
        %1384 = vmatpush1.msra.mxu0 0.0
        %1385 = vmatprep.subr.mxu0 0.0
        %1386 = vmatpush1.msra.mxu0 0.0
        %1387 = vmatprep.subr.mxu0 0.0
        %1388 = vmatpush1.msra.mxu0 0.0
        %1389 = vmatprep.subr.mxu0 0.0
        %1390 = vmatpush1.msra.mxu0 0.0
        %1391 = vmatprep.subr.mxu0 0.0
        %1392 = vmatpush1.msra.mxu0 0.0
        %1393 = vmatprep.mubr.f32.mxu0 0.0
        %1394 = vmatmul.mubr.f32.gmra.mrb[0].mxu0 %v1327
        %v1395 = vpop.f32.mrb[0].mxu0
        %v1396 = vadd.f32 0.0, %v1395
        %v1397 = vpop.f32.mrb[0].mxu0
        %1398 = vdwg.mxu0
        %v1400 = vsel %vm839, %v1167, 0
        %1402 = vmatprep.subr.mxu0 0.0
        %1403 = vmatpush1.msra.mxu0 %v835
        %1404 = vmatprep.subr.mxu0 0.0
        %1405 = vmatpush1.msra.mxu0 0.0
        %1406 = vmatprep.subr.mxu0 0.0
        %1407 = vmatpush1.msra.mxu0 0.0
        %1408 = vmatprep.subr.mxu0 0.0
        %1409 = vmatpush1.msra.mxu0 0.0
        %1410 = vmatprep.subr.mxu0 0.0
        %1411 = vmatpush1.msra.mxu0 0.0
        %1412 = vmatprep.subr.mxu0 0.0
        %1413 = vmatpush1.msra.mxu0 0.0
        %1414 = vmatprep.subr.mxu0 0.0
        %1415 = vmatpush1.msra.mxu0 0.0
        %1416 = vmatprep.subr.mxu0 0.0
        %1417 = vmatpush1.msra.mxu0 0.0
        %1418 = vmatprep.subr.mxu0 0.0
        %1419 = vmatpush1.msra.mxu0 0.0
        %1420 = vmatprep.subr.mxu0 0.0
        %1421 = vmatpush1.msra.mxu0 0.0
        %1422 = vmatprep.subr.mxu0 0.0
        %1423 = vmatpush1.msra.mxu0 0.0
        %1424 = vmatprep.subr.mxu0 0.0
        %1425 = vmatpush1.msra.mxu0 0.0
        %1426 = vmatprep.subr.mxu0 0.0
        %1427 = vmatpush1.msra.mxu0 0.0
        %1428 = vmatprep.subr.mxu0 0.0
        %1429 = vmatpush1.msra.mxu0 0.0
        %1430 = vmatprep.subr.mxu0 0.0
        %1431 = vmatpush1.msra.mxu0 0.0
        %1432 = vmatprep.subr.mxu0 0.0
        %1433 = vmatpush1.msra.mxu0 0.0
        %1434 = vmatprep.subr.mxu0 0.0
        %1435 = vmatpush1.msra.mxu0 0.0
        %1436 = vmatprep.subr.mxu0 0.0
        %1437 = vmatpush1.msra.mxu0 0.0
        %1438 = vmatprep.subr.mxu0 0.0
        %1439 = vmatpush1.msra.mxu0 0.0
        %1440 = vmatprep.subr.mxu0 0.0
        %1441 = vmatpush1.msra.mxu0 0.0
        %1442 = vmatprep.subr.mxu0 0.0
        %1443 = vmatpush1.msra.mxu0 0.0
        %1444 = vmatprep.subr.mxu0 0.0
        %1445 = vmatpush1.msra.mxu0 0.0
        %1446 = vmatprep.subr.mxu0 0.0
        %1447 = vmatpush1.msra.mxu0 0.0
        %1448 = vmatprep.subr.mxu0 0.0
        %1449 = vmatpush1.msra.mxu0 0.0
        %1450 = vmatprep.subr.mxu0 0.0
        %1451 = vmatpush1.msra.mxu0 0.0
        %1452 = vmatprep.subr.mxu0 0.0
        %1453 = vmatpush1.msra.mxu0 0.0
        %1454 = vmatprep.subr.mxu0 0.0
        %1455 = vmatpush1.msra.mxu0 0.0
        %1456 = vmatprep.subr.mxu0 0.0
        %1457 = vmatpush1.msra.mxu0 0.0
        %1458 = vmatprep.subr.mxu0 0.0
        %1459 = vmatpush1.msra.mxu0 0.0
        %1460 = vmatprep.subr.mxu0 0.0
        %1461 = vmatpush1.msra.mxu0 0.0
        %1462 = vmatprep.subr.mxu0 0.0
        %1463 = vmatpush1.msra.mxu0 0.0
        %1464 = vmatprep.subr.mxu0 0.0
        %1465 = vmatpush1.msra.mxu0 0.0
        %1466 = vmatprep.mubr.f32.mxu0 0.0
        %1467 = vmatmul.mubr.f32.gmra.mrb[0].mxu0 %v1400
        %v1468 = vpop.f32.mrb[0].mxu0
        %v1469 = vadd.f32 0.0, %v1468
        %v1470 = vpop.f32.mrb[0].mxu0
        %1471 = vdwg.mxu0
        %v1472 = vrcp.pop %v1170
        %v1473 = vmul.f32 %v1250, %v1472
        %v1474 = vrcp.pop %v1173
        %v1475 = vmul.f32 %v1323, %v1474
        %v1476 = vrcp.pop %v1176
        %v1477 = vmul.f32 %v1396, %v1476
        %v1478 = vrcp.pop %v1179
        %v1479 = vmul.f32 %v1469, %v1478
        %v1480 = vld [vmem:[#allocation8] sm:$0xff]
        %1481 = vrot.lane.b32.xlu0 %v610, 120
        %v1482 = vpop.permute.xlu0 %1481
        %1483 = vrot.lane.b32.xlu0 %v715, 120
        %v1484 = vpop.permute.xlu0 %1483
        %v1485 = vsel %vm839, %v1482, 0
        %v1487 = vsel %vm839, %v1484, 0
        %1489 = vmatprep.subr.mxu0 0.0
        %1490 = vmatpush1.xpose.msra.mxu0 %v1487
        %1491 = vmatprep.subr.mxu0 0.0
        %1492 = vmatpush1.xpose.msra.mxu0 0.0
        %1493 = vmatprep.subr.mxu0 0.0
        %1494 = vmatpush1.xpose.msra.mxu0 0.0
        %1495 = vmatprep.subr.mxu0 0.0
        %1496 = vmatpush1.xpose.msra.mxu0 0.0
        %1497 = vmatprep.subr.mxu0 0.0
        %1498 = vmatpush1.xpose.msra.mxu0 0.0
        %1499 = vmatprep.subr.mxu0 0.0
        %1500 = vmatpush1.xpose.msra.mxu0 0.0
        %1501 = vmatprep.subr.mxu0 0.0
        %1502 = vmatpush1.xpose.msra.mxu0 0.0
        %1503 = vmatprep.subr.mxu0 0.0
        %1504 = vmatpush1.xpose.msra.mxu0 0.0
        %1505 = vmatprep.subr.mxu0 0.0
        %1506 = vmatpush1.xpose.msra.mxu0 0.0
        %1507 = vmatprep.subr.mxu0 0.0
        %1508 = vmatpush1.xpose.msra.mxu0 0.0
        %1509 = vmatprep.subr.mxu0 0.0
        %1510 = vmatpush1.xpose.msra.mxu0 0.0
        %1511 = vmatprep.subr.mxu0 0.0
        %1512 = vmatpush1.xpose.msra.mxu0 0.0
        %1513 = vmatprep.subr.mxu0 0.0
        %1514 = vmatpush1.xpose.msra.mxu0 0.0
        %1515 = vmatprep.subr.mxu0 0.0
        %1516 = vmatpush1.xpose.msra.mxu0 0.0
        %1517 = vmatprep.subr.mxu0 0.0
        %1518 = vmatpush1.xpose.msra.mxu0 0.0
        %1519 = vmatprep.subr.mxu0 0.0
        %1520 = vmatpush1.xpose.msra.mxu0 0.0
        %1521 = vmatprep.subr.mxu0 0.0
        %1522 = vmatpush1.xpose.msra.mxu0 0.0
        %1523 = vmatprep.subr.mxu0 0.0
        %1524 = vmatpush1.xpose.msra.mxu0 0.0
        %1525 = vmatprep.subr.mxu0 0.0
        %1526 = vmatpush1.xpose.msra.mxu0 0.0
        %1527 = vmatprep.subr.mxu0 0.0
        %1528 = vmatpush1.xpose.msra.mxu0 0.0
        %1529 = vmatprep.subr.mxu0 0.0
        %1530 = vmatpush1.xpose.msra.mxu0 0.0
        %1531 = vmatprep.subr.mxu0 0.0
        %1532 = vmatpush1.xpose.msra.mxu0 0.0
        %1533 = vmatprep.subr.mxu0 0.0
        %1534 = vmatpush1.xpose.msra.mxu0 0.0
        %1535 = vmatprep.subr.mxu0 0.0
        %1536 = vmatpush1.xpose.msra.mxu0 0.0
        %1537 = vmatprep.subr.mxu0 0.0
        %1538 = vmatpush1.xpose.msra.mxu0 0.0
        %1539 = vmatprep.subr.mxu0 0.0
        %1540 = vmatpush1.xpose.msra.mxu0 0.0
        %1541 = vmatprep.subr.mxu0 0.0
        %1542 = vmatpush1.xpose.msra.mxu0 0.0
        %1543 = vmatprep.subr.mxu0 0.0
        %1544 = vmatpush1.xpose.msra.mxu0 0.0
        %1545 = vmatprep.subr.mxu0 0.0
        %1546 = vmatpush1.xpose.msra.mxu0 0.0
        %1547 = vmatprep.subr.mxu0 0.0
        %1548 = vmatpush1.xpose.msra.mxu0 0.0
        %1549 = vmatprep.subr.mxu0 0.0
        %1550 = vmatpush1.xpose.msra.mxu0 0.0
        %1551 = vmatprep.subr.mxu0 0.0
        %1552 = vmatpush1.xpose.msra.mxu0 0.0
        %1553 = vmatprep.mubr.f32.mxu0 0.0
        %1554 = vmatmul.mubr.f32.gmra.mrb[0].mxu0 %v1485
        %v1555 = vpop.f32.mrb[0].mxu0
        %v1556 = vadd.f32 0.0, %v1555
        %v1557 = vpop.f32.mrb[0].mxu0
        %1558 = vdwg.mxu0
        %1559 = vrot.lane.b32.xlu0 %v615, 120
        %v1560 = vpop.permute.xlu0 %1559
        %1561 = vrot.lane.b32.xlu0 %v720, 120
        %v1562 = vpop.permute.xlu0 %1561
        %v1563 = vsel %vm839, %v1560, 0
        %v1565 = vsel %vm839, %v1562, 0
        %1567 = vmatprep.subr.mxu0 0.0
        %1568 = vmatpush1.xpose.msra.mxu0 %v1565
        %1569 = vmatprep.subr.mxu0 0.0
        %1570 = vmatpush1.xpose.msra.mxu0 0.0
        %1571 = vmatprep.subr.mxu0 0.0
        %1572 = vmatpush1.xpose.msra.mxu0 0.0
        %1573 = vmatprep.subr.mxu0 0.0
        %1574 = vmatpush1.xpose.msra.mxu0 0.0
        %1575 = vmatprep.subr.mxu0 0.0
        %1576 = vmatpush1.xpose.msra.mxu0 0.0
        %1577 = vmatprep.subr.mxu0 0.0
        %1578 = vmatpush1.xpose.msra.mxu0 0.0
        %1579 = vmatprep.subr.mxu0 0.0
        %1580 = vmatpush1.xpose.msra.mxu0 0.0
        %1581 = vmatprep.subr.mxu0 0.0
        %1582 = vmatpush1.xpose.msra.mxu0 0.0
        %1583 = vmatprep.subr.mxu0 0.0
        %1584 = vmatpush1.xpose.msra.mxu0 0.0
        %1585 = vmatprep.subr.mxu0 0.0
        %1586 = vmatpush1.xpose.msra.mxu0 0.0
        %1587 = vmatprep.subr.mxu0 0.0
        %1588 = vmatpush1.xpose.msra.mxu0 0.0
        %1589 = vmatprep.subr.mxu0 0.0
        %1590 = vmatpush1.xpose.msra.mxu0 0.0
        %1591 = vmatprep.subr.mxu0 0.0
        %1592 = vmatpush1.xpose.msra.mxu0 0.0
        %1593 = vmatprep.subr.mxu0 0.0
        %1594 = vmatpush1.xpose.msra.mxu0 0.0
        %1595 = vmatprep.subr.mxu0 0.0
        %1596 = vmatpush1.xpose.msra.mxu0 0.0
        %1597 = vmatprep.subr.mxu0 0.0
        %1598 = vmatpush1.xpose.msra.mxu0 0.0
        %1599 = vmatprep.subr.mxu0 0.0
        %1600 = vmatpush1.xpose.msra.mxu0 0.0
        %1601 = vmatprep.subr.mxu0 0.0
        %1602 = vmatpush1.xpose.msra.mxu0 0.0
        %1603 = vmatprep.subr.mxu0 0.0
        %1604 = vmatpush1.xpose.msra.mxu0 0.0
        %1605 = vmatprep.subr.mxu0 0.0
        %1606 = vmatpush1.xpose.msra.mxu0 0.0
        %1607 = vmatprep.subr.mxu0 0.0
        %1608 = vmatpush1.xpose.msra.mxu0 0.0
        %1609 = vmatprep.subr.mxu0 0.0
        %1610 = vmatpush1.xpose.msra.mxu0 0.0
        %1611 = vmatprep.subr.mxu0 0.0
        %1612 = vmatpush1.xpose.msra.mxu0 0.0
        %1613 = vmatprep.subr.mxu0 0.0
        %1614 = vmatpush1.xpose.msra.mxu0 0.0
        %1615 = vmatprep.subr.mxu0 0.0
        %1616 = vmatpush1.xpose.msra.mxu0 0.0
        %1617 = vmatprep.subr.mxu0 0.0
        %1618 = vmatpush1.xpose.msra.mxu0 0.0
        %1619 = vmatprep.subr.mxu0 0.0
        %1620 = vmatpush1.xpose.msra.mxu0 0.0
        %1621 = vmatprep.subr.mxu0 0.0
        %1622 = vmatpush1.xpose.msra.mxu0 0.0
        %1623 = vmatprep.subr.mxu0 0.0
        %1624 = vmatpush1.xpose.msra.mxu0 0.0
        %1625 = vmatprep.subr.mxu0 0.0
        %1626 = vmatpush1.xpose.msra.mxu0 0.0
        %1627 = vmatprep.subr.mxu0 0.0
        %1628 = vmatpush1.xpose.msra.mxu0 0.0
        %1629 = vmatprep.subr.mxu0 0.0
        %1630 = vmatpush1.xpose.msra.mxu0 0.0
        %1631 = vmatprep.mubr.f32.mxu0 0.0
        %1632 = vmatmul.mubr.f32.gmra.mrb[0].mxu0 %v1563
        %v1633 = vpop.f32.mrb[0].mxu0
        %v1634 = vadd.f32 0.0, %v1633
        %v1635 = vpop.f32.mrb[0].mxu0
        %1636 = vdwg.mxu0
        %1637 = vrot.lane.b32.xlu0 %v620, 120
        %v1638 = vpop.permute.xlu0 %1637
        %1639 = vrot.lane.b32.xlu0 %v725, 120
        %v1640 = vpop.permute.xlu0 %1639
        %v1641 = vsel %vm839, %v1638, 0
        %v1643 = vsel %vm839, %v1640, 0
        %1645 = vmatprep.subr.mxu0 0.0
        %1646 = vmatpush1.xpose.msra.mxu0 %v1643
        %1647 = vmatprep.subr.mxu0 0.0
        %1648 = vmatpush1.xpose.msra.mxu0 0.0
        %1649 = vmatprep.subr.mxu0 0.0
        %1650 = vmatpush1.xpose.msra.mxu0 0.0
        %1651 = vmatprep.subr.mxu0 0.0
        %1652 = vmatpush1.xpose.msra.mxu0 0.0
        %1653 = vmatprep.subr.mxu0 0.0
        %1654 = vmatpush1.xpose.msra.mxu0 0.0
        %1655 = vmatprep.subr.mxu0 0.0
        %1656 = vmatpush1.xpose.msra.mxu0 0.0
        %1657 = vmatprep.subr.mxu0 0.0
        %1658 = vmatpush1.xpose.msra.mxu0 0.0
        %1659 = vmatprep.subr.mxu0 0.0
        %1660 = vmatpush1.xpose.msra.mxu0 0.0
        %1661 = vmatprep.subr.mxu0 0.0
        %1662 = vmatpush1.xpose.msra.mxu0 0.0
        %1663 = vmatprep.subr.mxu0 0.0
        %1664 = vmatpush1.xpose.msra.mxu0 0.0
        %1665 = vmatprep.subr.mxu0 0.0
        %1666 = vmatpush1.xpose.msra.mxu0 0.0
        %1667 = vmatprep.subr.mxu0 0.0
        %1668 = vmatpush1.xpose.msra.mxu0 0.0
        %1669 = vmatprep.subr.mxu0 0.0
        %1670 = vmatpush1.xpose.msra.mxu0 0.0
        %1671 = vmatprep.subr.mxu0 0.0
        %1672 = vmatpush1.xpose.msra.mxu0 0.0
        %1673 = vmatprep.subr.mxu0 0.0
        %1674 = vmatpush1.xpose.msra.mxu0 0.0
        %1675 = vmatprep.subr.mxu0 0.0
        %1676 = vmatpush1.xpose.msra.mxu0 0.0
        %1677 = vmatprep.subr.mxu0 0.0
        %1678 = vmatpush1.xpose.msra.mxu0 0.0
        %1679 = vmatprep.subr.mxu0 0.0
        %1680 = vmatpush1.xpose.msra.mxu0 0.0
        %1681 = vmatprep.subr.mxu0 0.0
        %1682 = vmatpush1.xpose.msra.mxu0 0.0
        %1683 = vmatprep.subr.mxu0 0.0
        %1684 = vmatpush1.xpose.msra.mxu0 0.0
        %1685 = vmatprep.subr.mxu0 0.0
        %1686 = vmatpush1.xpose.msra.mxu0 0.0
        %1687 = vmatprep.subr.mxu0 0.0
        %1688 = vmatpush1.xpose.msra.mxu0 0.0
        %1689 = vmatprep.subr.mxu0 0.0
        %1690 = vmatpush1.xpose.msra.mxu0 0.0
        %1691 = vmatprep.subr.mxu0 0.0
        %1692 = vmatpush1.xpose.msra.mxu0 0.0
        %1693 = vmatprep.subr.mxu0 0.0
        %1694 = vmatpush1.xpose.msra.mxu0 0.0
        %1695 = vmatprep.subr.mxu0 0.0
        %1696 = vmatpush1.xpose.msra.mxu0 0.0
        %1697 = vmatprep.subr.mxu0 0.0
        %1698 = vmatpush1.xpose.msra.mxu0 0.0
        %1699 = vmatprep.subr.mxu0 0.0
        %1700 = vmatpush1.xpose.msra.mxu0 0.0
        %1701 = vmatprep.subr.mxu0 0.0
        %1702 = vmatpush1.xpose.msra.mxu0 0.0
        %1703 = vmatprep.subr.mxu0 0.0
        %1704 = vmatpush1.xpose.msra.mxu0 0.0
        %1705 = vmatprep.subr.mxu0 0.0
        %1706 = vmatpush1.xpose.msra.mxu0 0.0
        %1707 = vmatprep.subr.mxu0 0.0
        %1708 = vmatpush1.xpose.msra.mxu0 0.0
        %1709 = vmatprep.mubr.f32.mxu0 0.0
        %1710 = vmatmul.mubr.f32.gmra.mrb[0].mxu0 %v1641
        %v1711 = vpop.f32.mrb[0].mxu0
        %v1712 = vadd.f32 0.0, %v1711
        %v1713 = vpop.f32.mrb[0].mxu0
        %1714 = vdwg.mxu0
        %1715 = vrot.lane.b32.xlu0 %v625, 120
        %v1716 = vpop.permute.xlu0 %1715
        %1717 = vrot.lane.b32.xlu0 %v730, 120
        %v1718 = vpop.permute.xlu0 %1717
        %v1719 = vsel %vm839, %v1716, 0
        %v1721 = vsel %vm839, %v1718, 0
        %1723 = vmatprep.subr.mxu0 0.0
        %1724 = vmatpush1.xpose.msra.mxu0 %v1721
        %1725 = vmatprep.subr.mxu0 0.0
        %1726 = vmatpush1.xpose.msra.mxu0 0.0
        %1727 = vmatprep.subr.mxu0 0.0
        %1728 = vmatpush1.xpose.msra.mxu0 0.0
        %1729 = vmatprep.subr.mxu0 0.0
        %1730 = vmatpush1.xpose.msra.mxu0 0.0
        %1731 = vmatprep.subr.mxu0 0.0
        %1732 = vmatpush1.xpose.msra.mxu0 0.0
        %1733 = vmatprep.subr.mxu0 0.0
        %1734 = vmatpush1.xpose.msra.mxu0 0.0
        %1735 = vmatprep.subr.mxu0 0.0
        %1736 = vmatpush1.xpose.msra.mxu0 0.0
        %1737 = vmatprep.subr.mxu0 0.0
        %1738 = vmatpush1.xpose.msra.mxu0 0.0
        %1739 = vmatprep.subr.mxu0 0.0
        %1740 = vmatpush1.xpose.msra.mxu0 0.0
        %1741 = vmatprep.subr.mxu0 0.0
        %1742 = vmatpush1.xpose.msra.mxu0 0.0
        %1743 = vmatprep.subr.mxu0 0.0
        %1744 = vmatpush1.xpose.msra.mxu0 0.0
        %1745 = vmatprep.subr.mxu0 0.0
        %1746 = vmatpush1.xpose.msra.mxu0 0.0
        %1747 = vmatprep.subr.mxu0 0.0
        %1748 = vmatpush1.xpose.msra.mxu0 0.0
        %1749 = vmatprep.subr.mxu0 0.0
        %1750 = vmatpush1.xpose.msra.mxu0 0.0
        %1751 = vmatprep.subr.mxu0 0.0
        %1752 = vmatpush1.xpose.msra.mxu0 0.0
        %1753 = vmatprep.subr.mxu0 0.0
        %1754 = vmatpush1.xpose.msra.mxu0 0.0
        %1755 = vmatprep.subr.mxu0 0.0
        %1756 = vmatpush1.xpose.msra.mxu0 0.0
        %1757 = vmatprep.subr.mxu0 0.0
        %1758 = vmatpush1.xpose.msra.mxu0 0.0
        %1759 = vmatprep.subr.mxu0 0.0
        %1760 = vmatpush1.xpose.msra.mxu0 0.0
        %1761 = vmatprep.subr.mxu0 0.0
        %1762 = vmatpush1.xpose.msra.mxu0 0.0
        %1763 = vmatprep.subr.mxu0 0.0
        %1764 = vmatpush1.xpose.msra.mxu0 0.0
        %1765 = vmatprep.subr.mxu0 0.0
        %1766 = vmatpush1.xpose.msra.mxu0 0.0
        %1767 = vmatprep.subr.mxu0 0.0
        %1768 = vmatpush1.xpose.msra.mxu0 0.0
        %1769 = vmatprep.subr.mxu0 0.0
        %1770 = vmatpush1.xpose.msra.mxu0 0.0
        %1771 = vmatprep.subr.mxu0 0.0
        %1772 = vmatpush1.xpose.msra.mxu0 0.0
        %1773 = vmatprep.subr.mxu0 0.0
        %1774 = vmatpush1.xpose.msra.mxu0 0.0
        %1775 = vmatprep.subr.mxu0 0.0
        %1776 = vmatpush1.xpose.msra.mxu0 0.0
        %1777 = vmatprep.subr.mxu0 0.0
        %1778 = vmatpush1.xpose.msra.mxu0 0.0
        %1779 = vmatprep.subr.mxu0 0.0
        %1780 = vmatpush1.xpose.msra.mxu0 0.0
        %1781 = vmatprep.subr.mxu0 0.0
        %1782 = vmatpush1.xpose.msra.mxu0 0.0
        %1783 = vmatprep.subr.mxu0 0.0
        %1784 = vmatpush1.xpose.msra.mxu0 0.0
        %1785 = vmatprep.subr.mxu0 0.0
        %1786 = vmatpush1.xpose.msra.mxu0 0.0
        %1787 = vmatprep.mubr.f32.mxu0 0.0
        %1788 = vmatmul.mubr.f32.gmra.mrb[0].mxu0 %v1719
        %v1789 = vpop.f32.mrb[0].mxu0
        %v1790 = vadd.f32 0.0, %v1789
        %v1791 = vpop.f32.mrb[0].mxu0
        %1792 = vdwg.mxu0
        %v1793 = vsel %vm839, %v1556, -inf
        %1794 = vmax.xlane.f32.xlu0 %v1793
        %v1795 = vpop.xlane.xlu0 %1794
        %v1796 = vsel %vm839, %v1634, -inf
        %1797 = vmax.xlane.f32.xlu0 %v1796
        %v1798 = vpop.xlane.xlu0 %1797
        %v1799 = vsel %vm839, %v1712, -inf
        %1800 = vmax.xlane.f32.xlu0 %v1799
        %v1801 = vpop.xlane.xlu0 %1800
        %v1802 = vsel %vm839, %v1790, -inf
        %1803 = vmax.xlane.f32.xlu0 %v1802
        %v1804 = vpop.xlane.xlu0 %1803
        %v1805 = vsub.f32 %v1556, %v1795
        %v1806 = vsub.f32 %v1634, %v1798
        %v1807 = vsub.f32 %v1712, %v1801
        %v1808 = vsub.f32 %v1790, %v1804
        %v1809 = vmul.f32 %v1805, 1.442695
        %v1810 = vpow.pop %v1809
        %v1811 = vmul.f32 %v1806, 1.442695
        %v1812 = vpow.pop %v1811
        %v1813 = vmul.f32 %v1807, 1.442695
        %v1814 = vpow.pop %v1813
        %v1815 = vmul.f32 %v1808, 1.442695
        %v1816 = vpow.pop %v1815
        %v1817 = vsel %vm839, %v1810, 0.0
        %1818 = vadd.xlane.f32.xlu0 %v1817
        %v1819 = vpop.xlane.xlu0 %1818
        %v1820 = vsel %vm839, %v1812, 0.0
        %1821 = vadd.xlane.f32.xlu0 %v1820
        %v1822 = vpop.xlane.xlu0 %1821
        %v1823 = vsel %vm839, %v1814, 0.0
        %1824 = vadd.xlane.f32.xlu0 %v1823
        %v1825 = vpop.xlane.xlu0 %1824
        %v1826 = vsel %vm839, %v1816, 0.0
        %1827 = vadd.xlane.f32.xlu0 %v1826
        %v1828 = vpop.xlane.xlu0 %1827
        %1830 = vrot.lane.b32.xlu0 %v820, 120
        %v1831 = vpop.permute.xlu0 %1830
        %v1834 = vsel %vm839, %v1810, 0
        %1836 = vmatprep.subr.mxu0 0.0
        %1837 = vmatpush1.msra.mxu0 %v1831
        %1838 = vmatprep.subr.mxu0 0.0
        %1839 = vmatpush1.msra.mxu0 0.0
        %1840 = vmatprep.subr.mxu0 0.0
        %1841 = vmatpush1.msra.mxu0 0.0
        %1842 = vmatprep.subr.mxu0 0.0
        %1843 = vmatpush1.msra.mxu0 0.0
        %1844 = vmatprep.subr.mxu0 0.0
        %1845 = vmatpush1.msra.mxu0 0.0
        %1846 = vmatprep.subr.mxu0 0.0
        %1847 = vmatpush1.msra.mxu0 0.0
        %1848 = vmatprep.subr.mxu0 0.0
        %1849 = vmatpush1.msra.mxu0 0.0
        %1850 = vmatprep.subr.mxu0 0.0
        %1851 = vmatpush1.msra.mxu0 0.0
        %1852 = vmatprep.subr.mxu0 0.0
        %1853 = vmatpush1.msra.mxu0 0.0
        %1854 = vmatprep.subr.mxu0 0.0
        %1855 = vmatpush1.msra.mxu0 0.0
        %1856 = vmatprep.subr.mxu0 0.0
        %1857 = vmatpush1.msra.mxu0 0.0
        %1858 = vmatprep.subr.mxu0 0.0
        %1859 = vmatpush1.msra.mxu0 0.0
        %1860 = vmatprep.subr.mxu0 0.0
        %1861 = vmatpush1.msra.mxu0 0.0
        %1862 = vmatprep.subr.mxu0 0.0
        %1863 = vmatpush1.msra.mxu0 0.0
        %1864 = vmatprep.subr.mxu0 0.0
        %1865 = vmatpush1.msra.mxu0 0.0
        %1866 = vmatprep.subr.mxu0 0.0
        %1867 = vmatpush1.msra.mxu0 0.0
        %1868 = vmatprep.subr.mxu0 0.0
        %1869 = vmatpush1.msra.mxu0 0.0
        %1870 = vmatprep.subr.mxu0 0.0
        %1871 = vmatpush1.msra.mxu0 0.0
        %1872 = vmatprep.subr.mxu0 0.0
        %1873 = vmatpush1.msra.mxu0 0.0
        %1874 = vmatprep.subr.mxu0 0.0
        %1875 = vmatpush1.msra.mxu0 0.0
        %1876 = vmatprep.subr.mxu0 0.0
        %1877 = vmatpush1.msra.mxu0 0.0
        %1878 = vmatprep.subr.mxu0 0.0
        %1879 = vmatpush1.msra.mxu0 0.0
        %1880 = vmatprep.subr.mxu0 0.0
        %1881 = vmatpush1.msra.mxu0 0.0
        %1882 = vmatprep.subr.mxu0 0.0
        %1883 = vmatpush1.msra.mxu0 0.0
        %1884 = vmatprep.subr.mxu0 0.0
        %1885 = vmatpush1.msra.mxu0 0.0
        %1886 = vmatprep.subr.mxu0 0.0
        %1887 = vmatpush1.msra.mxu0 0.0
        %1888 = vmatprep.subr.mxu0 0.0
        %1889 = vmatpush1.msra.mxu0 0.0
        %1890 = vmatprep.subr.mxu0 0.0
        %1891 = vmatpush1.msra.mxu0 0.0
        %1892 = vmatprep.subr.mxu0 0.0
        %1893 = vmatpush1.msra.mxu0 0.0
        %1894 = vmatprep.subr.mxu0 0.0
        %1895 = vmatpush1.msra.mxu0 0.0
        %1896 = vmatprep.subr.mxu0 0.0
        %1897 = vmatpush1.msra.mxu0 0.0
        %1898 = vmatprep.subr.mxu0 0.0
        %1899 = vmatpush1.msra.mxu0 0.0
        %1900 = vmatprep.mubr.f32.mxu0 0.0
        %1901 = vmatmul.mubr.f32.gmra.mrb[0].mxu0 %v1834
        %v1902 = vpop.f32.mrb[0].mxu0
        %v1903 = vadd.f32 0.0, %v1902
        %v1904 = vpop.f32.mrb[0].mxu0
        %1905 = vdwg.mxu0
        %1907 = vrot.lane.b32.xlu0 %v825, 120
        %v1908 = vpop.permute.xlu0 %1907
        %v1911 = vsel %vm839, %v1812, 0
        %1913 = vmatprep.subr.mxu0 0.0
        %1914 = vmatpush1.msra.mxu0 %v1908
        %1915 = vmatprep.subr.mxu0 0.0
        %1916 = vmatpush1.msra.mxu0 0.0
        %1917 = vmatprep.subr.mxu0 0.0
        %1918 = vmatpush1.msra.mxu0 0.0
        %1919 = vmatprep.subr.mxu0 0.0
        %1920 = vmatpush1.msra.mxu0 0.0
        %1921 = vmatprep.subr.mxu0 0.0
        %1922 = vmatpush1.msra.mxu0 0.0
        %1923 = vmatprep.subr.mxu0 0.0
        %1924 = vmatpush1.msra.mxu0 0.0
        %1925 = vmatprep.subr.mxu0 0.0
        %1926 = vmatpush1.msra.mxu0 0.0
        %1927 = vmatprep.subr.mxu0 0.0
        %1928 = vmatpush1.msra.mxu0 0.0
        %1929 = vmatprep.subr.mxu0 0.0
        %1930 = vmatpush1.msra.mxu0 0.0
        %1931 = vmatprep.subr.mxu0 0.0
        %1932 = vmatpush1.msra.mxu0 0.0
        %1933 = vmatprep.subr.mxu0 0.0
        %1934 = vmatpush1.msra.mxu0 0.0
        %1935 = vmatprep.subr.mxu0 0.0
        %1936 = vmatpush1.msra.mxu0 0.0
        %1937 = vmatprep.subr.mxu0 0.0
        %1938 = vmatpush1.msra.mxu0 0.0
        %1939 = vmatprep.subr.mxu0 0.0
        %1940 = vmatpush1.msra.mxu0 0.0
        %1941 = vmatprep.subr.mxu0 0.0
        %1942 = vmatpush1.msra.mxu0 0.0
        %1943 = vmatprep.subr.mxu0 0.0
        %1944 = vmatpush1.msra.mxu0 0.0
        %1945 = vmatprep.subr.mxu0 0.0
        %1946 = vmatpush1.msra.mxu0 0.0
        %1947 = vmatprep.subr.mxu0 0.0
        %1948 = vmatpush1.msra.mxu0 0.0
        %1949 = vmatprep.subr.mxu0 0.0
        %1950 = vmatpush1.msra.mxu0 0.0
        %1951 = vmatprep.subr.mxu0 0.0
        %1952 = vmatpush1.msra.mxu0 0.0
        %1953 = vmatprep.subr.mxu0 0.0
        %1954 = vmatpush1.msra.mxu0 0.0
        %1955 = vmatprep.subr.mxu0 0.0
        %1956 = vmatpush1.msra.mxu0 0.0
        %1957 = vmatprep.subr.mxu0 0.0
        %1958 = vmatpush1.msra.mxu0 0.0
        %1959 = vmatprep.subr.mxu0 0.0
        %1960 = vmatpush1.msra.mxu0 0.0
        %1961 = vmatprep.subr.mxu0 0.0
        %1962 = vmatpush1.msra.mxu0 0.0
        %1963 = vmatprep.subr.mxu0 0.0
        %1964 = vmatpush1.msra.mxu0 0.0
        %1965 = vmatprep.subr.mxu0 0.0
        %1966 = vmatpush1.msra.mxu0 0.0
        %1967 = vmatprep.subr.mxu0 0.0
        %1968 = vmatpush1.msra.mxu0 0.0
        %1969 = vmatprep.subr.mxu0 0.0
        %1970 = vmatpush1.msra.mxu0 0.0
        %1971 = vmatprep.subr.mxu0 0.0
        %1972 = vmatpush1.msra.mxu0 0.0
        %1973 = vmatprep.subr.mxu0 0.0
        %1974 = vmatpush1.msra.mxu0 0.0
        %1975 = vmatprep.subr.mxu0 0.0
        %1976 = vmatpush1.msra.mxu0 0.0
        %1977 = vmatprep.mubr.f32.mxu0 0.0
        %1978 = vmatmul.mubr.f32.gmra.mrb[0].mxu0 %v1911
        %v1979 = vpop.f32.mrb[0].mxu0
        %v1980 = vadd.f32 0.0, %v1979
        %v1981 = vpop.f32.mrb[0].mxu0
        %1982 = vdwg.mxu0
        %1984 = vrot.lane.b32.xlu0 %v830, 120
        %v1985 = vpop.permute.xlu0 %1984
        %v1988 = vsel %vm839, %v1814, 0
        %1990 = vmatprep.subr.mxu0 0.0
        %1991 = vmatpush1.msra.mxu0 %v1985
        %1992 = vmatprep.subr.mxu0 0.0
        %1993 = vmatpush1.msra.mxu0 0.0
        %1994 = vmatprep.subr.mxu0 0.0
        %1995 = vmatpush1.msra.mxu0 0.0
        %1996 = vmatprep.subr.mxu0 0.0
        %1997 = vmatpush1.msra.mxu0 0.0
        %1998 = vmatprep.subr.mxu0 0.0
        %1999 = vmatpush1.msra.mxu0 0.0
        %2000 = vmatprep.subr.mxu0 0.0
        %2001 = vmatpush1.msra.mxu0 0.0
        %2002 = vmatprep.subr.mxu0 0.0
        %2003 = vmatpush1.msra.mxu0 0.0
        %2004 = vmatprep.subr.mxu0 0.0
        %2005 = vmatpush1.msra.mxu0 0.0
        %2006 = vmatprep.subr.mxu0 0.0
        %2007 = vmatpush1.msra.mxu0 0.0
        %2008 = vmatprep.subr.mxu0 0.0
        %2009 = vmatpush1.msra.mxu0 0.0
        %2010 = vmatprep.subr.mxu0 0.0
        %2011 = vmatpush1.msra.mxu0 0.0
        %2012 = vmatprep.subr.mxu0 0.0
        %2013 = vmatpush1.msra.mxu0 0.0
        %2014 = vmatprep.subr.mxu0 0.0
        %2015 = vmatpush1.msra.mxu0 0.0
        %2016 = vmatprep.subr.mxu0 0.0
        %2017 = vmatpush1.msra.mxu0 0.0
        %2018 = vmatprep.subr.mxu0 0.0
        %2019 = vmatpush1.msra.mxu0 0.0
        %2020 = vmatprep.subr.mxu0 0.0
        %2021 = vmatpush1.msra.mxu0 0.0
        %2022 = vmatprep.subr.mxu0 0.0
        %2023 = vmatpush1.msra.mxu0 0.0
        %2024 = vmatprep.subr.mxu0 0.0
        %2025 = vmatpush1.msra.mxu0 0.0
        %2026 = vmatprep.subr.mxu0 0.0
        %2027 = vmatpush1.msra.mxu0 0.0
        %2028 = vmatprep.subr.mxu0 0.0
        %2029 = vmatpush1.msra.mxu0 0.0
        %2030 = vmatprep.subr.mxu0 0.0
        %2031 = vmatpush1.msra.mxu0 0.0
        %2032 = vmatprep.subr.mxu0 0.0
        %2033 = vmatpush1.msra.mxu0 0.0
        %2034 = vmatprep.subr.mxu0 0.0
        %2035 = vmatpush1.msra.mxu0 0.0
        %2036 = vmatprep.subr.mxu0 0.0
        %2037 = vmatpush1.msra.mxu0 0.0
        %2038 = vmatprep.subr.mxu0 0.0
        %2039 = vmatpush1.msra.mxu0 0.0
        %2040 = vmatprep.subr.mxu0 0.0
        %2041 = vmatpush1.msra.mxu0 0.0
        %2042 = vmatprep.subr.mxu0 0.0
        %2043 = vmatpush1.msra.mxu0 0.0
        %2044 = vmatprep.subr.mxu0 0.0
        %2045 = vmatpush1.msra.mxu0 0.0
        %2046 = vmatprep.subr.mxu0 0.0
        %2047 = vmatpush1.msra.mxu0 0.0
        %2048 = vmatprep.subr.mxu0 0.0
        %2049 = vmatpush1.msra.mxu0 0.0
        %2050 = vmatprep.subr.mxu0 0.0
        %2051 = vmatpush1.msra.mxu0 0.0
        %2052 = vmatprep.subr.mxu0 0.0
        %2053 = vmatpush1.msra.mxu0 0.0
        %2054 = vmatprep.mubr.f32.mxu0 0.0
        %2055 = vmatmul.mubr.f32.gmra.mrb[0].mxu0 %v1988
        %v2056 = vpop.f32.mrb[0].mxu0
        %v2057 = vadd.f32 0.0, %v2056
        %v2058 = vpop.f32.mrb[0].mxu0
        %2059 = vdwg.mxu0
        %2061 = vrot.lane.b32.xlu0 %v835, 120
        %v2062 = vpop.permute.xlu0 %2061
        %v2065 = vsel %vm839, %v1816, 0
        %2067 = vmatprep.subr.mxu0 0.0
        %2068 = vmatpush1.msra.mxu0 %v2062
        %2069 = vmatprep.subr.mxu0 0.0
        %2070 = vmatpush1.msra.mxu0 0.0
        %2071 = vmatprep.subr.mxu0 0.0
        %2072 = vmatpush1.msra.mxu0 0.0
        %2073 = vmatprep.subr.mxu0 0.0
        %2074 = vmatpush1.msra.mxu0 0.0
        %2075 = vmatprep.subr.mxu0 0.0
        %2076 = vmatpush1.msra.mxu0 0.0
        %2077 = vmatprep.subr.mxu0 0.0
        %2078 = vmatpush1.msra.mxu0 0.0
        %2079 = vmatprep.subr.mxu0 0.0
        %2080 = vmatpush1.msra.mxu0 0.0
        %2081 = vmatprep.subr.mxu0 0.0
        %2082 = vmatpush1.msra.mxu0 0.0
        %2083 = vmatprep.subr.mxu0 0.0
        %2084 = vmatpush1.msra.mxu0 0.0
        %2085 = vmatprep.subr.mxu0 0.0
        %2086 = vmatpush1.msra.mxu0 0.0
        %2087 = vmatprep.subr.mxu0 0.0
        %2088 = vmatpush1.msra.mxu0 0.0
        %2089 = vmatprep.subr.mxu0 0.0
        %2090 = vmatpush1.msra.mxu0 0.0
        %2091 = vmatprep.subr.mxu0 0.0
        %2092 = vmatpush1.msra.mxu0 0.0
        %2093 = vmatprep.subr.mxu0 0.0
        %2094 = vmatpush1.msra.mxu0 0.0
        %2095 = vmatprep.subr.mxu0 0.0
        %2096 = vmatpush1.msra.mxu0 0.0
        %2097 = vmatprep.subr.mxu0 0.0
        %2098 = vmatpush1.msra.mxu0 0.0
        %2099 = vmatprep.subr.mxu0 0.0
        %2100 = vmatpush1.msra.mxu0 0.0
        %2101 = vmatprep.subr.mxu0 0.0
        %2102 = vmatpush1.msra.mxu0 0.0
        %2103 = vmatprep.subr.mxu0 0.0
        %2104 = vmatpush1.msra.mxu0 0.0
        %2105 = vmatprep.subr.mxu0 0.0
        %2106 = vmatpush1.msra.mxu0 0.0
        %2107 = vmatprep.subr.mxu0 0.0
        %2108 = vmatpush1.msra.mxu0 0.0
        %2109 = vmatprep.subr.mxu0 0.0
        %2110 = vmatpush1.msra.mxu0 0.0
        %2111 = vmatprep.subr.mxu0 0.0
        %2112 = vmatpush1.msra.mxu0 0.0
        %2113 = vmatprep.subr.mxu0 0.0
        %2114 = vmatpush1.msra.mxu0 0.0
        %2115 = vmatprep.subr.mxu0 0.0
        %2116 = vmatpush1.msra.mxu0 0.0
        %2117 = vmatprep.subr.mxu0 0.0
        %2118 = vmatpush1.msra.mxu0 0.0
        %2119 = vmatprep.subr.mxu0 0.0
        %2120 = vmatpush1.msra.mxu0 0.0
        %2121 = vmatprep.subr.mxu0 0.0
        %2122 = vmatpush1.msra.mxu0 0.0
        %2123 = vmatprep.subr.mxu0 0.0
        %2124 = vmatpush1.msra.mxu0 0.0
        %2125 = vmatprep.subr.mxu0 0.0
        %2126 = vmatpush1.msra.mxu0 0.0
        %2127 = vmatprep.subr.mxu0 0.0
        %2128 = vmatpush1.msra.mxu0 0.0
        %2129 = vmatprep.subr.mxu0 0.0
        %2130 = vmatpush1.msra.mxu0 0.0
        %2131 = vmatprep.mubr.f32.mxu0 0.0
        %2132 = vmatmul.mubr.f32.gmra.mrb[0].mxu0 %v2065
        %v2133 = vpop.f32.mrb[0].mxu0
        %v2134 = vadd.f32 0.0, %v2133
        %v2135 = vpop.f32.mrb[0].mxu0
        %2136 = vdwg.mxu0
        %v2137 = vrcp.pop %v1819
        %v2138 = vmul.f32 %v1903, %v2137
        %v2139 = vrcp.pop %v1822
        %v2140 = vmul.f32 %v1980, %v2139
        %v2141 = vrcp.pop %v1825
        %v2142 = vmul.f32 %v2057, %v2141
        %v2143 = vrcp.pop %v1828
        %v2144 = vmul.f32 %v2134, %v2143
        %v2145 = vld [vmem:[#allocation8 + $0x8] sm:$0xff]
        %v2147 = vsel %vm839, %v2138, 0
        %v2150 = vsel %vm839, %v2140, 0
        %v2153 = vsel %vm839, %v2142, 0
        %v2156 = vsel %vm839, %v2144, 0
        %2158 = vmatprep.subr.mxu0 0.0
        %2159 = vmatpush1.msra.mxu0 %v2145
        %2160 = vmatprep.subr.mxu0 0.0
        %2161 = vmatpush1.msra.mxu0 0.0
        %2162 = vmatprep.subr.mxu0 0.0
        %2163 = vmatpush1.msra.mxu0 0.0
        %2164 = vmatprep.subr.mxu0 0.0
        %2165 = vmatpush1.msra.mxu0 0.0
        %2166 = vmatprep.subr.mxu0 0.0
        %2167 = vmatpush1.msra.mxu0 0.0
        %2168 = vmatprep.subr.mxu0 0.0
        %2169 = vmatpush1.msra.mxu0 0.0
        %2170 = vmatprep.subr.mxu0 0.0
        %2171 = vmatpush1.msra.mxu0 0.0
        %2172 = vmatprep.subr.mxu0 0.0
        %2173 = vmatpush1.msra.mxu0 0.0
        %2174 = vmatprep.subr.mxu0 0.0
        %2175 = vmatpush1.msra.mxu0 0.0
        %2176 = vmatprep.subr.mxu0 0.0
        %2177 = vmatpush1.msra.mxu0 0.0
        %2178 = vmatprep.subr.mxu0 0.0
        %2179 = vmatpush1.msra.mxu0 0.0
        %2180 = vmatprep.subr.mxu0 0.0
        %2181 = vmatpush1.msra.mxu0 0.0
        %2182 = vmatprep.subr.mxu0 0.0
        %2183 = vmatpush1.msra.mxu0 0.0
        %2184 = vmatprep.subr.mxu0 0.0
        %2185 = vmatpush1.msra.mxu0 0.0
        %2186 = vmatprep.subr.mxu0 0.0
        %2187 = vmatpush1.msra.mxu0 0.0
        %2188 = vmatprep.subr.mxu0 0.0
        %2189 = vmatpush1.msra.mxu0 0.0
        %2190 = vmatprep.subr.mxu0 0.0
        %2191 = vmatpush1.msra.mxu0 0.0
        %2192 = vmatprep.subr.mxu0 0.0
        %2193 = vmatpush1.msra.mxu0 0.0
        %2194 = vmatprep.subr.mxu0 0.0
        %2195 = vmatpush1.msra.mxu0 0.0
        %2196 = vmatprep.subr.mxu0 0.0
        %2197 = vmatpush1.msra.mxu0 0.0
        %2198 = vmatprep.subr.mxu0 0.0
        %2199 = vmatpush1.msra.mxu0 0.0
        %2200 = vmatprep.subr.mxu0 0.0
        %2201 = vmatpush1.msra.mxu0 0.0
        %2202 = vmatprep.subr.mxu0 0.0
        %2203 = vmatpush1.msra.mxu0 0.0
        %2204 = vmatprep.subr.mxu0 0.0
        %2205 = vmatpush1.msra.mxu0 0.0
        %2206 = vmatprep.subr.mxu0 0.0
        %2207 = vmatpush1.msra.mxu0 0.0
        %2208 = vmatprep.subr.mxu0 0.0
        %2209 = vmatpush1.msra.mxu0 0.0
        %2210 = vmatprep.subr.mxu0 0.0
        %2211 = vmatpush1.msra.mxu0 0.0
        %2212 = vmatprep.subr.mxu0 0.0
        %2213 = vmatpush1.msra.mxu0 0.0
        %2214 = vmatprep.subr.mxu0 0.0
        %2215 = vmatpush1.msra.mxu0 0.0
        %2216 = vmatprep.subr.mxu0 0.0
        %2217 = vmatpush1.msra.mxu0 0.0
        %2218 = vmatprep.subr.mxu0 0.0
        %2219 = vmatpush1.msra.mxu0 0.0
        %2220 = vmatprep.subr.mxu0 0.0
        %2221 = vmatpush1.msra.mxu0 0.0
        %2222 = vmatprep.mubr.f32.mxu0 0.0
        %2223 = vmatmul.mubr.f32.gmra.mrb[0].mxu0 %v2147
        %v2224 = vpop.f32.mrb[0].mxu0
        %v2225 = vadd.f32 0.0, %v2224
        %v2226 = vpop.f32.mrb[0].mxu0
        %2227 = vmatprep.mubr.f32.mxu0 0.0
        %2228 = vmatmul.mubr.f32.gmra.mrb[0].mxu0 %v2150
        %v2229 = vpop.f32.mrb[0].mxu0
        %v2230 = vadd.f32 0.0, %v2229
        %v2231 = vpop.f32.mrb[0].mxu0
        %2232 = vmatprep.mubr.f32.mxu0 0.0
        %2233 = vmatmul.mubr.f32.gmra.mrb[0].mxu0 %v2153
        %v2234 = vpop.f32.mrb[0].mxu0
        %v2235 = vadd.f32 0.0, %v2234
        %v2236 = vpop.f32.mrb[0].mxu0
        %2237 = vmatprep.mubr.f32.mxu0 0.0
        %2238 = vmatmul.mubr.f32.gmra.mrb[0].mxu0 %v2156
        %v2239 = vpop.f32.mrb[0].mxu0
        %v2240 = vadd.f32 0.0, %v2239
        %v2241 = vpop.f32.mrb[0].mxu0
        %2242 = vdwg.mxu0
        %v2244 = vsel %vm839, %v1473, 0
        %v2247 = vsel %vm839, %v1475, 0
        %v2250 = vsel %vm839, %v1477, 0
        %v2253 = vsel %vm839, %v1479, 0
        %2255 = vmatprep.subr.mxu0 0.0
        %2256 = vmatpush1.msra.mxu0 %v1480
        %2257 = vmatprep.subr.mxu0 0.0
        %2258 = vmatpush1.msra.mxu0 0.0
        %2259 = vmatprep.subr.mxu0 0.0
        %2260 = vmatpush1.msra.mxu0 0.0
        %2261 = vmatprep.subr.mxu0 0.0
        %2262 = vmatpush1.msra.mxu0 0.0
        %2263 = vmatprep.subr.mxu0 0.0
        %2264 = vmatpush1.msra.mxu0 0.0
        %2265 = vmatprep.subr.mxu0 0.0
        %2266 = vmatpush1.msra.mxu0 0.0
        %2267 = vmatprep.subr.mxu0 0.0
        %2268 = vmatpush1.msra.mxu0 0.0
        %2269 = vmatprep.subr.mxu0 0.0
        %2270 = vmatpush1.msra.mxu0 0.0
        %2271 = vmatprep.subr.mxu0 0.0
        %2272 = vmatpush1.msra.mxu0 0.0
        %2273 = vmatprep.subr.mxu0 0.0
        %2274 = vmatpush1.msra.mxu0 0.0
        %2275 = vmatprep.subr.mxu0 0.0
        %2276 = vmatpush1.msra.mxu0 0.0
        %2277 = vmatprep.subr.mxu0 0.0
        %2278 = vmatpush1.msra.mxu0 0.0
        %2279 = vmatprep.subr.mxu0 0.0
        %2280 = vmatpush1.msra.mxu0 0.0
        %2281 = vmatprep.subr.mxu0 0.0
        %2282 = vmatpush1.msra.mxu0 0.0
        %2283 = vmatprep.subr.mxu0 0.0
        %2284 = vmatpush1.msra.mxu0 0.0
        %2285 = vmatprep.subr.mxu0 0.0
        %2286 = vmatpush1.msra.mxu0 0.0
        %2287 = vmatprep.subr.mxu0 0.0
        %2288 = vmatpush1.msra.mxu0 0.0
        %2289 = vmatprep.subr.mxu0 0.0
        %2290 = vmatpush1.msra.mxu0 0.0
        %2291 = vmatprep.subr.mxu0 0.0
        %2292 = vmatpush1.msra.mxu0 0.0
        %2293 = vmatprep.subr.mxu0 0.0
        %2294 = vmatpush1.msra.mxu0 0.0
        %2295 = vmatprep.subr.mxu0 0.0
        %2296 = vmatpush1.msra.mxu0 0.0
        %2297 = vmatprep.subr.mxu0 0.0
        %2298 = vmatpush1.msra.mxu0 0.0
        %2299 = vmatprep.subr.mxu0 0.0
        %2300 = vmatpush1.msra.mxu0 0.0
        %2301 = vmatprep.subr.mxu0 0.0
        %2302 = vmatpush1.msra.mxu0 0.0
        %2303 = vmatprep.subr.mxu0 0.0
        %2304 = vmatpush1.msra.mxu0 0.0
        %2305 = vmatprep.subr.mxu0 0.0
        %2306 = vmatpush1.msra.mxu0 0.0
        %2307 = vmatprep.subr.mxu0 0.0
        %2308 = vmatpush1.msra.mxu0 0.0
        %2309 = vmatprep.subr.mxu0 0.0
        %2310 = vmatpush1.msra.mxu0 0.0
        %2311 = vmatprep.subr.mxu0 0.0
        %2312 = vmatpush1.msra.mxu0 0.0
        %2313 = vmatprep.subr.mxu0 0.0
        %2314 = vmatpush1.msra.mxu0 0.0
        %2315 = vmatprep.subr.mxu0 0.0
        %2316 = vmatpush1.msra.mxu0 0.0
        %2317 = vmatprep.subr.mxu0 0.0
        %2318 = vmatpush1.msra.mxu0 0.0
        %2319 = vmatprep.mubr.f32.mxu0 0.0
        %2320 = vmatmul.mubr.f32.gmra.mrb[0].mxu0 %v2244
        %v2321 = vpop.f32.mrb[0].mxu0
        %v2322 = vadd.f32 %v2225, %v2321
        %v2323 = vpop.f32.mrb[0].mxu0
        %2324 = vmatprep.mubr.f32.mxu0 0.0
        %2325 = vmatmul.mubr.f32.gmra.mrb[0].mxu0 %v2247
        %v2326 = vpop.f32.mrb[0].mxu0
        %v2327 = vadd.f32 %v2230, %v2326
        %v2328 = vpop.f32.mrb[0].mxu0
        %2329 = vmatprep.mubr.f32.mxu0 0.0
        %2330 = vmatmul.mubr.f32.gmra.mrb[0].mxu0 %v2250
        %v2331 = vpop.f32.mrb[0].mxu0
        %v2332 = vadd.f32 %v2235, %v2331
        %v2333 = vpop.f32.mrb[0].mxu0
        %2334 = vmatprep.mubr.f32.mxu0 0.0
        %2335 = vmatmul.mubr.f32.gmra.mrb[0].mxu0 %v2253
        %v2336 = vpop.f32.mrb[0].mxu0
        %v2337 = vadd.f32 %v2240, %v2336
        %v2338 = vpop.f32.mrb[0].mxu0
        %2339 = vdwg.mxu0
        %2340 = vrot.lane.b32.xlu0 %v610, 112
        %v2341 = vpop.permute.xlu0 %2340
        %2342 = vrot.lane.b32.xlu0 %v715, 112
        %v2343 = vpop.permute.xlu0 %2342
        %v2344 = vsel %vm839, %v2341, 0
        %v2346 = vsel %vm839, %v2343, 0
        %2348 = vmatprep.subr.mxu0 0.0
        %2349 = vmatpush1.xpose.msra.mxu0 %v2346
        %2350 = vmatprep.subr.mxu0 0.0
        %2351 = vmatpush1.xpose.msra.mxu0 0.0
        %2352 = vmatprep.subr.mxu0 0.0
        %2353 = vmatpush1.xpose.msra.mxu0 0.0
        %2354 = vmatprep.subr.mxu0 0.0
        %2355 = vmatpush1.xpose.msra.mxu0 0.0
        %2356 = vmatprep.subr.mxu0 0.0
        %2357 = vmatpush1.xpose.msra.mxu0 0.0
        %2358 = vmatprep.subr.mxu0 0.0
        %2359 = vmatpush1.xpose.msra.mxu0 0.0
        %2360 = vmatprep.subr.mxu0 0.0
        %2361 = vmatpush1.xpose.msra.mxu0 0.0
        %2362 = vmatprep.subr.mxu0 0.0
        %2363 = vmatpush1.xpose.msra.mxu0 0.0
        %2364 = vmatprep.subr.mxu0 0.0
        %2365 = vmatpush1.xpose.msra.mxu0 0.0
        %2366 = vmatprep.subr.mxu0 0.0
        %2367 = vmatpush1.xpose.msra.mxu0 0.0
        %2368 = vmatprep.subr.mxu0 0.0
        %2369 = vmatpush1.xpose.msra.mxu0 0.0
        %2370 = vmatprep.subr.mxu0 0.0
        %2371 = vmatpush1.xpose.msra.mxu0 0.0
        %2372 = vmatprep.subr.mxu0 0.0
        %2373 = vmatpush1.xpose.msra.mxu0 0.0
        %2374 = vmatprep.subr.mxu0 0.0
        %2375 = vmatpush1.xpose.msra.mxu0 0.0
        %2376 = vmatprep.subr.mxu0 0.0
        %2377 = vmatpush1.xpose.msra.mxu0 0.0
        %2378 = vmatprep.subr.mxu0 0.0
        %2379 = vmatpush1.xpose.msra.mxu0 0.0
        %2380 = vmatprep.subr.mxu0 0.0
        %2381 = vmatpush1.xpose.msra.mxu0 0.0
        %2382 = vmatprep.subr.mxu0 0.0
        %2383 = vmatpush1.xpose.msra.mxu0 0.0
        %2384 = vmatprep.subr.mxu0 0.0
        %2385 = vmatpush1.xpose.msra.mxu0 0.0
        %2386 = vmatprep.subr.mxu0 0.0
        %2387 = vmatpush1.xpose.msra.mxu0 0.0
        %2388 = vmatprep.subr.mxu0 0.0
        %2389 = vmatpush1.xpose.msra.mxu0 0.0
        %2390 = vmatprep.subr.mxu0 0.0
        %2391 = vmatpush1.xpose.msra.mxu0 0.0
        %2392 = vmatprep.subr.mxu0 0.0
        %2393 = vmatpush1.xpose.msra.mxu0 0.0
        %2394 = vmatprep.subr.mxu0 0.0
        %2395 = vmatpush1.xpose.msra.mxu0 0.0
        %2396 = vmatprep.subr.mxu0 0.0
        %2397 = vmatpush1.xpose.msra.mxu0 0.0
        %2398 = vmatprep.subr.mxu0 0.0
        %2399 = vmatpush1.xpose.msra.mxu0 0.0
        %2400 = vmatprep.subr.mxu0 0.0
        %2401 = vmatpush1.xpose.msra.mxu0 0.0
        %2402 = vmatprep.subr.mxu0 0.0
        %2403 = vmatpush1.xpose.msra.mxu0 0.0
        %2404 = vmatprep.subr.mxu0 0.0
        %2405 = vmatpush1.xpose.msra.mxu0 0.0
        %2406 = vmatprep.subr.mxu0 0.0
        %2407 = vmatpush1.xpose.msra.mxu0 0.0
        %2408 = vmatprep.subr.mxu0 0.0
        %2409 = vmatpush1.xpose.msra.mxu0 0.0
        %2410 = vmatprep.subr.mxu0 0.0
        %2411 = vmatpush1.xpose.msra.mxu0 0.0
        %2412 = vmatprep.mubr.f32.mxu0 0.0
        %2413 = vmatmul.mubr.f32.gmra.mrb[0].mxu0 %v2344
        %v2414 = vpop.f32.mrb[0].mxu0
        %v2415 = vadd.f32 0.0, %v2414
        %v2416 = vpop.f32.mrb[0].mxu0
        %2417 = vdwg.mxu0
        %2418 = vrot.lane.b32.xlu0 %v615, 112
        %v2419 = vpop.permute.xlu0 %2418
        %2420 = vrot.lane.b32.xlu0 %v720, 112
        %v2421 = vpop.permute.xlu0 %2420
        %v2422 = vsel %vm839, %v2419, 0
        %v2424 = vsel %vm839, %v2421, 0
        %2426 = vmatprep.subr.mxu0 0.0
        %2427 = vmatpush1.xpose.msra.mxu0 %v2424
        %2428 = vmatprep.subr.mxu0 0.0
        %2429 = vmatpush1.xpose.msra.mxu0 0.0
        %2430 = vmatprep.subr.mxu0 0.0
        %2431 = vmatpush1.xpose.msra.mxu0 0.0
        %2432 = vmatprep.subr.mxu0 0.0
        %2433 = vmatpush1.xpose.msra.mxu0 0.0
        %2434 = vmatprep.subr.mxu0 0.0
        %2435 = vmatpush1.xpose.msra.mxu0 0.0
        %2436 = vmatprep.subr.mxu0 0.0
        %2437 = vmatpush1.xpose.msra.mxu0 0.0
        %2438 = vmatprep.subr.mxu0 0.0
        %2439 = vmatpush1.xpose.msra.mxu0 0.0
        %2440 = vmatprep.subr.mxu0 0.0
        %2441 = vmatpush1.xpose.msra.mxu0 0.0
        %2442 = vmatprep.subr.mxu0 0.0
        %2443 = vmatpush1.xpose.msra.mxu0 0.0
        %2444 = vmatprep.subr.mxu0 0.0
        %2445 = vmatpush1.xpose.msra.mxu0 0.0
        %2446 = vmatprep.subr.mxu0 0.0
        %2447 = vmatpush1.xpose.msra.mxu0 0.0
        %2448 = vmatprep.subr.mxu0 0.0
        %2449 = vmatpush1.xpose.msra.mxu0 0.0
        %2450 = vmatprep.subr.mxu0 0.0
        %2451 = vmatpush1.xpose.msra.mxu0 0.0
        %2452 = vmatprep.subr.mxu0 0.0
        %2453 = vmatpush1.xpose.msra.mxu0 0.0
        %2454 = vmatprep.subr.mxu0 0.0
        %2455 = vmatpush1.xpose.msra.mxu0 0.0
        %2456 = vmatprep.subr.mxu0 0.0
        %2457 = vmatpush1.xpose.msra.mxu0 0.0
        %2458 = vmatprep.subr.mxu0 0.0
        %2459 = vmatpush1.xpose.msra.mxu0 0.0
        %2460 = vmatprep.subr.mxu0 0.0
        %2461 = vmatpush1.xpose.msra.mxu0 0.0
        %2462 = vmatprep.subr.mxu0 0.0
        %2463 = vmatpush1.xpose.msra.mxu0 0.0
        %2464 = vmatprep.subr.mxu0 0.0
        %2465 = vmatpush1.xpose.msra.mxu0 0.0
        %2466 = vmatprep.subr.mxu0 0.0
        %2467 = vmatpush1.xpose.msra.mxu0 0.0
        %2468 = vmatprep.subr.mxu0 0.0
        %2469 = vmatpush1.xpose.msra.mxu0 0.0
        %2470 = vmatprep.subr.mxu0 0.0
        %2471 = vmatpush1.xpose.msra.mxu0 0.0
        %2472 = vmatprep.subr.mxu0 0.0
        %2473 = vmatpush1.xpose.msra.mxu0 0.0
        %2474 = vmatprep.subr.mxu0 0.0
        %2475 = vmatpush1.xpose.msra.mxu0 0.0
        %2476 = vmatprep.subr.mxu0 0.0
        %2477 = vmatpush1.xpose.msra.mxu0 0.0
        %2478 = vmatprep.subr.mxu0 0.0
        %2479 = vmatpush1.xpose.msra.mxu0 0.0
        %2480 = vmatprep.subr.mxu0 0.0
        %2481 = vmatpush1.xpose.msra.mxu0 0.0
        %2482 = vmatprep.subr.mxu0 0.0
        %2483 = vmatpush1.xpose.msra.mxu0 0.0
        %2484 = vmatprep.subr.mxu0 0.0
        %2485 = vmatpush1.xpose.msra.mxu0 0.0
        %2486 = vmatprep.subr.mxu0 0.0
        %2487 = vmatpush1.xpose.msra.mxu0 0.0
        %2488 = vmatprep.subr.mxu0 0.0
        %2489 = vmatpush1.xpose.msra.mxu0 0.0
        %2490 = vmatprep.mubr.f32.mxu0 0.0
        %2491 = vmatmul.mubr.f32.gmra.mrb[0].mxu0 %v2422
        %v2492 = vpop.f32.mrb[0].mxu0
        %v2493 = vadd.f32 0.0, %v2492
        %v2494 = vpop.f32.mrb[0].mxu0
        %2495 = vdwg.mxu0
        %2496 = vrot.lane.b32.xlu0 %v620, 112
        %v2497 = vpop.permute.xlu0 %2496
        %2498 = vrot.lane.b32.xlu0 %v725, 112
        %v2499 = vpop.permute.xlu0 %2498
        %v2500 = vsel %vm839, %v2497, 0
        %v2502 = vsel %vm839, %v2499, 0
        %2504 = vmatprep.subr.mxu0 0.0
        %2505 = vmatpush1.xpose.msra.mxu0 %v2502
        %2506 = vmatprep.subr.mxu0 0.0
        %2507 = vmatpush1.xpose.msra.mxu0 0.0
        %2508 = vmatprep.subr.mxu0 0.0
        %2509 = vmatpush1.xpose.msra.mxu0 0.0
        %2510 = vmatprep.subr.mxu0 0.0
        %2511 = vmatpush1.xpose.msra.mxu0 0.0
        %2512 = vmatprep.subr.mxu0 0.0
        %2513 = vmatpush1.xpose.msra.mxu0 0.0
        %2514 = vmatprep.subr.mxu0 0.0
        %2515 = vmatpush1.xpose.msra.mxu0 0.0
        %2516 = vmatprep.subr.mxu0 0.0
        %2517 = vmatpush1.xpose.msra.mxu0 0.0
        %2518 = vmatprep.subr.mxu0 0.0
        %2519 = vmatpush1.xpose.msra.mxu0 0.0
        %2520 = vmatprep.subr.mxu0 0.0
        %2521 = vmatpush1.xpose.msra.mxu0 0.0
        %2522 = vmatprep.subr.mxu0 0.0
        %2523 = vmatpush1.xpose.msra.mxu0 0.0
        %2524 = vmatprep.subr.mxu0 0.0
        %2525 = vmatpush1.xpose.msra.mxu0 0.0
        %2526 = vmatprep.subr.mxu0 0.0
        %2527 = vmatpush1.xpose.msra.mxu0 0.0
        %2528 = vmatprep.subr.mxu0 0.0
        %2529 = vmatpush1.xpose.msra.mxu0 0.0
        %2530 = vmatprep.subr.mxu0 0.0
        %2531 = vmatpush1.xpose.msra.mxu0 0.0
        %2532 = vmatprep.subr.mxu0 0.0
        %2533 = vmatpush1.xpose.msra.mxu0 0.0
        %2534 = vmatprep.subr.mxu0 0.0
        %2535 = vmatpush1.xpose.msra.mxu0 0.0
        %2536 = vmatprep.subr.mxu0 0.0
        %2537 = vmatpush1.xpose.msra.mxu0 0.0
        %2538 = vmatprep.subr.mxu0 0.0
        %2539 = vmatpush1.xpose.msra.mxu0 0.0
        %2540 = vmatprep.subr.mxu0 0.0
        %2541 = vmatpush1.xpose.msra.mxu0 0.0
        %2542 = vmatprep.subr.mxu0 0.0
        %2543 = vmatpush1.xpose.msra.mxu0 0.0
        %2544 = vmatprep.subr.mxu0 0.0
        %2545 = vmatpush1.xpose.msra.mxu0 0.0
        %2546 = vmatprep.subr.mxu0 0.0
        %2547 = vmatpush1.xpose.msra.mxu0 0.0
        %2548 = vmatprep.subr.mxu0 0.0
        %2549 = vmatpush1.xpose.msra.mxu0 0.0
        %2550 = vmatprep.subr.mxu0 0.0
        %2551 = vmatpush1.xpose.msra.mxu0 0.0
        %2552 = vmatprep.subr.mxu0 0.0
        %2553 = vmatpush1.xpose.msra.mxu0 0.0
        %2554 = vmatprep.subr.mxu0 0.0
        %2555 = vmatpush1.xpose.msra.mxu0 0.0
        %2556 = vmatprep.subr.mxu0 0.0
        %2557 = vmatpush1.xpose.msra.mxu0 0.0
        %2558 = vmatprep.subr.mxu0 0.0
        %2559 = vmatpush1.xpose.msra.mxu0 0.0
        %2560 = vmatprep.subr.mxu0 0.0
        %2561 = vmatpush1.xpose.msra.mxu0 0.0
        %2562 = vmatprep.subr.mxu0 0.0
        %2563 = vmatpush1.xpose.msra.mxu0 0.0
        %2564 = vmatprep.subr.mxu0 0.0
        %2565 = vmatpush1.xpose.msra.mxu0 0.0
        %2566 = vmatprep.subr.mxu0 0.0
        %2567 = vmatpush1.xpose.msra.mxu0 0.0
        %2568 = vmatprep.mubr.f32.mxu0 0.0
        %2569 = vmatmul.mubr.f32.gmra.mrb[0].mxu0 %v2500
        %v2570 = vpop.f32.mrb[0].mxu0
        %v2571 = vadd.f32 0.0, %v2570
        %v2572 = vpop.f32.mrb[0].mxu0
        %2573 = vdwg.mxu0
        %2574 = vrot.lane.b32.xlu0 %v625, 112
        %v2575 = vpop.permute.xlu0 %2574
        %2576 = vrot.lane.b32.xlu0 %v730, 112
        %v2577 = vpop.permute.xlu0 %2576
        %v2578 = vsel %vm839, %v2575, 0
        %v2580 = vsel %vm839, %v2577, 0
        %2582 = vmatprep.subr.mxu0 0.0
        %2583 = vmatpush1.xpose.msra.mxu0 %v2580
        %2584 = vmatprep.subr.mxu0 0.0
        %2585 = vmatpush1.xpose.msra.mxu0 0.0
        %2586 = vmatprep.subr.mxu0 0.0
        %2587 = vmatpush1.xpose.msra.mxu0 0.0
        %2588 = vmatprep.subr.mxu0 0.0
        %2589 = vmatpush1.xpose.msra.mxu0 0.0
        %2590 = vmatprep.subr.mxu0 0.0
        %2591 = vmatpush1.xpose.msra.mxu0 0.0
        %2592 = vmatprep.subr.mxu0 0.0
        %2593 = vmatpush1.xpose.msra.mxu0 0.0
        %2594 = vmatprep.subr.mxu0 0.0
        %2595 = vmatpush1.xpose.msra.mxu0 0.0
        %2596 = vmatprep.subr.mxu0 0.0
        %2597 = vmatpush1.xpose.msra.mxu0 0.0
        %2598 = vmatprep.subr.mxu0 0.0
        %2599 = vmatpush1.xpose.msra.mxu0 0.0
        %2600 = vmatprep.subr.mxu0 0.0
        %2601 = vmatpush1.xpose.msra.mxu0 0.0
        %2602 = vmatprep.subr.mxu0 0.0
        %2603 = vmatpush1.xpose.msra.mxu0 0.0
        %2604 = vmatprep.subr.mxu0 0.0
        %2605 = vmatpush1.xpose.msra.mxu0 0.0
        %2606 = vmatprep.subr.mxu0 0.0
        %2607 = vmatpush1.xpose.msra.mxu0 0.0
        %2608 = vmatprep.subr.mxu0 0.0
        %2609 = vmatpush1.xpose.msra.mxu0 0.0
        %2610 = vmatprep.subr.mxu0 0.0
        %2611 = vmatpush1.xpose.msra.mxu0 0.0
        %2612 = vmatprep.subr.mxu0 0.0
        %2613 = vmatpush1.xpose.msra.mxu0 0.0
        %2614 = vmatprep.subr.mxu0 0.0
        %2615 = vmatpush1.xpose.msra.mxu0 0.0
        %2616 = vmatprep.subr.mxu0 0.0
        %2617 = vmatpush1.xpose.msra.mxu0 0.0
        %2618 = vmatprep.subr.mxu0 0.0
        %2619 = vmatpush1.xpose.msra.mxu0 0.0
        %2620 = vmatprep.subr.mxu0 0.0
        %2621 = vmatpush1.xpose.msra.mxu0 0.0
        %2622 = vmatprep.subr.mxu0 0.0
        %2623 = vmatpush1.xpose.msra.mxu0 0.0
        %2624 = vmatprep.subr.mxu0 0.0
        %2625 = vmatpush1.xpose.msra.mxu0 0.0
        %2626 = vmatprep.subr.mxu0 0.0
        %2627 = vmatpush1.xpose.msra.mxu0 0.0
        %2628 = vmatprep.subr.mxu0 0.0
        %2629 = vmatpush1.xpose.msra.mxu0 0.0
        %2630 = vmatprep.subr.mxu0 0.0
        %2631 = vmatpush1.xpose.msra.mxu0 0.0
        %2632 = vmatprep.subr.mxu0 0.0
        %2633 = vmatpush1.xpose.msra.mxu0 0.0
        %2634 = vmatprep.subr.mxu0 0.0
        %2635 = vmatpush1.xpose.msra.mxu0 0.0
        %2636 = vmatprep.subr.mxu0 0.0
        %2637 = vmatpush1.xpose.msra.mxu0 0.0
        %2638 = vmatprep.subr.mxu0 0.0
        %2639 = vmatpush1.xpose.msra.mxu0 0.0
        %2640 = vmatprep.subr.mxu0 0.0
        %2641 = vmatpush1.xpose.msra.mxu0 0.0
        %2642 = vmatprep.subr.mxu0 0.0
        %2643 = vmatpush1.xpose.msra.mxu0 0.0
        %2644 = vmatprep.subr.mxu0 0.0
        %2645 = vmatpush1.xpose.msra.mxu0 0.0
        %2646 = vmatprep.mubr.f32.mxu0 0.0
        %2647 = vmatmul.mubr.f32.gmra.mrb[0].mxu0 %v2578
        %v2648 = vpop.f32.mrb[0].mxu0
        %v2649 = vadd.f32 0.0, %v2648
        %v2650 = vpop.f32.mrb[0].mxu0
        %2651 = vdwg.mxu0
        %v2652 = vsel %vm839, %v2415, -inf
        %2653 = vmax.xlane.f32.xlu0 %v2652
        %v2654 = vpop.xlane.xlu0 %2653
        %v2655 = vsel %vm839, %v2493, -inf
        %2656 = vmax.xlane.f32.xlu0 %v2655
        %v2657 = vpop.xlane.xlu0 %2656
        %v2658 = vsel %vm839, %v2571, -inf
        %2659 = vmax.xlane.f32.xlu0 %v2658
        %v2660 = vpop.xlane.xlu0 %2659
        %v2661 = vsel %vm839, %v2649, -inf
        %2662 = vmax.xlane.f32.xlu0 %v2661
        %v2663 = vpop.xlane.xlu0 %2662
        %v2664 = vsub.f32 %v2415, %v2654
        %v2665 = vsub.f32 %v2493, %v2657
        %v2666 = vsub.f32 %v2571, %v2660
        %v2667 = vsub.f32 %v2649, %v2663
        %v2668 = vmul.f32 %v2664, 1.442695
        %v2669 = vpow.pop %v2668
        %v2670 = vmul.f32 %v2665, 1.442695
        %v2671 = vpow.pop %v2670
        %v2672 = vmul.f32 %v2666, 1.442695
        %v2673 = vpow.pop %v2672
        %v2674 = vmul.f32 %v2667, 1.442695
        %v2675 = vpow.pop %v2674
        %v2676 = vsel %vm839, %v2669, 0.0
        %2677 = vadd.xlane.f32.xlu0 %v2676
        %v2678 = vpop.xlane.xlu0 %2677
        %v2679 = vsel %vm839, %v2671, 0.0
        %2680 = vadd.xlane.f32.xlu0 %v2679
        %v2681 = vpop.xlane.xlu0 %2680
        %v2682 = vsel %vm839, %v2673, 0.0
        %2683 = vadd.xlane.f32.xlu0 %v2682
        %v2684 = vpop.xlane.xlu0 %2683
        %v2685 = vsel %vm839, %v2675, 0.0
        %2686 = vadd.xlane.f32.xlu0 %v2685
        %v2687 = vpop.xlane.xlu0 %2686
        %2688 = vrot.lane.b32.xlu0 %v820, 112
        %v2689 = vpop.permute.xlu0 %2688
        %v2692 = vsel %vm839, %v2669, 0
        %2694 = vmatprep.subr.mxu0 0.0
        %2695 = vmatpush1.msra.mxu0 %v2689
        %2696 = vmatprep.subr.mxu0 0.0
        %2697 = vmatpush1.msra.mxu0 0.0
        %2698 = vmatprep.subr.mxu0 0.0
        %2699 = vmatpush1.msra.mxu0 0.0
        %2700 = vmatprep.subr.mxu0 0.0
        %2701 = vmatpush1.msra.mxu0 0.0
        %2702 = vmatprep.subr.mxu0 0.0
        %2703 = vmatpush1.msra.mxu0 0.0
        %2704 = vmatprep.subr.mxu0 0.0
        %2705 = vmatpush1.msra.mxu0 0.0
        %2706 = vmatprep.subr.mxu0 0.0
        %2707 = vmatpush1.msra.mxu0 0.0
        %2708 = vmatprep.subr.mxu0 0.0
        %2709 = vmatpush1.msra.mxu0 0.0
        %2710 = vmatprep.subr.mxu0 0.0
        %2711 = vmatpush1.msra.mxu0 0.0
        %2712 = vmatprep.subr.mxu0 0.0
        %2713 = vmatpush1.msra.mxu0 0.0
        %2714 = vmatprep.subr.mxu0 0.0
        %2715 = vmatpush1.msra.mxu0 0.0
        %2716 = vmatprep.subr.mxu0 0.0
        %2717 = vmatpush1.msra.mxu0 0.0
        %2718 = vmatprep.subr.mxu0 0.0
        %2719 = vmatpush1.msra.mxu0 0.0
        %2720 = vmatprep.subr.mxu0 0.0
        %2721 = vmatpush1.msra.mxu0 0.0
        %2722 = vmatprep.subr.mxu0 0.0
        %2723 = vmatpush1.msra.mxu0 0.0
        %2724 = vmatprep.subr.mxu0 0.0
        %2725 = vmatpush1.msra.mxu0 0.0
        %2726 = vmatprep.subr.mxu0 0.0
        %2727 = vmatpush1.msra.mxu0 0.0
        %2728 = vmatprep.subr.mxu0 0.0
        %2729 = vmatpush1.msra.mxu0 0.0
        %2730 = vmatprep.subr.mxu0 0.0
        %2731 = vmatpush1.msra.mxu0 0.0
        %2732 = vmatprep.subr.mxu0 0.0
        %2733 = vmatpush1.msra.mxu0 0.0
        %2734 = vmatprep.subr.mxu0 0.0
        %2735 = vmatpush1.msra.mxu0 0.0
        %2736 = vmatprep.subr.mxu0 0.0
        %2737 = vmatpush1.msra.mxu0 0.0
        %2738 = vmatprep.subr.mxu0 0.0
        %2739 = vmatpush1.msra.mxu0 0.0
        %2740 = vmatprep.subr.mxu0 0.0
        %2741 = vmatpush1.msra.mxu0 0.0
        %2742 = vmatprep.subr.mxu0 0.0
        %2743 = vmatpush1.msra.mxu0 0.0
        %2744 = vmatprep.subr.mxu0 0.0
        %2745 = vmatpush1.msra.mxu0 0.0
        %2746 = vmatprep.subr.mxu0 0.0
        %2747 = vmatpush1.msra.mxu0 0.0
        %2748 = vmatprep.subr.mxu0 0.0
        %2749 = vmatpush1.msra.mxu0 0.0
        %2750 = vmatprep.subr.mxu0 0.0
        %2751 = vmatpush1.msra.mxu0 0.0
        %2752 = vmatprep.subr.mxu0 0.0
        %2753 = vmatpush1.msra.mxu0 0.0
        %2754 = vmatprep.subr.mxu0 0.0
        %2755 = vmatpush1.msra.mxu0 0.0
        %2756 = vmatprep.subr.mxu0 0.0
        %2757 = vmatpush1.msra.mxu0 0.0
        %2758 = vmatprep.mubr.f32.mxu0 0.0
        %2759 = vmatmul.mubr.f32.gmra.mrb[0].mxu0 %v2692
        %v2760 = vpop.f32.mrb[0].mxu0
        %v2761 = vadd.f32 0.0, %v2760
        %v2762 = vpop.f32.mrb[0].mxu0
        %2763 = vdwg.mxu0
        %2764 = vrot.lane.b32.xlu0 %v825, 112
        %v2765 = vpop.permute.xlu0 %2764
        %v2768 = vsel %vm839, %v2671, 0
        %2770 = vmatprep.subr.mxu0 0.0
        %2771 = vmatpush1.msra.mxu0 %v2765
        %2772 = vmatprep.subr.mxu0 0.0
        %2773 = vmatpush1.msra.mxu0 0.0
        %2774 = vmatprep.subr.mxu0 0.0
        %2775 = vmatpush1.msra.mxu0 0.0
        %2776 = vmatprep.subr.mxu0 0.0
        %2777 = vmatpush1.msra.mxu0 0.0
        %2778 = vmatprep.subr.mxu0 0.0
        %2779 = vmatpush1.msra.mxu0 0.0
        %2780 = vmatprep.subr.mxu0 0.0
        %2781 = vmatpush1.msra.mxu0 0.0
        %2782 = vmatprep.subr.mxu0 0.0
        %2783 = vmatpush1.msra.mxu0 0.0
        %2784 = vmatprep.subr.mxu0 0.0
        %2785 = vmatpush1.msra.mxu0 0.0
        %2786 = vmatprep.subr.mxu0 0.0
        %2787 = vmatpush1.msra.mxu0 0.0
        %2788 = vmatprep.subr.mxu0 0.0
        %2789 = vmatpush1.msra.mxu0 0.0
        %2790 = vmatprep.subr.mxu0 0.0
        %2791 = vmatpush1.msra.mxu0 0.0
        %2792 = vmatprep.subr.mxu0 0.0
        %2793 = vmatpush1.msra.mxu0 0.0
        %2794 = vmatprep.subr.mxu0 0.0
        %2795 = vmatpush1.msra.mxu0 0.0
        %2796 = vmatprep.subr.mxu0 0.0
        %2797 = vmatpush1.msra.mxu0 0.0
        %2798 = vmatprep.subr.mxu0 0.0
        %2799 = vmatpush1.msra.mxu0 0.0
        %2800 = vmatprep.subr.mxu0 0.0
        %2801 = vmatpush1.msra.mxu0 0.0
        %2802 = vmatprep.subr.mxu0 0.0
        %2803 = vmatpush1.msra.mxu0 0.0
        %2804 = vmatprep.subr.mxu0 0.0
        %2805 = vmatpush1.msra.mxu0 0.0
        %2806 = vmatprep.subr.mxu0 0.0
        %2807 = vmatpush1.msra.mxu0 0.0
        %2808 = vmatprep.subr.mxu0 0.0
        %2809 = vmatpush1.msra.mxu0 0.0
        %2810 = vmatprep.subr.mxu0 0.0
        %2811 = vmatpush1.msra.mxu0 0.0
        %2812 = vmatprep.subr.mxu0 0.0
        %2813 = vmatpush1.msra.mxu0 0.0
        %2814 = vmatprep.subr.mxu0 0.0
        %2815 = vmatpush1.msra.mxu0 0.0
        %2816 = vmatprep.subr.mxu0 0.0
        %2817 = vmatpush1.msra.mxu0 0.0
        %2818 = vmatprep.subr.mxu0 0.0
        %2819 = vmatpush1.msra.mxu0 0.0
        %2820 = vmatprep.subr.mxu0 0.0
        %2821 = vmatpush1.msra.mxu0 0.0
        %2822 = vmatprep.subr.mxu0 0.0
        %2823 = vmatpush1.msra.mxu0 0.0
        %2824 = vmatprep.subr.mxu0 0.0
        %2825 = vmatpush1.msra.mxu0 0.0
        %2826 = vmatprep.subr.mxu0 0.0
        %2827 = vmatpush1.msra.mxu0 0.0
        %2828 = vmatprep.subr.mxu0 0.0
        %2829 = vmatpush1.msra.mxu0 0.0
        %2830 = vmatprep.subr.mxu0 0.0
        %2831 = vmatpush1.msra.mxu0 0.0
        %2832 = vmatprep.subr.mxu0 0.0
        %2833 = vmatpush1.msra.mxu0 0.0
        %2834 = vmatprep.mubr.f32.mxu0 0.0
        %2835 = vmatmul.mubr.f32.gmra.mrb[0].mxu0 %v2768
        %v2836 = vpop.f32.mrb[0].mxu0
        %v2837 = vadd.f32 0.0, %v2836
        %v2838 = vpop.f32.mrb[0].mxu0
        %2839 = vdwg.mxu0
        %2840 = vrot.lane.b32.xlu0 %v830, 112
        %v2841 = vpop.permute.xlu0 %2840
        %v2844 = vsel %vm839, %v2673, 0
        %2846 = vmatprep.subr.mxu0 0.0
        %2847 = vmatpush1.msra.mxu0 %v2841
        %2848 = vmatprep.subr.mxu0 0.0
        %2849 = vmatpush1.msra.mxu0 0.0
        %2850 = vmatprep.subr.mxu0 0.0
        %2851 = vmatpush1.msra.mxu0 0.0
        %2852 = vmatprep.subr.mxu0 0.0
        %2853 = vmatpush1.msra.mxu0 0.0
        %2854 = vmatprep.subr.mxu0 0.0
        %2855 = vmatpush1.msra.mxu0 0.0
        %2856 = vmatprep.subr.mxu0 0.0
        %2857 = vmatpush1.msra.mxu0 0.0
        %2858 = vmatprep.subr.mxu0 0.0
        %2859 = vmatpush1.msra.mxu0 0.0
        %2860 = vmatprep.subr.mxu0 0.0
        %2861 = vmatpush1.msra.mxu0 0.0
        %2862 = vmatprep.subr.mxu0 0.0
        %2863 = vmatpush1.msra.mxu0 0.0
        %2864 = vmatprep.subr.mxu0 0.0
        %2865 = vmatpush1.msra.mxu0 0.0
        %2866 = vmatprep.subr.mxu0 0.0
        %2867 = vmatpush1.msra.mxu0 0.0
        %2868 = vmatprep.subr.mxu0 0.0
        %2869 = vmatpush1.msra.mxu0 0.0
        %2870 = vmatprep.subr.mxu0 0.0
        %2871 = vmatpush1.msra.mxu0 0.0
        %2872 = vmatprep.subr.mxu0 0.0
        %2873 = vmatpush1.msra.mxu0 0.0
        %2874 = vmatprep.subr.mxu0 0.0
        %2875 = vmatpush1.msra.mxu0 0.0
        %2876 = vmatprep.subr.mxu0 0.0
        %2877 = vmatpush1.msra.mxu0 0.0
        %2878 = vmatprep.subr.mxu0 0.0
        %2879 = vmatpush1.msra.mxu0 0.0
        %2880 = vmatprep.subr.mxu0 0.0
        %2881 = vmatpush1.msra.mxu0 0.0
        %2882 = vmatprep.subr.mxu0 0.0
        %2883 = vmatpush1.msra.mxu0 0.0
        %2884 = vmatprep.subr.mxu0 0.0
        %2885 = vmatpush1.msra.mxu0 0.0
        %2886 = vmatprep.subr.mxu0 0.0
        %2887 = vmatpush1.msra.mxu0 0.0
        %2888 = vmatprep.subr.mxu0 0.0
        %2889 = vmatpush1.msra.mxu0 0.0
        %2890 = vmatprep.subr.mxu0 0.0
        %2891 = vmatpush1.msra.mxu0 0.0
        %2892 = vmatprep.subr.mxu0 0.0
        %2893 = vmatpush1.msra.mxu0 0.0
        %2894 = vmatprep.subr.mxu0 0.0
        %2895 = vmatpush1.msra.mxu0 0.0
        %2896 = vmatprep.subr.mxu0 0.0
        %2897 = vmatpush1.msra.mxu0 0.0
        %2898 = vmatprep.subr.mxu0 0.0
        %2899 = vmatpush1.msra.mxu0 0.0
        %2900 = vmatprep.subr.mxu0 0.0
        %2901 = vmatpush1.msra.mxu0 0.0
        %2902 = vmatprep.subr.mxu0 0.0
        %2903 = vmatpush1.msra.mxu0 0.0
        %2904 = vmatprep.subr.mxu0 0.0
        %2905 = vmatpush1.msra.mxu0 0.0
        %2906 = vmatprep.subr.mxu0 0.0
        %2907 = vmatpush1.msra.mxu0 0.0
        %2908 = vmatprep.subr.mxu0 0.0
        %2909 = vmatpush1.msra.mxu0 0.0
        %2910 = vmatprep.mubr.f32.mxu0 0.0
        %2911 = vmatmul.mubr.f32.gmra.mrb[0].mxu0 %v2844
        %v2912 = vpop.f32.mrb[0].mxu0
        %v2913 = vadd.f32 0.0, %v2912
        %v2914 = vpop.f32.mrb[0].mxu0
        %2915 = vdwg.mxu0
        %2916 = vrot.lane.b32.xlu0 %v835, 112
        %v2917 = vpop.permute.xlu0 %2916
        %v2920 = vsel %vm839, %v2675, 0
        %2922 = vmatprep.subr.mxu0 0.0
        %2923 = vmatpush1.msra.mxu0 %v2917
        %2924 = vmatprep.subr.mxu0 0.0
        %2925 = vmatpush1.msra.mxu0 0.0
        %2926 = vmatprep.subr.mxu0 0.0
        %2927 = vmatpush1.msra.mxu0 0.0
        %2928 = vmatprep.subr.mxu0 0.0
        %2929 = vmatpush1.msra.mxu0 0.0
        %2930 = vmatprep.subr.mxu0 0.0
        %2931 = vmatpush1.msra.mxu0 0.0
        %2932 = vmatprep.subr.mxu0 0.0
        %2933 = vmatpush1.msra.mxu0 0.0
        %2934 = vmatprep.subr.mxu0 0.0
        %2935 = vmatpush1.msra.mxu0 0.0
        %2936 = vmatprep.subr.mxu0 0.0
        %2937 = vmatpush1.msra.mxu0 0.0
        %2938 = vmatprep.subr.mxu0 0.0
        %2939 = vmatpush1.msra.mxu0 0.0
        %2940 = vmatprep.subr.mxu0 0.0
        %2941 = vmatpush1.msra.mxu0 0.0
        %2942 = vmatprep.subr.mxu0 0.0
        %2943 = vmatpush1.msra.mxu0 0.0
        %2944 = vmatprep.subr.mxu0 0.0
        %2945 = vmatpush1.msra.mxu0 0.0
        %2946 = vmatprep.subr.mxu0 0.0
        %2947 = vmatpush1.msra.mxu0 0.0
        %2948 = vmatprep.subr.mxu0 0.0
        %2949 = vmatpush1.msra.mxu0 0.0
        %2950 = vmatprep.subr.mxu0 0.0
        %2951 = vmatpush1.msra.mxu0 0.0
        %2952 = vmatprep.subr.mxu0 0.0
        %2953 = vmatpush1.msra.mxu0 0.0
        %2954 = vmatprep.subr.mxu0 0.0
        %2955 = vmatpush1.msra.mxu0 0.0
        %2956 = vmatprep.subr.mxu0 0.0
        %2957 = vmatpush1.msra.mxu0 0.0
        %2958 = vmatprep.subr.mxu0 0.0
        %2959 = vmatpush1.msra.mxu0 0.0
        %2960 = vmatprep.subr.mxu0 0.0
        %2961 = vmatpush1.msra.mxu0 0.0
        %2962 = vmatprep.subr.mxu0 0.0
        %2963 = vmatpush1.msra.mxu0 0.0
        %2964 = vmatprep.subr.mxu0 0.0
        %2965 = vmatpush1.msra.mxu0 0.0
        %2966 = vmatprep.subr.mxu0 0.0
        %2967 = vmatpush1.msra.mxu0 0.0
        %2968 = vmatprep.subr.mxu0 0.0
        %2969 = vmatpush1.msra.mxu0 0.0
        %2970 = vmatprep.subr.mxu0 0.0
        %2971 = vmatpush1.msra.mxu0 0.0
        %2972 = vmatprep.subr.mxu0 0.0
        %2973 = vmatpush1.msra.mxu0 0.0
        %2974 = vmatprep.subr.mxu0 0.0
        %2975 = vmatpush1.msra.mxu0 0.0
        %2976 = vmatprep.subr.mxu0 0.0
        %2977 = vmatpush1.msra.mxu0 0.0
        %2978 = vmatprep.subr.mxu0 0.0
        %2979 = vmatpush1.msra.mxu0 0.0
        %2980 = vmatprep.subr.mxu0 0.0
        %2981 = vmatpush1.msra.mxu0 0.0
        %2982 = vmatprep.subr.mxu0 0.0
        %2983 = vmatpush1.msra.mxu0 0.0
        %2984 = vmatprep.subr.mxu0 0.0
        %2985 = vmatpush1.msra.mxu0 0.0
        %2986 = vmatprep.mubr.f32.mxu0 0.0
        %2987 = vmatmul.mubr.f32.gmra.mrb[0].mxu0 %v2920
        %v2988 = vpop.f32.mrb[0].mxu0
        %v2989 = vadd.f32 0.0, %v2988
        %v2990 = vpop.f32.mrb[0].mxu0
        %2991 = vdwg.mxu0
        %v2992 = vrcp.pop %v2678
        %v2993 = vmul.f32 %v2761, %v2992
        %v2994 = vrcp.pop %v2681
        %v2995 = vmul.f32 %v2837, %v2994
        %v2996 = vrcp.pop %v2684
        %v2997 = vmul.f32 %v2913, %v2996
        %v2998 = vrcp.pop %v2687
        %v2999 = vmul.f32 %v2989, %v2998
        %v3000 = vld [vmem:[#allocation8 + $0x10] sm:$0xff]
        %v3002 = vsel %vm839, %v2993, 0
        %v3005 = vsel %vm839, %v2995, 0
        %v3008 = vsel %vm839, %v2997, 0
        %v3011 = vsel %vm839, %v2999, 0
        %3013 = vmatprep.subr.mxu0 0.0
        %3014 = vmatpush1.msra.mxu0 %v3000
        %3015 = vmatprep.subr.mxu0 0.0
        %3016 = vmatpush1.msra.mxu0 0.0
        %3017 = vmatprep.subr.mxu0 0.0
        %3018 = vmatpush1.msra.mxu0 0.0
        %3019 = vmatprep.subr.mxu0 0.0
        %3020 = vmatpush1.msra.mxu0 0.0
        %3021 = vmatprep.subr.mxu0 0.0
        %3022 = vmatpush1.msra.mxu0 0.0
        %3023 = vmatprep.subr.mxu0 0.0
        %3024 = vmatpush1.msra.mxu0 0.0
        %3025 = vmatprep.subr.mxu0 0.0
        %3026 = vmatpush1.msra.mxu0 0.0
        %3027 = vmatprep.subr.mxu0 0.0
        %3028 = vmatpush1.msra.mxu0 0.0
        %3029 = vmatprep.subr.mxu0 0.0
        %3030 = vmatpush1.msra.mxu0 0.0
        %3031 = vmatprep.subr.mxu0 0.0
        %3032 = vmatpush1.msra.mxu0 0.0
        %3033 = vmatprep.subr.mxu0 0.0
        %3034 = vmatpush1.msra.mxu0 0.0
        %3035 = vmatprep.subr.mxu0 0.0
        %3036 = vmatpush1.msra.mxu0 0.0
        %3037 = vmatprep.subr.mxu0 0.0
        %3038 = vmatpush1.msra.mxu0 0.0
        %3039 = vmatprep.subr.mxu0 0.0
        %3040 = vmatpush1.msra.mxu0 0.0
        %3041 = vmatprep.subr.mxu0 0.0
        %3042 = vmatpush1.msra.mxu0 0.0
        %3043 = vmatprep.subr.mxu0 0.0
        %3044 = vmatpush1.msra.mxu0 0.0
        %3045 = vmatprep.subr.mxu0 0.0
        %3046 = vmatpush1.msra.mxu0 0.0
        %3047 = vmatprep.subr.mxu0 0.0
        %3048 = vmatpush1.msra.mxu0 0.0
        %3049 = vmatprep.subr.mxu0 0.0
        %3050 = vmatpush1.msra.mxu0 0.0
        %3051 = vmatprep.subr.mxu0 0.0
        %3052 = vmatpush1.msra.mxu0 0.0
        %3053 = vmatprep.subr.mxu0 0.0
        %3054 = vmatpush1.msra.mxu0 0.0
        %3055 = vmatprep.subr.mxu0 0.0
        %3056 = vmatpush1.msra.mxu0 0.0
        %3057 = vmatprep.subr.mxu0 0.0
        %3058 = vmatpush1.msra.mxu0 0.0
        %3059 = vmatprep.subr.mxu0 0.0
        %3060 = vmatpush1.msra.mxu0 0.0
        %3061 = vmatprep.subr.mxu0 0.0
        %3062 = vmatpush1.msra.mxu0 0.0
        %3063 = vmatprep.subr.mxu0 0.0
        %3064 = vmatpush1.msra.mxu0 0.0
        %3065 = vmatprep.subr.mxu0 0.0
        %3066 = vmatpush1.msra.mxu0 0.0
        %3067 = vmatprep.subr.mxu0 0.0
        %3068 = vmatpush1.msra.mxu0 0.0
        %3069 = vmatprep.subr.mxu0 0.0
        %3070 = vmatpush1.msra.mxu0 0.0
        %3071 = vmatprep.subr.mxu0 0.0
        %3072 = vmatpush1.msra.mxu0 0.0
        %3073 = vmatprep.subr.mxu0 0.0
        %3074 = vmatpush1.msra.mxu0 0.0
        %3075 = vmatprep.subr.mxu0 0.0
        %3076 = vmatpush1.msra.mxu0 0.0
        %3077 = vmatprep.mubr.f32.mxu0 0.0
        %3078 = vmatmul.mubr.f32.gmra.mrb[0].mxu0 %v3002
        %v3079 = vpop.f32.mrb[0].mxu0
        %v3080 = vadd.f32 0.0, %v3079
        %v3081 = vpop.f32.mrb[0].mxu0
        %3082 = vmatprep.mubr.f32.mxu0 0.0
        %3083 = vmatmul.mubr.f32.gmra.mrb[0].mxu0 %v3005
        %v3084 = vpop.f32.mrb[0].mxu0
        %v3085 = vadd.f32 0.0, %v3084
        %v3086 = vpop.f32.mrb[0].mxu0
        %3087 = vmatprep.mubr.f32.mxu0 0.0
        %3088 = vmatmul.mubr.f32.gmra.mrb[0].mxu0 %v3008
        %v3089 = vpop.f32.mrb[0].mxu0
        %v3090 = vadd.f32 0.0, %v3089
        %v3091 = vpop.f32.mrb[0].mxu0
        %3092 = vmatprep.mubr.f32.mxu0 0.0
        %3093 = vmatmul.mubr.f32.gmra.mrb[0].mxu0 %v3011
        %v3094 = vpop.f32.mrb[0].mxu0
        %v3095 = vadd.f32 0.0, %v3094
        %v3096 = vpop.f32.mrb[0].mxu0
        %3097 = vdwg.mxu0
        %v3098 = vadd.f32 %v2322, %v3080
        %v3099 = vadd.f32 %v2327, %v3085
        %v3100 = vadd.f32 %v2332, %v3090
        %v3101 = vadd.f32 %v2337, %v3095
        %3102 = vrot.lane.b32.xlu0 %v610, 104
        %v3103 = vpop.permute.xlu0 %3102
        %3104 = vrot.lane.b32.xlu0 %v715, 104
        %v3105 = vpop.permute.xlu0 %3104
        %v3106 = vsel %vm839, %v3103, 0
        %v3108 = vsel %vm839, %v3105, 0
        %3110 = vmatprep.subr.mxu0 0.0
        %3111 = vmatpush1.xpose.msra.mxu0 %v3108
        %3112 = vmatprep.subr.mxu0 0.0
        %3113 = vmatpush1.xpose.msra.mxu0 0.0
        %3114 = vmatprep.subr.mxu0 0.0
        %3115 = vmatpush1.xpose.msra.mxu0 0.0
        %3116 = vmatprep.subr.mxu0 0.0
        %3117 = vmatpush1.xpose.msra.mxu0 0.0
        %3118 = vmatprep.subr.mxu0 0.0
        %3119 = vmatpush1.xpose.msra.mxu0 0.0
        %3120 = vmatprep.subr.mxu0 0.0
        %3121 = vmatpush1.xpose.msra.mxu0 0.0
        %3122 = vmatprep.subr.mxu0 0.0
        %3123 = vmatpush1.xpose.msra.mxu0 0.0
        %3124 = vmatprep.subr.mxu0 0.0
        %3125 = vmatpush1.xpose.msra.mxu0 0.0
        %3126 = vmatprep.subr.mxu0 0.0
        %3127 = vmatpush1.xpose.msra.mxu0 0.0
        %3128 = vmatprep.subr.mxu0 0.0
        %3129 = vmatpush1.xpose.msra.mxu0 0.0
        %3130 = vmatprep.subr.mxu0 0.0
        %3131 = vmatpush1.xpose.msra.mxu0 0.0
        %3132 = vmatprep.subr.mxu0 0.0
        %3133 = vmatpush1.xpose.msra.mxu0 0.0
        %3134 = vmatprep.subr.mxu0 0.0
        %3135 = vmatpush1.xpose.msra.mxu0 0.0
        %3136 = vmatprep.subr.mxu0 0.0
        %3137 = vmatpush1.xpose.msra.mxu0 0.0
        %3138 = vmatprep.subr.mxu0 0.0
        %3139 = vmatpush1.xpose.msra.mxu0 0.0
        %3140 = vmatprep.subr.mxu0 0.0
        %3141 = vmatpush1.xpose.msra.mxu0 0.0
        %3142 = vmatprep.subr.mxu0 0.0
        %3143 = vmatpush1.xpose.msra.mxu0 0.0
        %3144 = vmatprep.subr.mxu0 0.0
        %3145 = vmatpush1.xpose.msra.mxu0 0.0
        %3146 = vmatprep.subr.mxu0 0.0
        %3147 = vmatpush1.xpose.msra.mxu0 0.0
        %3148 = vmatprep.subr.mxu0 0.0
        %3149 = vmatpush1.xpose.msra.mxu0 0.0
        %3150 = vmatprep.subr.mxu0 0.0
        %3151 = vmatpush1.xpose.msra.mxu0 0.0
        %3152 = vmatprep.subr.mxu0 0.0
        %3153 = vmatpush1.xpose.msra.mxu0 0.0
        %3154 = vmatprep.subr.mxu0 0.0
        %3155 = vmatpush1.xpose.msra.mxu0 0.0
        %3156 = vmatprep.subr.mxu0 0.0
        %3157 = vmatpush1.xpose.msra.mxu0 0.0
        %3158 = vmatprep.subr.mxu0 0.0
        %3159 = vmatpush1.xpose.msra.mxu0 0.0
        %3160 = vmatprep.subr.mxu0 0.0
        %3161 = vmatpush1.xpose.msra.mxu0 0.0
        %3162 = vmatprep.subr.mxu0 0.0
        %3163 = vmatpush1.xpose.msra.mxu0 0.0
        %3164 = vmatprep.subr.mxu0 0.0
        %3165 = vmatpush1.xpose.msra.mxu0 0.0
        %3166 = vmatprep.subr.mxu0 0.0
        %3167 = vmatpush1.xpose.msra.mxu0 0.0
        %3168 = vmatprep.subr.mxu0 0.0
        %3169 = vmatpush1.xpose.msra.mxu0 0.0
        %3170 = vmatprep.subr.mxu0 0.0
        %3171 = vmatpush1.xpose.msra.mxu0 0.0
        %3172 = vmatprep.subr.mxu0 0.0
        %3173 = vmatpush1.xpose.msra.mxu0 0.0
        %3174 = vmatprep.mubr.f32.mxu0 0.0
        %3175 = vmatmul.mubr.f32.gmra.mrb[0].mxu0 %v3106
        %v3176 = vpop.f32.mrb[0].mxu0
        %v3177 = vadd.f32 0.0, %v3176
        %v3178 = vpop.f32.mrb[0].mxu0
        %3179 = vdwg.mxu0
        %3180 = vrot.lane.b32.xlu0 %v615, 104
        %v3181 = vpop.permute.xlu0 %3180
        %3182 = vrot.lane.b32.xlu0 %v720, 104
        %v3183 = vpop.permute.xlu0 %3182
        %v3184 = vsel %vm839, %v3181, 0
        %v3186 = vsel %vm839, %v3183, 0
        %3188 = vmatprep.subr.mxu0 0.0
        %3189 = vmatpush1.xpose.msra.mxu0 %v3186
        %3190 = vmatprep.subr.mxu0 0.0
        %3191 = vmatpush1.xpose.msra.mxu0 0.0
        %3192 = vmatprep.subr.mxu0 0.0
        %3193 = vmatpush1.xpose.msra.mxu0 0.0
        %3194 = vmatprep.subr.mxu0 0.0
        %3195 = vmatpush1.xpose.msra.mxu0 0.0
        %3196 = vmatprep.subr.mxu0 0.0
        %3197 = vmatpush1.xpose.msra.mxu0 0.0
        %3198 = vmatprep.subr.mxu0 0.0
        %3199 = vmatpush1.xpose.msra.mxu0 0.0
        %3200 = vmatprep.subr.mxu0 0.0
        %3201 = vmatpush1.xpose.msra.mxu0 0.0
        %3202 = vmatprep.subr.mxu0 0.0
        %3203 = vmatpush1.xpose.msra.mxu0 0.0
        %3204 = vmatprep.subr.mxu0 0.0
        %3205 = vmatpush1.xpose.msra.mxu0 0.0
        %3206 = vmatprep.subr.mxu0 0.0
        %3207 = vmatpush1.xpose.msra.mxu0 0.0
        %3208 = vmatprep.subr.mxu0 0.0
        %3209 = vmatpush1.xpose.msra.mxu0 0.0
        %3210 = vmatprep.subr.mxu0 0.0
        %3211 = vmatpush1.xpose.msra.mxu0 0.0
        %3212 = vmatprep.subr.mxu0 0.0
        %3213 = vmatpush1.xpose.msra.mxu0 0.0
        %3214 = vmatprep.subr.mxu0 0.0
        %3215 = vmatpush1.xpose.msra.mxu0 0.0
        %3216 = vmatprep.subr.mxu0 0.0
        %3217 = vmatpush1.xpose.msra.mxu0 0.0
        %3218 = vmatprep.subr.mxu0 0.0
        %3219 = vmatpush1.xpose.msra.mxu0 0.0
        %3220 = vmatprep.subr.mxu0 0.0
        %3221 = vmatpush1.xpose.msra.mxu0 0.0
        %3222 = vmatprep.subr.mxu0 0.0
        %3223 = vmatpush1.xpose.msra.mxu0 0.0
        %3224 = vmatprep.subr.mxu0 0.0
        %3225 = vmatpush1.xpose.msra.mxu0 0.0
        %3226 = vmatprep.subr.mxu0 0.0
        %3227 = vmatpush1.xpose.msra.mxu0 0.0
        %3228 = vmatprep.subr.mxu0 0.0
        %3229 = vmatpush1.xpose.msra.mxu0 0.0
        %3230 = vmatprep.subr.mxu0 0.0
        %3231 = vmatpush1.xpose.msra.mxu0 0.0
        %3232 = vmatprep.subr.mxu0 0.0
        %3233 = vmatpush1.xpose.msra.mxu0 0.0
        %3234 = vmatprep.subr.mxu0 0.0
        %3235 = vmatpush1.xpose.msra.mxu0 0.0
        %3236 = vmatprep.subr.mxu0 0.0
        %3237 = vmatpush1.xpose.msra.mxu0 0.0
        %3238 = vmatprep.subr.mxu0 0.0
        %3239 = vmatpush1.xpose.msra.mxu0 0.0
        %3240 = vmatprep.subr.mxu0 0.0
        %3241 = vmatpush1.xpose.msra.mxu0 0.0
        %3242 = vmatprep.subr.mxu0 0.0
        %3243 = vmatpush1.xpose.msra.mxu0 0.0
        %3244 = vmatprep.subr.mxu0 0.0
        %3245 = vmatpush1.xpose.msra.mxu0 0.0
        %3246 = vmatprep.subr.mxu0 0.0
        %3247 = vmatpush1.xpose.msra.mxu0 0.0
        %3248 = vmatprep.subr.mxu0 0.0
        %3249 = vmatpush1.xpose.msra.mxu0 0.0
        %3250 = vmatprep.subr.mxu0 0.0
        %3251 = vmatpush1.xpose.msra.mxu0 0.0
        %3252 = vmatprep.mubr.f32.mxu0 0.0
        %3253 = vmatmul.mubr.f32.gmra.mrb[0].mxu0 %v3184
        %v3254 = vpop.f32.mrb[0].mxu0
        %v3255 = vadd.f32 0.0, %v3254
        %v3256 = vpop.f32.mrb[0].mxu0
        %3257 = vdwg.mxu0
        %3258 = vrot.lane.b32.xlu0 %v620, 104
        %v3259 = vpop.permute.xlu0 %3258
        %3260 = vrot.lane.b32.xlu0 %v725, 104
        %v3261 = vpop.permute.xlu0 %3260
        %v3262 = vsel %vm839, %v3259, 0
        %v3264 = vsel %vm839, %v3261, 0
        %3266 = vmatprep.subr.mxu0 0.0
        %3267 = vmatpush1.xpose.msra.mxu0 %v3264
        %3268 = vmatprep.subr.mxu0 0.0
        %3269 = vmatpush1.xpose.msra.mxu0 0.0
        %3270 = vmatprep.subr.mxu0 0.0
        %3271 = vmatpush1.xpose.msra.mxu0 0.0
        %3272 = vmatprep.subr.mxu0 0.0
        %3273 = vmatpush1.xpose.msra.mxu0 0.0
        %3274 = vmatprep.subr.mxu0 0.0
        %3275 = vmatpush1.xpose.msra.mxu0 0.0
        %3276 = vmatprep.subr.mxu0 0.0
        %3277 = vmatpush1.xpose.msra.mxu0 0.0
        %3278 = vmatprep.subr.mxu0 0.0
        %3279 = vmatpush1.xpose.msra.mxu0 0.0
        %3280 = vmatprep.subr.mxu0 0.0
        %3281 = vmatpush1.xpose.msra.mxu0 0.0
        %3282 = vmatprep.subr.mxu0 0.0
        %3283 = vmatpush1.xpose.msra.mxu0 0.0
        %3284 = vmatprep.subr.mxu0 0.0
        %3285 = vmatpush1.xpose.msra.mxu0 0.0
        %3286 = vmatprep.subr.mxu0 0.0
        %3287 = vmatpush1.xpose.msra.mxu0 0.0
        %3288 = vmatprep.subr.mxu0 0.0
        %3289 = vmatpush1.xpose.msra.mxu0 0.0
        %3290 = vmatprep.subr.mxu0 0.0
        %3291 = vmatpush1.xpose.msra.mxu0 0.0
        %3292 = vmatprep.subr.mxu0 0.0
        %3293 = vmatpush1.xpose.msra.mxu0 0.0
        %3294 = vmatprep.subr.mxu0 0.0
        %3295 = vmatpush1.xpose.msra.mxu0 0.0
        %3296 = vmatprep.subr.mxu0 0.0
        %3297 = vmatpush1.xpose.msra.mxu0 0.0
        %3298 = vmatprep.subr.mxu0 0.0
        %3299 = vmatpush1.xpose.msra.mxu0 0.0
        %3300 = vmatprep.subr.mxu0 0.0
        %3301 = vmatpush1.xpose.msra.mxu0 0.0
        %3302 = vmatprep.subr.mxu0 0.0
        %3303 = vmatpush1.xpose.msra.mxu0 0.0
        %3304 = vmatprep.subr.mxu0 0.0
        %3305 = vmatpush1.xpose.msra.mxu0 0.0
        %3306 = vmatprep.subr.mxu0 0.0
        %3307 = vmatpush1.xpose.msra.mxu0 0.0
        %3308 = vmatprep.subr.mxu0 0.0
        %3309 = vmatpush1.xpose.msra.mxu0 0.0
        %3310 = vmatprep.subr.mxu0 0.0
        %3311 = vmatpush1.xpose.msra.mxu0 0.0
        %3312 = vmatprep.subr.mxu0 0.0
        %3313 = vmatpush1.xpose.msra.mxu0 0.0
        %3314 = vmatprep.subr.mxu0 0.0
        %3315 = vmatpush1.xpose.msra.mxu0 0.0
        %3316 = vmatprep.subr.mxu0 0.0
        %3317 = vmatpush1.xpose.msra.mxu0 0.0
        %3318 = vmatprep.subr.mxu0 0.0
        %3319 = vmatpush1.xpose.msra.mxu0 0.0
        %3320 = vmatprep.subr.mxu0 0.0
        %3321 = vmatpush1.xpose.msra.mxu0 0.0
        %3322 = vmatprep.subr.mxu0 0.0
        %3323 = vmatpush1.xpose.msra.mxu0 0.0
        %3324 = vmatprep.subr.mxu0 0.0
        %3325 = vmatpush1.xpose.msra.mxu0 0.0
        %3326 = vmatprep.subr.mxu0 0.0
        %3327 = vmatpush1.xpose.msra.mxu0 0.0
        %3328 = vmatprep.subr.mxu0 0.0
        %3329 = vmatpush1.xpose.msra.mxu0 0.0
        %3330 = vmatprep.mubr.f32.mxu0 0.0
        %3331 = vmatmul.mubr.f32.gmra.mrb[0].mxu0 %v3262
        %v3332 = vpop.f32.mrb[0].mxu0
        %v3333 = vadd.f32 0.0, %v3332
        %v3334 = vpop.f32.mrb[0].mxu0
        %3335 = vdwg.mxu0
        %3336 = vrot.lane.b32.xlu0 %v625, 104
        %v3337 = vpop.permute.xlu0 %3336
        %3338 = vrot.lane.b32.xlu0 %v730, 104
        %v3339 = vpop.permute.xlu0 %3338
        %v3340 = vsel %vm839, %v3337, 0
        %v3342 = vsel %vm839, %v3339, 0
        %3344 = vmatprep.subr.mxu0 0.0
        %3345 = vmatpush1.xpose.msra.mxu0 %v3342
        %3346 = vmatprep.subr.mxu0 0.0
        %3347 = vmatpush1.xpose.msra.mxu0 0.0
        %3348 = vmatprep.subr.mxu0 0.0
        %3349 = vmatpush1.xpose.msra.mxu0 0.0
        %3350 = vmatprep.subr.mxu0 0.0
        %3351 = vmatpush1.xpose.msra.mxu0 0.0
        %3352 = vmatprep.subr.mxu0 0.0
        %3353 = vmatpush1.xpose.msra.mxu0 0.0
        %3354 = vmatprep.subr.mxu0 0.0
        %3355 = vmatpush1.xpose.msra.mxu0 0.0
        %3356 = vmatprep.subr.mxu0 0.0
        %3357 = vmatpush1.xpose.msra.mxu0 0.0
        %3358 = vmatprep.subr.mxu0 0.0
        %3359 = vmatpush1.xpose.msra.mxu0 0.0
        %3360 = vmatprep.subr.mxu0 0.0
        %3361 = vmatpush1.xpose.msra.mxu0 0.0
        %3362 = vmatprep.subr.mxu0 0.0
        %3363 = vmatpush1.xpose.msra.mxu0 0.0
        %3364 = vmatprep.subr.mxu0 0.0
        %3365 = vmatpush1.xpose.msra.mxu0 0.0
        %3366 = vmatprep.subr.mxu0 0.0
        %3367 = vmatpush1.xpose.msra.mxu0 0.0
        %3368 = vmatprep.subr.mxu0 0.0
        %3369 = vmatpush1.xpose.msra.mxu0 0.0
        %3370 = vmatprep.subr.mxu0 0.0
        %3371 = vmatpush1.xpose.msra.mxu0 0.0
        %3372 = vmatprep.subr.mxu0 0.0
        %3373 = vmatpush1.xpose.msra.mxu0 0.0
        %3374 = vmatprep.subr.mxu0 0.0
        %3375 = vmatpush1.xpose.msra.mxu0 0.0
        %3376 = vmatprep.subr.mxu0 0.0
        %3377 = vmatpush1.xpose.msra.mxu0 0.0
        %3378 = vmatprep.subr.mxu0 0.0
        %3379 = vmatpush1.xpose.msra.mxu0 0.0
        %3380 = vmatprep.subr.mxu0 0.0
        %3381 = vmatpush1.xpose.msra.mxu0 0.0
        %3382 = vmatprep.subr.mxu0 0.0
        %3383 = vmatpush1.xpose.msra.mxu0 0.0
        %3384 = vmatprep.subr.mxu0 0.0
        %3385 = vmatpush1.xpose.msra.mxu0 0.0
        %3386 = vmatprep.subr.mxu0 0.0
        %3387 = vmatpush1.xpose.msra.mxu0 0.0
        %3388 = vmatprep.subr.mxu0 0.0
        %3389 = vmatpush1.xpose.msra.mxu0 0.0
        %3390 = vmatprep.subr.mxu0 0.0
        %3391 = vmatpush1.xpose.msra.mxu0 0.0
        %3392 = vmatprep.subr.mxu0 0.0
        %3393 = vmatpush1.xpose.msra.mxu0 0.0
        %3394 = vmatprep.subr.mxu0 0.0
        %3395 = vmatpush1.xpose.msra.mxu0 0.0
        %3396 = vmatprep.subr.mxu0 0.0
        %3397 = vmatpush1.xpose.msra.mxu0 0.0
        %3398 = vmatprep.subr.mxu0 0.0
        %3399 = vmatpush1.xpose.msra.mxu0 0.0
        %3400 = vmatprep.subr.mxu0 0.0
        %3401 = vmatpush1.xpose.msra.mxu0 0.0
        %3402 = vmatprep.subr.mxu0 0.0
        %3403 = vmatpush1.xpose.msra.mxu0 0.0
        %3404 = vmatprep.subr.mxu0 0.0
        %3405 = vmatpush1.xpose.msra.mxu0 0.0
        %3406 = vmatprep.subr.mxu0 0.0
        %3407 = vmatpush1.xpose.msra.mxu0 0.0
        %3408 = vmatprep.mubr.f32.mxu0 0.0
        %3409 = vmatmul.mubr.f32.gmra.mrb[0].mxu0 %v3340
        %v3410 = vpop.f32.mrb[0].mxu0
        %v3411 = vadd.f32 0.0, %v3410
        %v3412 = vpop.f32.mrb[0].mxu0
        %3413 = vdwg.mxu0
        %v3414 = vsel %vm839, %v3177, -inf
        %3415 = vmax.xlane.f32.xlu0 %v3414
        %v3416 = vpop.xlane.xlu0 %3415
        %v3417 = vsel %vm839, %v3255, -inf
        %3418 = vmax.xlane.f32.xlu0 %v3417
        %v3419 = vpop.xlane.xlu0 %3418
        %v3420 = vsel %vm839, %v3333, -inf
        %3421 = vmax.xlane.f32.xlu0 %v3420
        %v3422 = vpop.xlane.xlu0 %3421
        %v3423 = vsel %vm839, %v3411, -inf
        %3424 = vmax.xlane.f32.xlu0 %v3423
        %v3425 = vpop.xlane.xlu0 %3424
        %v3426 = vsub.f32 %v3177, %v3416
        %v3427 = vsub.f32 %v3255, %v3419
        %v3428 = vsub.f32 %v3333, %v3422
        %v3429 = vsub.f32 %v3411, %v3425
        %v3430 = vmul.f32 %v3426, 1.442695
        %v3431 = vpow.pop %v3430
        %v3432 = vmul.f32 %v3427, 1.442695
        %v3433 = vpow.pop %v3432
        %v3434 = vmul.f32 %v3428, 1.442695
        %v3435 = vpow.pop %v3434
        %v3436 = vmul.f32 %v3429, 1.442695
        %v3437 = vpow.pop %v3436
        %v3438 = vsel %vm839, %v3431, 0.0
        %3439 = vadd.xlane.f32.xlu0 %v3438
        %v3440 = vpop.xlane.xlu0 %3439
        %v3441 = vsel %vm839, %v3433, 0.0
        %3442 = vadd.xlane.f32.xlu0 %v3441
        %v3443 = vpop.xlane.xlu0 %3442
        %v3444 = vsel %vm839, %v3435, 0.0
        %3445 = vadd.xlane.f32.xlu0 %v3444
        %v3446 = vpop.xlane.xlu0 %3445
        %v3447 = vsel %vm839, %v3437, 0.0
        %3448 = vadd.xlane.f32.xlu0 %v3447
        %v3449 = vpop.xlane.xlu0 %3448
        %3450 = vrot.lane.b32.xlu0 %v820, 104
        %v3451 = vpop.permute.xlu0 %3450
        %v3454 = vsel %vm839, %v3431, 0
        %3456 = vmatprep.subr.mxu0 0.0
        %3457 = vmatpush1.msra.mxu0 %v3451
        %3458 = vmatprep.subr.mxu0 0.0
        %3459 = vmatpush1.msra.mxu0 0.0
        %3460 = vmatprep.subr.mxu0 0.0
        %3461 = vmatpush1.msra.mxu0 0.0
        %3462 = vmatprep.subr.mxu0 0.0
        %3463 = vmatpush1.msra.mxu0 0.0
        %3464 = vmatprep.subr.mxu0 0.0
        %3465 = vmatpush1.msra.mxu0 0.0
        %3466 = vmatprep.subr.mxu0 0.0
        %3467 = vmatpush1.msra.mxu0 0.0
        %3468 = vmatprep.subr.mxu0 0.0
        %3469 = vmatpush1.msra.mxu0 0.0
        %3470 = vmatprep.subr.mxu0 0.0
        %3471 = vmatpush1.msra.mxu0 0.0
        %3472 = vmatprep.subr.mxu0 0.0
        %3473 = vmatpush1.msra.mxu0 0.0
        %3474 = vmatprep.subr.mxu0 0.0
        %3475 = vmatpush1.msra.mxu0 0.0
        %3476 = vmatprep.subr.mxu0 0.0
        %3477 = vmatpush1.msra.mxu0 0.0
        %3478 = vmatprep.subr.mxu0 0.0
        %3479 = vmatpush1.msra.mxu0 0.0
        %3480 = vmatprep.subr.mxu0 0.0
        %3481 = vmatpush1.msra.mxu0 0.0
        %3482 = vmatprep.subr.mxu0 0.0
        %3483 = vmatpush1.msra.mxu0 0.0
        %3484 = vmatprep.subr.mxu0 0.0
        %3485 = vmatpush1.msra.mxu0 0.0
        %3486 = vmatprep.subr.mxu0 0.0
        %3487 = vmatpush1.msra.mxu0 0.0
        %3488 = vmatprep.subr.mxu0 0.0
        %3489 = vmatpush1.msra.mxu0 0.0
        %3490 = vmatprep.subr.mxu0 0.0
        %3491 = vmatpush1.msra.mxu0 0.0
        %3492 = vmatprep.subr.mxu0 0.0
        %3493 = vmatpush1.msra.mxu0 0.0
        %3494 = vmatprep.subr.mxu0 0.0
        %3495 = vmatpush1.msra.mxu0 0.0
        %3496 = vmatprep.subr.mxu0 0.0
        %3497 = vmatpush1.msra.mxu0 0.0
        %3498 = vmatprep.subr.mxu0 0.0
        %3499 = vmatpush1.msra.mxu0 0.0
        %3500 = vmatprep.subr.mxu0 0.0
        %3501 = vmatpush1.msra.mxu0 0.0
        %3502 = vmatprep.subr.mxu0 0.0
        %3503 = vmatpush1.msra.mxu0 0.0
        %3504 = vmatprep.subr.mxu0 0.0
        %3505 = vmatpush1.msra.mxu0 0.0
        %3506 = vmatprep.subr.mxu0 0.0
        %3507 = vmatpush1.msra.mxu0 0.0
        %3508 = vmatprep.subr.mxu0 0.0
        %3509 = vmatpush1.msra.mxu0 0.0
        %3510 = vmatprep.subr.mxu0 0.0
        %3511 = vmatpush1.msra.mxu0 0.0
        %3512 = vmatprep.subr.mxu0 0.0
        %3513 = vmatpush1.msra.mxu0 0.0
        %3514 = vmatprep.subr.mxu0 0.0
        %3515 = vmatpush1.msra.mxu0 0.0
        %3516 = vmatprep.subr.mxu0 0.0
        %3517 = vmatpush1.msra.mxu0 0.0
        %3518 = vmatprep.subr.mxu0 0.0
        %3519 = vmatpush1.msra.mxu0 0.0
        %3520 = vmatprep.mubr.f32.mxu0 0.0
        %3521 = vmatmul.mubr.f32.gmra.mrb[0].mxu0 %v3454
        %v3522 = vpop.f32.mrb[0].mxu0
        %v3523 = vadd.f32 0.0, %v3522
        %v3524 = vpop.f32.mrb[0].mxu0
        %3525 = vdwg.mxu0
        %3526 = vrot.lane.b32.xlu0 %v825, 104
        %v3527 = vpop.permute.xlu0 %3526
        %v3530 = vsel %vm839, %v3433, 0
        %3532 = vmatprep.subr.mxu0 0.0
        %3533 = vmatpush1.msra.mxu0 %v3527
        %3534 = vmatprep.subr.mxu0 0.0
        %3535 = vmatpush1.msra.mxu0 0.0
        %3536 = vmatprep.subr.mxu0 0.0
        %3537 = vmatpush1.msra.mxu0 0.0
        %3538 = vmatprep.subr.mxu0 0.0
        %3539 = vmatpush1.msra.mxu0 0.0
        %3540 = vmatprep.subr.mxu0 0.0
        %3541 = vmatpush1.msra.mxu0 0.0
        %3542 = vmatprep.subr.mxu0 0.0
        %3543 = vmatpush1.msra.mxu0 0.0
        %3544 = vmatprep.subr.mxu0 0.0
        %3545 = vmatpush1.msra.mxu0 0.0
        %3546 = vmatprep.subr.mxu0 0.0
        %3547 = vmatpush1.msra.mxu0 0.0
        %3548 = vmatprep.subr.mxu0 0.0
        %3549 = vmatpush1.msra.mxu0 0.0
        %3550 = vmatprep.subr.mxu0 0.0
        %3551 = vmatpush1.msra.mxu0 0.0
        %3552 = vmatprep.subr.mxu0 0.0
        %3553 = vmatpush1.msra.mxu0 0.0
        %3554 = vmatprep.subr.mxu0 0.0
        %3555 = vmatpush1.msra.mxu0 0.0
        %3556 = vmatprep.subr.mxu0 0.0
        %3557 = vmatpush1.msra.mxu0 0.0
        %3558 = vmatprep.subr.mxu0 0.0
        %3559 = vmatpush1.msra.mxu0 0.0
        %3560 = vmatprep.subr.mxu0 0.0
        %3561 = vmatpush1.msra.mxu0 0.0
        %3562 = vmatprep.subr.mxu0 0.0
        %3563 = vmatpush1.msra.mxu0 0.0
        %3564 = vmatprep.subr.mxu0 0.0
        %3565 = vmatpush1.msra.mxu0 0.0
        %3566 = vmatprep.subr.mxu0 0.0
        %3567 = vmatpush1.msra.mxu0 0.0
        %3568 = vmatprep.subr.mxu0 0.0
        %3569 = vmatpush1.msra.mxu0 0.0
        %3570 = vmatprep.subr.mxu0 0.0
        %3571 = vmatpush1.msra.mxu0 0.0
        %3572 = vmatprep.subr.mxu0 0.0
        %3573 = vmatpush1.msra.mxu0 0.0
        %3574 = vmatprep.subr.mxu0 0.0
        %3575 = vmatpush1.msra.mxu0 0.0
        %3576 = vmatprep.subr.mxu0 0.0
        %3577 = vmatpush1.msra.mxu0 0.0
        %3578 = vmatprep.subr.mxu0 0.0
        %3579 = vmatpush1.msra.mxu0 0.0
        %3580 = vmatprep.subr.mxu0 0.0
        %3581 = vmatpush1.msra.mxu0 0.0
        %3582 = vmatprep.subr.mxu0 0.0
        %3583 = vmatpush1.msra.mxu0 0.0
        %3584 = vmatprep.subr.mxu0 0.0
        %3585 = vmatpush1.msra.mxu0 0.0
        %3586 = vmatprep.subr.mxu0 0.0
        %3587 = vmatpush1.msra.mxu0 0.0
        %3588 = vmatprep.subr.mxu0 0.0
        %3589 = vmatpush1.msra.mxu0 0.0
        %3590 = vmatprep.subr.mxu0 0.0
        %3591 = vmatpush1.msra.mxu0 0.0
        %3592 = vmatprep.subr.mxu0 0.0
        %3593 = vmatpush1.msra.mxu0 0.0
        %3594 = vmatprep.subr.mxu0 0.0
        %3595 = vmatpush1.msra.mxu0 0.0
        %3596 = vmatprep.mubr.f32.mxu0 0.0
        %3597 = vmatmul.mubr.f32.gmra.mrb[0].mxu0 %v3530
        %v3598 = vpop.f32.mrb[0].mxu0
        %v3599 = vadd.f32 0.0, %v3598
        %v3600 = vpop.f32.mrb[0].mxu0
        %3601 = vdwg.mxu0
        %3602 = vrot.lane.b32.xlu0 %v830, 104
        %v3603 = vpop.permute.xlu0 %3602
        %v3606 = vsel %vm839, %v3435, 0
        %3608 = vmatprep.subr.mxu0 0.0
        %3609 = vmatpush1.msra.mxu0 %v3603
        %3610 = vmatprep.subr.mxu0 0.0
        %3611 = vmatpush1.msra.mxu0 0.0
        %3612 = vmatprep.subr.mxu0 0.0
        %3613 = vmatpush1.msra.mxu0 0.0
        %3614 = vmatprep.subr.mxu0 0.0
        %3615 = vmatpush1.msra.mxu0 0.0
        %3616 = vmatprep.subr.mxu0 0.0
        %3617 = vmatpush1.msra.mxu0 0.0
        %3618 = vmatprep.subr.mxu0 0.0
        %3619 = vmatpush1.msra.mxu0 0.0
        %3620 = vmatprep.subr.mxu0 0.0
        %3621 = vmatpush1.msra.mxu0 0.0
        %3622 = vmatprep.subr.mxu0 0.0
        %3623 = vmatpush1.msra.mxu0 0.0
        %3624 = vmatprep.subr.mxu0 0.0
        %3625 = vmatpush1.msra.mxu0 0.0
        %3626 = vmatprep.subr.mxu0 0.0
        %3627 = vmatpush1.msra.mxu0 0.0
        %3628 = vmatprep.subr.mxu0 0.0
        %3629 = vmatpush1.msra.mxu0 0.0
        %3630 = vmatprep.subr.mxu0 0.0
        %3631 = vmatpush1.msra.mxu0 0.0
        %3632 = vmatprep.subr.mxu0 0.0
        %3633 = vmatpush1.msra.mxu0 0.0
        %3634 = vmatprep.subr.mxu0 0.0
        %3635 = vmatpush1.msra.mxu0 0.0
        %3636 = vmatprep.subr.mxu0 0.0
        %3637 = vmatpush1.msra.mxu0 0.0
        %3638 = vmatprep.subr.mxu0 0.0
        %3639 = vmatpush1.msra.mxu0 0.0
        %3640 = vmatprep.subr.mxu0 0.0
        %3641 = vmatpush1.msra.mxu0 0.0
        %3642 = vmatprep.subr.mxu0 0.0
        %3643 = vmatpush1.msra.mxu0 0.0
        %3644 = vmatprep.subr.mxu0 0.0
        %3645 = vmatpush1.msra.mxu0 0.0
        %3646 = vmatprep.subr.mxu0 0.0
        %3647 = vmatpush1.msra.mxu0 0.0
        %3648 = vmatprep.subr.mxu0 0.0
        %3649 = vmatpush1.msra.mxu0 0.0
        %3650 = vmatprep.subr.mxu0 0.0
        %3651 = vmatpush1.msra.mxu0 0.0
        %3652 = vmatprep.subr.mxu0 0.0
        %3653 = vmatpush1.msra.mxu0 0.0
        %3654 = vmatprep.subr.mxu0 0.0
        %3655 = vmatpush1.msra.mxu0 0.0
        %3656 = vmatprep.subr.mxu0 0.0
        %3657 = vmatpush1.msra.mxu0 0.0
        %3658 = vmatprep.subr.mxu0 0.0
        %3659 = vmatpush1.msra.mxu0 0.0
        %3660 = vmatprep.subr.mxu0 0.0
        %3661 = vmatpush1.msra.mxu0 0.0
        %3662 = vmatprep.subr.mxu0 0.0
        %3663 = vmatpush1.msra.mxu0 0.0
        %3664 = vmatprep.subr.mxu0 0.0
        %3665 = vmatpush1.msra.mxu0 0.0
        %3666 = vmatprep.subr.mxu0 0.0
        %3667 = vmatpush1.msra.mxu0 0.0
        %3668 = vmatprep.subr.mxu0 0.0
        %3669 = vmatpush1.msra.mxu0 0.0
        %3670 = vmatprep.subr.mxu0 0.0
        %3671 = vmatpush1.msra.mxu0 0.0
        %3672 = vmatprep.mubr.f32.mxu0 0.0
        %3673 = vmatmul.mubr.f32.gmra.mrb[0].mxu0 %v3606
        %v3674 = vpop.f32.mrb[0].mxu0
        %v3675 = vadd.f32 0.0, %v3674
        %v3676 = vpop.f32.mrb[0].mxu0
        %3677 = vdwg.mxu0
        %3678 = vrot.lane.b32.xlu0 %v835, 104
        %v3679 = vpop.permute.xlu0 %3678
        %v3682 = vsel %vm839, %v3437, 0
        %3684 = vmatprep.subr.mxu0 0.0
        %3685 = vmatpush1.msra.mxu0 %v3679
        %3686 = vmatprep.subr.mxu0 0.0
        %3687 = vmatpush1.msra.mxu0 0.0
        %3688 = vmatprep.subr.mxu0 0.0
        %3689 = vmatpush1.msra.mxu0 0.0
        %3690 = vmatprep.subr.mxu0 0.0
        %3691 = vmatpush1.msra.mxu0 0.0
        %3692 = vmatprep.subr.mxu0 0.0
        %3693 = vmatpush1.msra.mxu0 0.0
        %3694 = vmatprep.subr.mxu0 0.0
        %3695 = vmatpush1.msra.mxu0 0.0
        %3696 = vmatprep.subr.mxu0 0.0
        %3697 = vmatpush1.msra.mxu0 0.0
        %3698 = vmatprep.subr.mxu0 0.0
        %3699 = vmatpush1.msra.mxu0 0.0
        %3700 = vmatprep.subr.mxu0 0.0
        %3701 = vmatpush1.msra.mxu0 0.0
        %3702 = vmatprep.subr.mxu0 0.0
        %3703 = vmatpush1.msra.mxu0 0.0
        %3704 = vmatprep.subr.mxu0 0.0
        %3705 = vmatpush1.msra.mxu0 0.0
        %3706 = vmatprep.subr.mxu0 0.0
        %3707 = vmatpush1.msra.mxu0 0.0
        %3708 = vmatprep.subr.mxu0 0.0
        %3709 = vmatpush1.msra.mxu0 0.0
        %3710 = vmatprep.subr.mxu0 0.0
        %3711 = vmatpush1.msra.mxu0 0.0
        %3712 = vmatprep.subr.mxu0 0.0
        %3713 = vmatpush1.msra.mxu0 0.0
        %3714 = vmatprep.subr.mxu0 0.0
        %3715 = vmatpush1.msra.mxu0 0.0
        %3716 = vmatprep.subr.mxu0 0.0
        %3717 = vmatpush1.msra.mxu0 0.0
        %3718 = vmatprep.subr.mxu0 0.0
        %3719 = vmatpush1.msra.mxu0 0.0
        %3720 = vmatprep.subr.mxu0 0.0
        %3721 = vmatpush1.msra.mxu0 0.0
        %3722 = vmatprep.subr.mxu0 0.0
        %3723 = vmatpush1.msra.mxu0 0.0
        %3724 = vmatprep.subr.mxu0 0.0
        %3725 = vmatpush1.msra.mxu0 0.0
        %3726 = vmatprep.subr.mxu0 0.0
        %3727 = vmatpush1.msra.mxu0 0.0
        %3728 = vmatprep.subr.mxu0 0.0
        %3729 = vmatpush1.msra.mxu0 0.0
        %3730 = vmatprep.subr.mxu0 0.0
        %3731 = vmatpush1.msra.mxu0 0.0
        %3732 = vmatprep.subr.mxu0 0.0
        %3733 = vmatpush1.msra.mxu0 0.0
        %3734 = vmatprep.subr.mxu0 0.0
        %3735 = vmatpush1.msra.mxu0 0.0
        %3736 = vmatprep.subr.mxu0 0.0
        %3737 = vmatpush1.msra.mxu0 0.0
        %3738 = vmatprep.subr.mxu0 0.0
        %3739 = vmatpush1.msra.mxu0 0.0
        %3740 = vmatprep.subr.mxu0 0.0
        %3741 = vmatpush1.msra.mxu0 0.0
        %3742 = vmatprep.subr.mxu0 0.0
        %3743 = vmatpush1.msra.mxu0 0.0
        %3744 = vmatprep.subr.mxu0 0.0
        %3745 = vmatpush1.msra.mxu0 0.0
        %3746 = vmatprep.subr.mxu0 0.0
        %3747 = vmatpush1.msra.mxu0 0.0
        %3748 = vmatprep.mubr.f32.mxu0 0.0
        %3749 = vmatmul.mubr.f32.gmra.mrb[0].mxu0 %v3682
        %v3750 = vpop.f32.mrb[0].mxu0
        %v3751 = vadd.f32 0.0, %v3750
        %v3752 = vpop.f32.mrb[0].mxu0
        %3753 = vdwg.mxu0
        %v3754 = vrcp.pop %v3440
        %v3755 = vmul.f32 %v3523, %v3754
        %v3756 = vrcp.pop %v3443
        %v3757 = vmul.f32 %v3599, %v3756
        %v3758 = vrcp.pop %v3446
        %v3759 = vmul.f32 %v3675, %v3758
        %v3760 = vrcp.pop %v3449
        %v3761 = vmul.f32 %v3751, %v3760
        %v3762 = vld [vmem:[#allocation8 + $0x18] sm:$0xff]
        %v3764 = vsel %vm839, %v3755, 0
        %v3767 = vsel %vm839, %v3757, 0
        %v3770 = vsel %vm839, %v3759, 0
        %v3773 = vsel %vm839, %v3761, 0
        %3775 = vmatprep.subr.mxu0 0.0
        %3776 = vmatpush1.msra.mxu0 %v3762
        %3777 = vmatprep.subr.mxu0 0.0
        %3778 = vmatpush1.msra.mxu0 0.0
        %3779 = vmatprep.subr.mxu0 0.0
        %3780 = vmatpush1.msra.mxu0 0.0
        %3781 = vmatprep.subr.mxu0 0.0
        %3782 = vmatpush1.msra.mxu0 0.0
        %3783 = vmatprep.subr.mxu0 0.0
        %3784 = vmatpush1.msra.mxu0 0.0
        %3785 = vmatprep.subr.mxu0 0.0
        %3786 = vmatpush1.msra.mxu0 0.0
        %3787 = vmatprep.subr.mxu0 0.0
        %3788 = vmatpush1.msra.mxu0 0.0
        %3789 = vmatprep.subr.mxu0 0.0
        %3790 = vmatpush1.msra.mxu0 0.0
        %3791 = vmatprep.subr.mxu0 0.0
        %3792 = vmatpush1.msra.mxu0 0.0
        %3793 = vmatprep.subr.mxu0 0.0
        %3794 = vmatpush1.msra.mxu0 0.0
        %3795 = vmatprep.subr.mxu0 0.0
        %3796 = vmatpush1.msra.mxu0 0.0
        %3797 = vmatprep.subr.mxu0 0.0
        %3798 = vmatpush1.msra.mxu0 0.0
        %3799 = vmatprep.subr.mxu0 0.0
        %3800 = vmatpush1.msra.mxu0 0.0
        %3801 = vmatprep.subr.mxu0 0.0
        %3802 = vmatpush1.msra.mxu0 0.0
        %3803 = vmatprep.subr.mxu0 0.0
        %3804 = vmatpush1.msra.mxu0 0.0
        %3805 = vmatprep.subr.mxu0 0.0
        %3806 = vmatpush1.msra.mxu0 0.0
        %3807 = vmatprep.subr.mxu0 0.0
        %3808 = vmatpush1.msra.mxu0 0.0
        %3809 = vmatprep.subr.mxu0 0.0
        %3810 = vmatpush1.msra.mxu0 0.0
        %3811 = vmatprep.subr.mxu0 0.0
        %3812 = vmatpush1.msra.mxu0 0.0
        %3813 = vmatprep.subr.mxu0 0.0
        %3814 = vmatpush1.msra.mxu0 0.0
        %3815 = vmatprep.subr.mxu0 0.0
        %3816 = vmatpush1.msra.mxu0 0.0
        %3817 = vmatprep.subr.mxu0 0.0
        %3818 = vmatpush1.msra.mxu0 0.0
        %3819 = vmatprep.subr.mxu0 0.0
        %3820 = vmatpush1.msra.mxu0 0.0
        %3821 = vmatprep.subr.mxu0 0.0
        %3822 = vmatpush1.msra.mxu0 0.0
        %3823 = vmatprep.subr.mxu0 0.0
        %3824 = vmatpush1.msra.mxu0 0.0
        %3825 = vmatprep.subr.mxu0 0.0
        %3826 = vmatpush1.msra.mxu0 0.0
        %3827 = vmatprep.subr.mxu0 0.0
        %3828 = vmatpush1.msra.mxu0 0.0
        %3829 = vmatprep.subr.mxu0 0.0
        %3830 = vmatpush1.msra.mxu0 0.0
        %3831 = vmatprep.subr.mxu0 0.0
        %3832 = vmatpush1.msra.mxu0 0.0
        %3833 = vmatprep.subr.mxu0 0.0
        %3834 = vmatpush1.msra.mxu0 0.0
        %3835 = vmatprep.subr.mxu0 0.0
        %3836 = vmatpush1.msra.mxu0 0.0
        %3837 = vmatprep.subr.mxu0 0.0
        %3838 = vmatpush1.msra.mxu0 0.0
        %3839 = vmatprep.mubr.f32.mxu0 0.0
        %3840 = vmatmul.mubr.f32.gmra.mrb[0].mxu0 %v3764
        %v3841 = vpop.f32.mrb[0].mxu0
        %v3842 = vadd.f32 0.0, %v3841
        %v3843 = vpop.f32.mrb[0].mxu0
        %3844 = vmatprep.mubr.f32.mxu0 0.0
        %3845 = vmatmul.mubr.f32.gmra.mrb[0].mxu0 %v3767
        %v3846 = vpop.f32.mrb[0].mxu0
        %v3847 = vadd.f32 0.0, %v3846
        %v3848 = vpop.f32.mrb[0].mxu0
        %3849 = vmatprep.mubr.f32.mxu0 0.0
        %3850 = vmatmul.mubr.f32.gmra.mrb[0].mxu0 %v3770
        %v3851 = vpop.f32.mrb[0].mxu0
        %v3852 = vadd.f32 0.0, %v3851
        %v3853 = vpop.f32.mrb[0].mxu0
        %3854 = vmatprep.mubr.f32.mxu0 0.0
        %3855 = vmatmul.mubr.f32.gmra.mrb[0].mxu0 %v3773
        %v3856 = vpop.f32.mrb[0].mxu0
        %v3857 = vadd.f32 0.0, %v3856
        %v3858 = vpop.f32.mrb[0].mxu0
        %3859 = vdwg.mxu0
        %v3860 = vadd.f32 %v3098, %v3842
        %v3861 = vadd.f32 %v3099, %v3847
        %v3862 = vadd.f32 %v3100, %v3852
        %v3863 = vadd.f32 %v3101, %v3857
        %v3864 = vlaneseq
        %v3865 = vshrl.u32 %v3864, 7
        %v3866 = vsub.s32 0, %v3865
        %v3867 = vrot.slane %v838, %v3866
        %v3868 = vadd.f32 %v3860, %v3867
        %v3869 = vadd.f32 %v3861, %v3867
        %v3870 = vadd.f32 %v3862, %v3867
        %v3871 = vadd.f32 %v3863, %v3867
        %v3872 = vadd.f32 %v3868, %v522
        %v3873 = vadd.f32 %v3869, %v523
        %v3874 = vadd.f32 %v3870, %v524
        %v3875 = vadd.f32 %v3871, %v525
        %v3876 = vsel %vm530, %v3872, 0.0
        %3877 = vadd.xlane.f32.xlu0 %v3876
        %v3878 = vpop.xlane.xlu0 %3877
        %v3879 = vsel %vm530, %v3873, 0.0
        %3880 = vadd.xlane.f32.xlu0 %v3879
        %v3881 = vpop.xlane.xlu0 %3880
        %v3882 = vsel %vm530, %v3874, 0.0
        %3883 = vadd.xlane.f32.xlu0 %v3882
        %v3884 = vpop.xlane.xlu0 %3883
        %v3885 = vsel %vm530, %v3875, 0.0
        %3886 = vadd.xlane.f32.xlu0 %v3885
        %v3887 = vpop.xlane.xlu0 %3886
        %v3888 = vrcp.pop 32.0
        %v3889 = vmul.f32 %v3878, %v3888
        %v3890 = vmul.f32 %v3881, %v3888
        %v3891 = vmul.f32 %v3884, %v3888
        %v3892 = vmul.f32 %v3887, %v3888
        %v3893 = vsub.f32 %v3872, %v3889
        %v3894 = vsub.f32 %v3873, %v3890
        %v3895 = vsub.f32 %v3874, %v3891
        %v3896 = vsub.f32 %v3875, %v3892
        %v3897 = vmul.f32 %v3893, %v3893
        %v3898 = vmul.f32 %v3894, %v3894
        %v3899 = vmul.f32 %v3895, %v3895
        %v3900 = vmul.f32 %v3896, %v3896
        %v3901 = vsel %vm530, %v3897, 0.0
        %3902 = vadd.xlane.f32.xlu0 %v3901
        %v3903 = vpop.xlane.xlu0 %3902
        %v3904 = vsel %vm530, %v3898, 0.0
        %3905 = vadd.xlane.f32.xlu0 %v3904
        %v3906 = vpop.xlane.xlu0 %3905
        %v3907 = vsel %vm530, %v3899, 0.0
        %3908 = vadd.xlane.f32.xlu0 %v3907
        %v3909 = vpop.xlane.xlu0 %3908
        %v3910 = vsel %vm530, %v3900, 0.0
        %3911 = vadd.xlane.f32.xlu0 %v3910
        %v3912 = vpop.xlane.xlu0 %3911
        %v3913 = vmul.f32 %v3903, %v3888
        %v3914 = vmul.f32 %v3906, %v3888
        %v3915 = vmul.f32 %v3909, %v3888
        %v3916 = vmul.f32 %v3912, %v3888
        %v3917 = vadd.f32 %v3913, 1e-05
        %v3918 = vadd.f32 %v3914, 1e-05
        %v3919 = vadd.f32 %v3915, 1e-05
        %v3920 = vadd.f32 %v3916, 1e-05
        %v3921 = vrsqrt.pop %v3917
        %v3922 = vrsqrt.pop %v3918
        %v3923 = vrsqrt.pop %v3919
        %v3924 = vrsqrt.pop %v3920
        %v3925 = vmul.f32 %v3893, %v3921
        %v3926 = vmul.f32 %v3894, %v3922
        %v3927 = vmul.f32 %v3895, %v3923
        %v3928 = vmul.f32 %v3896, %v3924
        %v3929 = vlaneseq
        %v3930 = vshrl.u32 %v3929, 7
        %v3931 = vsub.s32 1, %v3930
        %v3932 = vrot.slane %v838, %v3931
        %v3933 = vmul.f32 %v3925, %v3932
        %v3934 = vmul.f32 %v3926, %v3932
        %v3935 = vmul.f32 %v3927, %v3932
        %v3936 = vmul.f32 %v3928, %v3932
        %v3937 = vlaneseq
        %v3938 = vshrl.u32 %v3937, 7
        %v3939 = vsub.s32 2, %v3938
        %v3940 = vrot.slane %v838, %v3939
        %v3941 = vadd.f32 %v3933, %v3940
        %v3942 = vadd.f32 %v3934, %v3940
        %v3943 = vadd.f32 %v3935, %v3940
        %v3944 = vadd.f32 %v3936, %v3940
        %v3945 = vld [vmem:[#allocation10] sm:$0xff]
        %v3946 = vld [vmem:[#allocation10 + $0x8] sm:$0xff]
        %v3947 = vld [vmem:[#allocation10 + $0x10] sm:$0xff]
        %v3948 = vld [vmem:[#allocation10 + $0x18] sm:$0xff]
        %v3949 = vld [vmem:[%s8] sm:$0x1]
        %v3951 = vlaneseq
        %v3952 = vshrl.u32 %v3951, 7
        %v3953 = vsub.s32 0, %v3952
        %v3954 = vrot.slane %v3949, %v3953
        %v3957 = vsel %vm530, %v3941, 0
        %v3960 = vsel %vm530, %v3942, 0
        %v3963 = vsel %vm530, %v3943, 0
        %v3966 = vsel %vm530, %v3944, 0
        %3968 = vmatprep.subr.mxu0 0.0
        %3969 = vmatpush1.msra.mxu0 %v3945
        %3970 = vmatprep.subr.mxu0 0.0
        %3971 = vmatpush1.msra.mxu0 %v3946
        %3972 = vmatprep.subr.mxu0 0.0
        %3973 = vmatpush1.msra.mxu0 %v3947
        %3974 = vmatprep.subr.mxu0 0.0
        %3975 = vmatpush1.msra.mxu0 %v3948
        %3976 = vmatprep.subr.mxu0 0.0
        %3977 = vmatpush1.msra.mxu0 0.0
        %3978 = vmatprep.subr.mxu0 0.0
        %3979 = vmatpush1.msra.mxu0 0.0
        %3980 = vmatprep.subr.mxu0 0.0
        %3981 = vmatpush1.msra.mxu0 0.0
        %3982 = vmatprep.subr.mxu0 0.0
        %3983 = vmatpush1.msra.mxu0 0.0
        %3984 = vmatprep.subr.mxu0 0.0
        %3985 = vmatpush1.msra.mxu0 0.0
        %3986 = vmatprep.subr.mxu0 0.0
        %3987 = vmatpush1.msra.mxu0 0.0
        %3988 = vmatprep.subr.mxu0 0.0
        %3989 = vmatpush1.msra.mxu0 0.0
        %3990 = vmatprep.subr.mxu0 0.0
        %3991 = vmatpush1.msra.mxu0 0.0
        %3992 = vmatprep.subr.mxu0 0.0
        %3993 = vmatpush1.msra.mxu0 0.0
        %3994 = vmatprep.subr.mxu0 0.0
        %3995 = vmatpush1.msra.mxu0 0.0
        %3996 = vmatprep.subr.mxu0 0.0
        %3997 = vmatpush1.msra.mxu0 0.0
        %3998 = vmatprep.subr.mxu0 0.0
        %3999 = vmatpush1.msra.mxu0 0.0
        %4000 = vmatprep.subr.mxu0 0.0
        %4001 = vmatpush1.msra.mxu0 0.0
        %4002 = vmatprep.subr.mxu0 0.0
        %4003 = vmatpush1.msra.mxu0 0.0
        %4004 = vmatprep.subr.mxu0 0.0
        %4005 = vmatpush1.msra.mxu0 0.0
        %4006 = vmatprep.subr.mxu0 0.0
        %4007 = vmatpush1.msra.mxu0 0.0
        %4008 = vmatprep.subr.mxu0 0.0
        %4009 = vmatpush1.msra.mxu0 0.0
        %4010 = vmatprep.subr.mxu0 0.0
        %4011 = vmatpush1.msra.mxu0 0.0
        %4012 = vmatprep.subr.mxu0 0.0
        %4013 = vmatpush1.msra.mxu0 0.0
        %4014 = vmatprep.subr.mxu0 0.0
        %4015 = vmatpush1.msra.mxu0 0.0
        %4016 = vmatprep.subr.mxu0 0.0
        %4017 = vmatpush1.msra.mxu0 0.0
        %4018 = vmatprep.subr.mxu0 0.0
        %4019 = vmatpush1.msra.mxu0 0.0
        %4020 = vmatprep.subr.mxu0 0.0
        %4021 = vmatpush1.msra.mxu0 0.0
        %4022 = vmatprep.subr.mxu0 0.0
        %4023 = vmatpush1.msra.mxu0 0.0
        %4024 = vmatprep.subr.mxu0 0.0
        %4025 = vmatpush1.msra.mxu0 0.0
        %4026 = vmatprep.subr.mxu0 0.0
        %4027 = vmatpush1.msra.mxu0 0.0
        %4028 = vmatprep.subr.mxu0 0.0
        %4029 = vmatpush1.msra.mxu0 0.0
        %4030 = vmatprep.subr.mxu0 0.0
        %4031 = vmatpush1.msra.mxu0 0.0
        %4032 = vmatprep.mubr.f32.mxu0 0.0
        %4033 = vmatmul.mubr.f32.gmra.mrb[0].mxu0 %v3957
        %v4034 = vpop.f32.mrb[0].mxu0
        %v4035 = vadd.f32 %v3954, %v4034
        %v4036 = vpop.f32.mrb[0].mxu0
        %4037 = vmatprep.mubr.f32.mxu0 0.0
        %4038 = vmatmul.mubr.f32.gmra.mrb[0].mxu0 %v3960
        %v4039 = vpop.f32.mrb[0].mxu0
        %v4040 = vadd.f32 %v3954, %v4039
        %v4041 = vpop.f32.mrb[0].mxu0
        %4042 = vmatprep.mubr.f32.mxu0 0.0
        %4043 = vmatmul.mubr.f32.gmra.mrb[0].mxu0 %v3963
        %v4044 = vpop.f32.mrb[0].mxu0
        %v4045 = vadd.f32 %v3954, %v4044
        %v4046 = vpop.f32.mrb[0].mxu0
        %4047 = vmatprep.mubr.f32.mxu0 0.0
        %4048 = vmatmul.mubr.f32.gmra.mrb[0].mxu0 %v3966
        %v4049 = vpop.f32.mrb[0].mxu0
        %v4050 = vadd.f32 %v3954, %v4049
        %v4051 = vpop.f32.mrb[0].mxu0
        %4052 = vdwg.mxu0
        %v4053 = vmax.f32 %v4035, 0.0
        %v4054 = vmax.f32 %v4040, 0.0
        %v4055 = vmax.f32 %v4045, 0.0
        %v4056 = vmax.f32 %v4050, 0.0
        %v4057 = vld [vmem:[%s9] sm:$0xff]
        %v4058 = vld [vmem:[%s9 + $0x8] sm:$0xff]
        %v4059 = vld [vmem:[%s9 + $0x10] sm:$0xff]
        %v4060 = vld [vmem:[%s9 + $0x18] sm:$0xff]
        %v4061 = vld [vmem:[%s9 + $0x20] sm:$0xff]
        %v4062 = vld [vmem:[%s9 + $0x28] sm:$0xff]
        %v4063 = vld [vmem:[%s9 + $0x30] sm:$0xff]
        %v4064 = vld [vmem:[%s9 + $0x38] sm:$0xff]
        %v4065 = vld [vmem:[%s9 + $0x40] sm:$0xff]
        %v4066 = vld [vmem:[%s9 + $0x48] sm:$0xff]
        %v4067 = vld [vmem:[%s9 + $0x50] sm:$0xff]
        %v4068 = vld [vmem:[%s9 + $0x58] sm:$0xff]
        %v4069 = vld [vmem:[%s9 + $0x60] sm:$0xff]
        %v4070 = vld [vmem:[%s9 + $0x68] sm:$0xff]
        %v4071 = vld [vmem:[%s9 + $0x70] sm:$0xff]
        %v4072 = vld [vmem:[%s9 + $0x78] sm:$0xff]
        %v4073 = vlaneseq
        %v4074 = vshrl.u32 %v4073, 7
        %v4075 = vsub.s32 3, %v4074
        %v4076 = vrot.slane %v838, %v4075
        %4077 = vmatprep.subr.mxu0 0.0
        %4078 = vmatpush1.msra.mxu0 %v4057
        %4079 = vmatprep.subr.mxu0 0.0
        %4080 = vmatpush1.msra.mxu0 %v4058
        %4081 = vmatprep.subr.mxu0 0.0
        %4082 = vmatpush1.msra.mxu0 %v4059
        %4083 = vmatprep.subr.mxu0 0.0
        %4084 = vmatpush1.msra.mxu0 %v4060
        %4085 = vmatprep.subr.mxu0 0.0
        %4086 = vmatpush1.msra.mxu0 %v4061
        %4087 = vmatprep.subr.mxu0 0.0
        %4088 = vmatpush1.msra.mxu0 %v4062
        %4089 = vmatprep.subr.mxu0 0.0
        %4090 = vmatpush1.msra.mxu0 %v4063
        %4091 = vmatprep.subr.mxu0 0.0
        %4092 = vmatpush1.msra.mxu0 %v4064
        %4093 = vmatprep.subr.mxu0 0.0
        %4094 = vmatpush1.msra.mxu0 %v4065
        %4095 = vmatprep.subr.mxu0 0.0
        %4096 = vmatpush1.msra.mxu0 %v4066
        %4097 = vmatprep.subr.mxu0 0.0
        %4098 = vmatpush1.msra.mxu0 %v4067
        %4099 = vmatprep.subr.mxu0 0.0
        %4100 = vmatpush1.msra.mxu0 %v4068
        %4101 = vmatprep.subr.mxu0 0.0
        %4102 = vmatpush1.msra.mxu0 %v4069
        %4103 = vmatprep.subr.mxu0 0.0
        %4104 = vmatpush1.msra.mxu0 %v4070
        %4105 = vmatprep.subr.mxu0 0.0
        %4106 = vmatpush1.msra.mxu0 %v4071
        %4107 = vmatprep.subr.mxu0 0.0
        %4108 = vmatpush1.msra.mxu0 %v4072
        %4109 = vmatprep.subr.mxu0 0.0
        %4110 = vmatpush1.msra.mxu0 0.0
        %4111 = vmatprep.subr.mxu0 0.0
        %4112 = vmatpush1.msra.mxu0 0.0
        %4113 = vmatprep.subr.mxu0 0.0
        %4114 = vmatpush1.msra.mxu0 0.0
        %4115 = vmatprep.subr.mxu0 0.0
        %4116 = vmatpush1.msra.mxu0 0.0
        %4117 = vmatprep.subr.mxu0 0.0
        %4118 = vmatpush1.msra.mxu0 0.0
        %4119 = vmatprep.subr.mxu0 0.0
        %4120 = vmatpush1.msra.mxu0 0.0
        %4121 = vmatprep.subr.mxu0 0.0
        %4122 = vmatpush1.msra.mxu0 0.0
        %4123 = vmatprep.subr.mxu0 0.0
        %4124 = vmatpush1.msra.mxu0 0.0
        %4125 = vmatprep.subr.mxu0 0.0
        %4126 = vmatpush1.msra.mxu0 0.0
        %4127 = vmatprep.subr.mxu0 0.0
        %4128 = vmatpush1.msra.mxu0 0.0
        %4129 = vmatprep.subr.mxu0 0.0
        %4130 = vmatpush1.msra.mxu0 0.0
        %4131 = vmatprep.subr.mxu0 0.0
        %4132 = vmatpush1.msra.mxu0 0.0
        %4133 = vmatprep.subr.mxu0 0.0
        %4134 = vmatpush1.msra.mxu0 0.0
        %4135 = vmatprep.subr.mxu0 0.0
        %4136 = vmatpush1.msra.mxu0 0.0
        %4137 = vmatprep.subr.mxu0 0.0
        %4138 = vmatpush1.msra.mxu0 0.0
        %4139 = vmatprep.subr.mxu0 0.0
        %4140 = vmatpush1.msra.mxu0 0.0
        %4141 = vmatprep.mubr.f32.mxu0 0.0
        %4142 = vmatmul.mubr.f32.gmra.mrb[0].mxu0 %v4053
        %v4143 = vpop.f32.mrb[0].mxu0
        %v4144 = vadd.f32 %v4076, %v4143
        %v4145 = vpop.f32.mrb[0].mxu0
        %4146 = vmatprep.mubr.f32.mxu0 0.0
        %4147 = vmatmul.mubr.f32.gmra.mrb[0].mxu0 %v4054
        %v4148 = vpop.f32.mrb[0].mxu0
        %v4149 = vadd.f32 %v4076, %v4148
        %v4150 = vpop.f32.mrb[0].mxu0
        %4151 = vmatprep.mubr.f32.mxu0 0.0
        %4152 = vmatmul.mubr.f32.gmra.mrb[0].mxu0 %v4055
        %v4153 = vpop.f32.mrb[0].mxu0
        %v4154 = vadd.f32 %v4076, %v4153
        %v4155 = vpop.f32.mrb[0].mxu0
        %4156 = vmatprep.mubr.f32.mxu0 0.0
        %4157 = vmatmul.mubr.f32.gmra.mrb[0].mxu0 %v4056
        %v4158 = vpop.f32.mrb[0].mxu0
        %v4159 = vadd.f32 %v4076, %v4158
        %v4160 = vpop.f32.mrb[0].mxu0
        %4161 = vdwg.mxu0
        %v4162 = vadd.f32 %v4144, %v3941
        %v4163 = vadd.f32 %v4149, %v3942
        %v4164 = vadd.f32 %v4154, %v3943
        %v4165 = vadd.f32 %v4159, %v3944
        %v4166 = vsel %vm530, %v4162, 0.0
        %4167 = vadd.xlane.f32.xlu0 %v4166
        %v4168 = vpop.xlane.xlu0 %4167
        %v4169 = vsel %vm530, %v4163, 0.0
        %4170 = vadd.xlane.f32.xlu0 %v4169
        %v4171 = vpop.xlane.xlu0 %4170
        %v4172 = vsel %vm530, %v4164, 0.0
        %4173 = vadd.xlane.f32.xlu0 %v4172
        %v4174 = vpop.xlane.xlu0 %4173
        %v4175 = vsel %vm530, %v4165, 0.0
        %4176 = vadd.xlane.f32.xlu0 %v4175
        %v4177 = vpop.xlane.xlu0 %4176
        %v4178 = vmul.f32 %v4168, %v3888
        %v4179 = vmul.f32 %v4171, %v3888
        %v4180 = vmul.f32 %v4174, %v3888
        %v4181 = vmul.f32 %v4177, %v3888
        %v4182 = vsub.f32 %v4162, %v4178
        %v4183 = vsub.f32 %v4163, %v4179
        %v4184 = vsub.f32 %v4164, %v4180
        %v4185 = vsub.f32 %v4165, %v4181
        %v4186 = vmul.f32 %v4182, %v4182
        %v4187 = vmul.f32 %v4183, %v4183
        %v4188 = vmul.f32 %v4184, %v4184
        %v4189 = vmul.f32 %v4185, %v4185
        %v4190 = vsel %vm530, %v4186, 0.0
        %4191 = vadd.xlane.f32.xlu0 %v4190
        %v4192 = vpop.xlane.xlu0 %4191
        %v4193 = vsel %vm530, %v4187, 0.0
        %4194 = vadd.xlane.f32.xlu0 %v4193
        %v4195 = vpop.xlane.xlu0 %4194
        %v4196 = vsel %vm530, %v4188, 0.0
        %4197 = vadd.xlane.f32.xlu0 %v4196
        %v4198 = vpop.xlane.xlu0 %4197
        %v4199 = vsel %vm530, %v4189, 0.0
        %4200 = vadd.xlane.f32.xlu0 %v4199
        %v4201 = vpop.xlane.xlu0 %4200
        %v4202 = vmul.f32 %v4192, %v3888
        %v4203 = vmul.f32 %v4195, %v3888
        %v4204 = vmul.f32 %v4198, %v3888
        %v4205 = vmul.f32 %v4201, %v3888
        %v4206 = vadd.f32 %v4202, 1e-05
        %v4207 = vadd.f32 %v4203, 1e-05
        %v4208 = vadd.f32 %v4204, 1e-05
        %v4209 = vadd.f32 %v4205, 1e-05
        %v4210 = vrsqrt.pop %v4206
        %v4211 = vrsqrt.pop %v4207
        %v4212 = vrsqrt.pop %v4208
        %v4213 = vrsqrt.pop %v4209
        %v4214 = vmul.f32 %v4182, %v4210
        %v4215 = vmul.f32 %v4183, %v4211
        %v4216 = vmul.f32 %v4184, %v4212
        %v4217 = vmul.f32 %v4185, %v4213
        %v4218 = vlaneseq
        %v4219 = vshrl.u32 %v4218, 7
        %v4220 = vsub.s32 4, %v4219
        %v4221 = vrot.slane %v838, %v4220
        %v4222 = vmul.f32 %v4214, %v4221
        %v4223 = vmul.f32 %v4215, %v4221
        %v4224 = vmul.f32 %v4216, %v4221
        %v4225 = vmul.f32 %v4217, %v4221
        %v4226 = vlaneseq
        %v4227 = vshrl.u32 %v4226, 7
        %v4228 = vsub.s32 5, %v4227
        %v4229 = vrot.slane %v838, %v4228
        %v4230 = vadd.f32 %v4222, %v4229
        %v4231 = vadd.f32 %v4223, %v4229
        %v4232 = vadd.f32 %v4224, %v4229
        %v4233 = vadd.f32 %v4225, %v4229
        %4234 = vst.msk [vmem:[%s507] sm:$0xff] %vm530, %v4230
        %4235 = vst.msk [vmem:[%s507 + $0x8] sm:$0xff] %vm530, %v4231
        %4236 = vst.msk [vmem:[%s507 + $0x10] sm:$0xff] %vm530, %v4232
        %4237 = vst.msk [vmem:[%s507 + $0x18] sm:$0xff] %vm530, %v4233
        %s4238 = sand.u32 %s285, 1
        %s4239 = scalar_lea.sflag [#allocation4], %s4238
        %s4240 = sand.u32 %s285, 1
        %s4241 = smul.addr %s4240, 32
        %s4242 = scalar_lea.vmem [#allocation13], %s4241
        // Predicated region
        $region89: #{tpu_custom_call.1} parent=63 // pred_check
          %p4243 = pneg %p295
        $region90: #{tpu_custom_call.1} parent=63 // pred_check_branch
          %4245 = sbr.rel (%p4243) target = $region92
        $region91: #{tpu_custom_call.1} parent=63 // pred_region
          %s4246 = smul.u32 4, %s31
          %s4248 = ssub.s32 512, 512
          %4249 = vsyncadd %s4239, %s4248
          %s4250 = smul.addr %s4246, 128
          %s4251 = scalar_lea.hbm %s11, %s4250
          %s4252 = sshll.u32 %s4242, 4
          %s4253 = int_to_ptr.vmem [resolvable:$true] %s4252
          %4258 = dma.vmem_to_hbm [thread:$0]  %s4253, 512, %s4251, %s4239, 128, 128, 8
        $region92: #{tpu_custom_call.1} parent=63 // pred_fallthru
          _
      $region64: #{tpu_custom_call.1} parent=5 // pred_fallthru
        _
      %p4259 = scmp.le.s32.totalorder 2, %s26
      // Predicated region
      $region93: #{tpu_custom_call.1} parent=5 // pred_check
        %p4260 = pneg %p4259
      $region94: #{tpu_custom_call.1} parent=5 // pred_check_branch
        %4262 = sbr.rel (%p4260) target = $region96
      $region95: #{tpu_custom_call.1} parent=5 // pred_region
        %s4263 = ssub.s32 %s26, 2
        // Predicated region
        $region97: #{tpu_custom_call.1} parent=95 // pred_check
          %p4264 = pneg %p301
        $region98: #{tpu_custom_call.1} parent=95 // pred_check_branch
          %4266 = sbr.rel (%p4264) target = $region100
        $region99: #{tpu_custom_call.1} parent=95 // pred_region
          %s4267 = sand.u32 %s286, 1
          %s4268 = scalar_lea.sflag [#allocation4], %s4267
          %s4269 = sand.u32 %s286, 1
          %s4270 = smul.addr %s4269, 32
          %s4271 = scalar_lea.vmem [#allocation13], %s4270
          %4272 = dma.done %s4268, 512
        $region100: #{tpu_custom_call.1} parent=95 // pred_fallthru
          _
      $region96: #{tpu_custom_call.1} parent=5 // pred_fallthru
        _
    $region6: #{tpu_custom_call.1} parent=1 // loop_footer
      %s30 = sadd.s32 1, %s26
    $region7: #{tpu_custom_call.1} parent=1 // loop_footer_branch
      %25 = sbr.rel target = $region3
    $region8: #{tpu_custom_call.1} parent=1 // loop_exit
      _
    %4273 = vsyncpa [#allocation3], 1
    %s4274 = scalar_lea.sflag [#allocation3], 1
    %4275 = vsyncpa %s4274, 1
    %4276 = vsyncpa [#allocation6], 1
    %4277 = vsyncpa [#allocation9], 1
    %4278 = vsyncpa [#allocation12], 1
    %4279 = vsyncpa [#allocation4], 1
    %s4280 = scalar_lea.sflag [#allocation4], 1
    %4281 = vsyncpa %s4280, 1

</llo_original>
